<compile_context>
chip_gen: v7x
topology: tpu7x:2x2x1
jax: 0.10.0
libtpu: 0.0.40
codegen_flags: <defaults>
</compile_context>

<pallas_src>
import math
from functools import lru_cache

import jax
import jax.numpy as jnp
import numpy as np
from jax.experimental import pallas as pl
from jax.experimental.pallas import tpu as pltpu

STRIDE = 3      # reduced_stride
CIN = 4         # input channels
CFEAT = 32      # base-net feature channels
K1 = 3          # head 1 "keypoint" fields   -> components [conf, reg(2D), logb]
K2 = 3          # head 2 "association" fields-> [conf, reg1, reg2, logb1, logb2]
NCH1 = 4 * K1   # 12 channels for head 1
NCH2 = 7 * K2   # 21 channels for head 2
NCH = NCH1 + NCH2   # 33 combined head channels


# ----------------------- static channel metadata -----------------------------

def _channel_maps():
    """For each of the 33 combined head channels: which conf channel drives its
    merge mask, and how it is rescaled (0=conf*0.5, 1=*stride, 2=+log(stride))."""
    conf_idx = np.zeros((NCH,), np.int32)
    mode = np.zeros((NCH,), np.int32)
    # head 1 channels [0, 12): conf(K1), reg(K1*2), logb(K1)
    for k in range(K1):
        conf_idx[k], mode[k] = k, 0
        for v in range(2):
            c = K1 + 2 * k + v
            conf_idx[c], mode[c] = k, 1
        c = 3 * K1 + k
        conf_idx[c], mode[c] = k, 2
    # head 2 channels [12, 33): conf(K2), reg1(K2*2), reg2(K2*2), logb1(K2), logb2(K2)
    o = NCH1
    for k in range(K2):
        conf_idx[o + k], mode[o + k] = o + k, 0
        for v in range(2):
            c = o + K2 + 2 * k + v
            conf_idx[c], mode[c] = o + k, 1
            c = o + 3 * K2 + 2 * k + v
            conf_idx[c], mode[c] = o + k, 1
        c = o + 5 * K2 + k
        conf_idx[c], mode[c] = o + k, 2
        c = o + 6 * K2 + k
        conf_idx[c], mode[c] = o + k, 2
    return conf_idx, mode


CONF_IDX, CH_MODE = _channel_maps()
# per-channel rescale: conf*0.5, regs*stride, logb -> x + log(stride)
_SCALE_NP = np.where(CH_MODE == 0, 0.5,
                     np.where(CH_MODE == 2, 1.0, float(STRIDE))
                     ).astype(np.float32).reshape(NCH, 1)
_ADD_NP = np.where(CH_MODE == 2, math.log(float(STRIDE)), 0.0
                   ).astype(np.float32).reshape(NCH, 1)
# selT[c, conf_idx[c]] = 1: broadcasts each field's conf mask to its channels
_SELT_NP = np.zeros((NCH, NCH), np.float32)
_SELT_NP[np.arange(NCH), CONF_IDX] = 1.0


@lru_cache(maxsize=None)
def _merge_constants(H, W, stride):
    """One-hot expansion matrix (Hr*Wr, H*W) mapping reduced positions to the
    strided full-res positions, and a (1, H*W) strided-position indicator."""
    hr = len(range(0, H, stride))
    wr = len(range(0, W, stride))
    exp_m = np.zeros((hr * wr, H * W), np.float32)
    pos = np.zeros((1, H * W), np.float32)
    for i, h in enumerate(range(0, H, stride)):
        for j, w in enumerate(range(0, W, stride)):
            p = h * W + w
            exp_m[i * wr + j, p] = 1.0
            pos[0, p] = 1.0
    return exp_m, pos


# --------------------------- Pallas kernels ----------------------------------

def _net_kernel(x_ref, bwT_ref, bb_ref, hwT_ref, hb_ref, o_ref):
    # channel-major base net (1x1 conv + relu) fused with both heads' 1x1 convs.
    # x_ref: (CIN, P), output: (NCH, P); lanes = flattened spatial.
    feat = jnp.dot(bwT_ref[...], x_ref[...], preferred_element_type=jnp.float32)
    feat = jnp.maximum(feat + bb_ref[...], 0.0)
    y = jnp.dot(hwT_ref[...], feat, preferred_element_type=jnp.float32)
    o_ref[...] = (y + hb_ref[...]).astype(o_ref.dtype)


def _net_merge_kernel(x_ref, r_ref, bwT_ref, bb_ref, hwT_ref, hb_ref,
                      scale_ref, add_ref, selT_ref, exp_ref, pos_ref, o_ref):
    # Full-resolution net for one image with the Shell2Scale merge fused into
    # the epilogue; the full-res head tensor is stored exactly once.
    feat = jnp.dot(bwT_ref[...], x_ref[...], preferred_element_type=jnp.float32)
    feat = jnp.maximum(feat + bb_ref[...], 0.0)                     # (CFEAT, P)
    y = (jnp.dot(hwT_ref[...], feat, preferred_element_type=jnp.float32)
         + hb_ref[...])                                             # (NCH, P)

    # --- merge epilogue -------------------------------------------------------
    r = r_ref[...]                                                  # (NCH, Pr)
    # Exact one-hot expansion of the reduced heads to the strided full-res
    # positions (elementwise multiply + sum keeps values bit-exact; an MXU
    # matmul with the 0/1 matrix would perturb them and flip r==o ties).
    r_full = jnp.sum(r[:, :, None] * exp_ref[...][None, :, :], axis=1)  # (NCH, P)
    on_strided = pos_ref[...] > 0.5                                 # (1, P)
    gt = jnp.logical_and(r_full > y, on_strided).astype(jnp.float32)
    # broadcast each field's conf mask to all of its component channels
    # (0/1 matmul over 33 channels -> exact small integers on the MXU)
    mask = jnp.dot(selT_ref[...], gt, preferred_element_type=jnp.float32) > 0.5
    merged = r_full * scale_ref[...] + add_ref[...]   # conf*0.5 / reg*stride / logb+log(stride)
    o_ref[...] = jnp.where(mask, merged, y).astype(o_ref.dtype)


# ------------------------------ wrappers --------------------------------------

def run_net(x_cm, params):
    """x_cm: (B, CIN, P) channel-major flat-spatial input -> (B, NCH, P)."""
    B, C, P = x_cm.shape
    return pl.pallas_call(
        _net_kernel,
        out_shape=jax.ShapeDtypeStruct((B, NCH, P), jnp.float32),
        grid=(B,),
        in_specs=[
            pl.BlockSpec((None, C, P), lambda b: (b, 0, 0)),
            pl.BlockSpec((CFEAT, C), lambda b: (0, 0)),
            pl.BlockSpec((CFEAT, 1), lambda b: (0, 0)),
            pl.BlockSpec((NCH, CFEAT), lambda b: (0, 0)),
            pl.BlockSpec((NCH, 1), lambda b: (0, 0)),
        ],
        out_specs=pl.BlockSpec((None, NCH, P), lambda b: (b, 0, 0)),
        compiler_params=pltpu.CompilerParams(
            dimension_semantics=("parallel",)),
    )(x_cm, params["base_wT"], params["base_b2d"],
      params["head_wT"], params["head_b2d"])


def run_net_merge(x_cm, y_red, params, exp_m, pos_m):
    """Full-res net + fused Shell2Scale merge.

    x_cm: (B, CIN, P); y_red: (B, NCH, Pr) reduced-resolution head outputs.
    Returns the merged full-resolution heads, (B, NCH, P)."""
    B, C, P = x_cm.shape
    Pr = y_red.shape[-1]
    scale = jnp.asarray(_SCALE_NP)
    add = jnp.asarray(_ADD_NP)
    selT = jnp.asarray(_SELT_NP)
    return pl.pallas_call(
        _net_merge_kernel,
        out_shape=jax.ShapeDtypeStruct((B, NCH, P), jnp.float32),
        grid=(B,),
        in_specs=[
            pl.BlockSpec((None, C, P), lambda b: (b, 0, 0)),
            pl.BlockSpec((None, NCH, Pr), lambda b: (b, 0, 0)),
            pl.BlockSpec((CFEAT, C), lambda b: (0, 0)),
            pl.BlockSpec((CFEAT, 1), lambda b: (0, 0)),
            pl.BlockSpec((NCH, CFEAT), lambda b: (0, 0)),
            pl.BlockSpec((NCH, 1), lambda b: (0, 0)),
            pl.BlockSpec((NCH, 1), lambda b: (0, 0)),
            pl.BlockSpec((NCH, 1), lambda b: (0, 0)),
            pl.BlockSpec((NCH, NCH), lambda b: (0, 0)),
            pl.BlockSpec((Pr, P), lambda b: (0, 0)),
            pl.BlockSpec((1, P), lambda b: (0, 0)),
        ],
        out_specs=pl.BlockSpec((None, NCH, P), lambda b: (b, 0, 0)),
        compiler_params=pltpu.CompilerParams(
            dimension_semantics=("parallel",)),
    )(x_cm, y_red, params["base_wT"], params["base_b2d"],
      params["head_wT"], params["head_b2d"], scale, add, selT, exp_m, pos_m)


# ----------------------- Shell2Scale (functional) -----------------------------

def init_params(key):
    k = jax.random.split(key, 6)
    base_wT = jax.random.normal(k[0], (CFEAT, CIN), jnp.float32) * 0.2
    base_b = jax.random.normal(k[1], (CFEAT,), jnp.float32) * 0.1
    h1_wT = jax.random.normal(k[2], (NCH1, CFEAT), jnp.float32) * 0.2
    h1_b = jax.random.normal(k[3], (NCH1,), jnp.float32) * 0.1
    h2_wT = jax.random.normal(k[4], (NCH2, CFEAT), jnp.float32) * 0.2
    h2_b = jax.random.normal(k[5], (NCH2,), jnp.float32) * 0.1
    # head weights/biases for both heads are pre-concatenated and pre-transposed
    # once here (hoisted out of the forward), so the kernels' weight blocks are
    # fixed arrays that stay resident across grid steps.
    return {
        "base_wT": base_wT,
        "base_b2d": base_b.reshape(CFEAT, 1),
        "head_wT": jnp.concatenate([h1_wT, h2_wT], axis=0),
        "head_b2d": jnp.concatenate([h1_b, h2_b], axis=0).reshape(NCH, 1),
    }


def _split_heads(y_nchw):
    """(B, 33, H, W) -> the PyTorch module's [head1_components, head2_components]."""
    B, _, H, W = y_nchw.shape
    h1 = y_nchw[:, :NCH1]
    h2 = y_nchw[:, NCH1:]
    head1 = [h1[:, :K1],
             h1[:, K1:3 * K1].reshape(B, K1, 2, H, W),
             h1[:, 3 * K1:4 * K1]]
    head2 = [h2[:, :K2],
             h2[:, K2:3 * K2].reshape(B, K2, 2, H, W),
             h2[:, 3 * K2:5 * K2].reshape(B, K2, 2, H, W),
             h2[:, 5 * K2:6 * K2],
             h2[:, 6 * K2:7 * K2]]
    return [head1, head2]


def shell2scale_forward(x, params):
    B, C, H, W = x.shape
    stride = STRIDE
    # channel-major flat-spatial views of the NCHW tensors: pure reshapes, no transpose
    x_cm = x.reshape(B, C, H * W)
    x_red = x[:, :, ::stride, ::stride]     # TODO(synk): strided input gather stays in XLA
    _, _, Hr, Wr = x_red.shape
    x_red_cm = x_red.reshape(B, C, Hr * Wr)

    # reduced-resolution base net + heads (tiny)
    y_red = run_net(x_red_cm, params)                               # (B, NCH, Hr*Wr)

    # full-resolution base net + heads with the merge fused into the epilogue
    exp_np, pos_np = _merge_constants(H, W, stride)
    y = run_net_merge(x_cm, y_red, params,
                      jnp.asarray(exp_np), jnp.asarray(pos_np))     # (B, NCH, H*W)
    return _split_heads(y.reshape(B, NCH, H, W))


# ----------------------------- references -------------------------------------

def net_ref(x_cm, params):
    """Plain-JAX channel-major reference of the fused base+heads net."""
    feat = jnp.maximum(
        jnp.einsum("fc,bcp->bfp", params["base_wT"], x_cm,
                   precision=jax.lax.Precision.HIGHEST) + params["base_b2d"][None], 0.0)
    return (jnp.einsum("nf,bfp->bnp", params["head_wT"], feat,
                       precision=jax.lax.Precision.HIGHEST) + params["head_b2d"][None])


def merge_ref(o_str, r, stride):
    """Per-channel reference using the original PyTorch formulas.
    o_str, r: (B, NCH, Pr) channel-major reduced-size tensors."""
    cols = []
    for c in range(NCH):
        k = int(CONF_IDX[c])
        mask = r[:, k] > o_str[:, k]
        rc = r[:, c]
        if CH_MODE[c] == 0:
            scaled = rc * 0.5
        elif CH_MODE[c] == 2:
            scaled = jnp.log(jnp.exp(rc) * float(stride))
        else:
            scaled = rc * float(stride)
        cols.append(jnp.where(mask, scaled, o_str[:, c]))
    return jnp.stack(cols, axis=1)


# --------------------------------- main ----------------------------------------

if __name__ == "__main__":
    key = jax.random.PRNGKey(0)
    kx, kp, kr, ks = jax.random.split(key, 4)
    B, H, W = 2, 16, 16
    x = jax.random.normal(kx, (B, CIN, H, W), jnp.float32)
    params = init_params(kp)

    fwd = jax.jit(shell2scale_forward)
    out = jax.block_until_ready(fwd(x, params))

    Hr = len(range(0, H, STRIDE))
    Wr = len(range(0, W, STRIDE))
    P, Pr = H * W, Hr * Wr
    hs = slice(None, STRIDE * Hr, STRIDE)
    ws = slice(None, STRIDE * Wr, STRIDE)
    x_cm = x.reshape(B, CIN, P)
    x_red_cm = x[:, :, ::STRIDE, ::STRIDE].reshape(B, CIN, Pr)
    exp_np, pos_np = _merge_constants(H, W, STRIDE)
    exp_j, pos_j = jnp.asarray(exp_np), jnp.asarray(pos_np)

    # 1) channel-major fused base+heads kernel vs plain JAX (loose tol: MXU precision)
    y_full_k = run_net(x_cm, params)
    y_red_k = run_net(x_red_cm, params)
    assert jnp.allclose(y_full_k, net_ref(x_cm, params), atol=5e-2, rtol=5e-2), \
        "net kernel mismatch (full res)"
    assert jnp.allclose(y_red_k, net_ref(x_red_cm, params), atol=5e-2, rtol=5e-2), \
        "net kernel mismatch (reduced res)"

    # 2) fused net+merge epilogue with a synthetic (non-degenerate) reduced tensor:
    #    r is pushed >= 0.5 away from the strided original values so the conf-mask
    #    decisions are unambiguous across kernel/reference precisions.
    o_str_k = y_full_k.reshape(B, NCH, H, W)[:, :, hs, ws].reshape(B, NCH, Pr)
    sign = jnp.where(jax.random.bernoulli(ks, 0.5, o_str_k.shape), 1.0, -1.0)
    r_syn = o_str_k + sign * (0.5 + jnp.abs(jax.random.normal(kr, o_str_k.shape)))
    out_m = run_net_merge(x_cm, r_syn, params, exp_j, pos_j)
    merged_syn = merge_ref(o_str_k, r_syn, STRIDE).reshape(B, NCH, Hr, Wr)
    want_m = (y_full_k.reshape(B, NCH, H, W)
              .at[:, :, hs, ws].set(merged_syn).reshape(B, NCH, P))
    assert jnp.allclose(out_m, want_m, atol=1e-2, rtol=1e-2), "merge epilogue mismatch"

    # 3) end-to-end forward vs the reference merge applied to the kernel's own
    #    intermediates (with the synthetic 1x1 nets the real merge is a no-op;
    #    this checks the fused epilogue + output plumbing stay consistent).
    y_full4_k = y_full_k.reshape(B, NCH, H, W)
    o_str3 = y_full4_k[:, :, hs, ws].reshape(B, NCH, Pr)
    merged3 = merge_ref(o_str3, y_red_k, STRIDE).reshape(B, NCH, Hr, Wr)
    want4 = y_full4_k.at[:, :, hs, ws].set(merged3)
    want = _split_heads(want4)
    for got_h, want_h in zip(out, want):
        for g, w_ in zip(got_h, want_h):
            assert g.shape == w_.shape
            assert jnp.allclose(g, w_, atol=1e-2, rtol=1e-2), "forward mismatch"

    # shape checks match the PyTorch module's output structure
    assert out[0][0].shape == (B, K1, H, W)
    assert out[0][1].shape == (B, K1, 2, H, W)
    assert out[1][2].shape == (B, K2, 2, H, W)
    assert out[1][3].shape == (B, K2, H, W)

    print("KERNEL_OK")
</pallas_src>

<mosaic_0001>
module attributes {stable_mosaic.version = 11 : i64} {
  func.func @_net_kernel(%arg0: i32, %arg1: memref<1x4x36xf32, #tpu.memory_space<vmem>>, %arg2: memref<32x4xf32, #tpu.memory_space<vmem>>, %arg3: memref<32x1xf32, #tpu.memory_space<vmem>>, %arg4: memref<33x32xf32, #tpu.memory_space<vmem>>, %arg5: memref<33x1xf32, #tpu.memory_space<vmem>>, %arg6: memref<1x33x36xf32, #tpu.memory_space<vmem>>) attributes {dimension_semantics = [#tpu.dimension_semantics<parallel>], iteration_bounds = array<i64: 2>, scalar_prefetch = 0 : i64, scratch_operands = 0 : i64, tpu.core_type = #tpu.core_type<tc>, window_params = [{transform_indices = @transform_0, window_bounds = array<i64: 1, 4, 36>}, {pipeline_mode = #tpu.pipeline_mode<synchronous>, transform_indices = @transform_1, window_bounds = array<i64: 32, 4>}, {pipeline_mode = #tpu.pipeline_mode<synchronous>, transform_indices = @transform_2, window_bounds = array<i64: 32, 1>}, {pipeline_mode = #tpu.pipeline_mode<synchronous>, transform_indices = @transform_3, window_bounds = array<i64: 33, 32>}, {pipeline_mode = #tpu.pipeline_mode<synchronous>, transform_indices = @transform_4, window_bounds = array<i64: 33, 1>}, {transform_indices = @transform_5, window_bounds = array<i64: 1, 33, 36>}]} {
    %c0 = arith.constant 0 : index
    %c0_0 = arith.constant 0 : index
    %0 = vector.load %arg2[%c0, %c0_0] : memref<32x4xf32, #tpu.memory_space<vmem>>, vector<32x4xf32>
    %c0_1 = arith.constant 0 : index
    %c0_2 = arith.constant 0 : index
    %c0_3 = arith.constant 0 : index
    %1 = vector.load %arg1[%c0_1, %c0_2, %c0_3] : memref<1x4x36xf32, #tpu.memory_space<vmem>>, vector<1x4x36xf32>
    %2 = vector.shape_cast %1 : vector<1x4x36xf32> to vector<4x36xf32>
    %cst = arith.constant dense<0.000000e+00> : vector<32x36xf32>
    %3 = tpu.matmul %0, %2, %cst {dimension_numbers = #tpu.dot_dimension_numbers<[1], [0], [0], [1], [0, 0, 1, 1], [], []>} : vector<32x4xf32>, vector<4x36xf32>, vector<32x36xf32> -> vector<32x36xf32>
    %c0_4 = arith.constant 0 : index
    %c0_5 = arith.constant 0 : index
    %4 = vector.load %arg3[%c0_4, %c0_5] : memref<32x1xf32, #tpu.memory_space<vmem>>, vector<32x1xf32>
    %5 = vector.broadcast %4 : vector<32x1xf32> to vector<32x36xf32>
    %6 = arith.addf %3, %5 : vector<32x36xf32>
    %cst_6 = arith.constant 0.000000e+00 : f32
    %7 = vector.broadcast %cst_6 : f32 to vector<32x36xf32>
    %8 = arith.maximumf %6, %7 : vector<32x36xf32>
    %c0_7 = arith.constant 0 : index
    %c0_8 = arith.constant 0 : index
    %9 = vector.load %arg4[%c0_7, %c0_8] : memref<33x32xf32, #tpu.memory_space<vmem>>, vector<33x32xf32>
    %cst_9 = arith.constant dense<0.000000e+00> : vector<33x36xf32>
    %10 = tpu.matmul %9, %8, %cst_9 {dimension_numbers = #tpu.dot_dimension_numbers<[1], [0], [0], [1], [0, 0, 1, 1], [], []>} : vector<33x32xf32>, vector<32x36xf32>, vector<33x36xf32> -> vector<33x36xf32>
    %c0_10 = arith.constant 0 : index
    %c0_11 = arith.constant 0 : index
    %11 = vector.load %arg5[%c0_10, %c0_11] : memref<33x1xf32, #tpu.memory_space<vmem>>, vector<33x1xf32>
    %12 = vector.broadcast %11 : vector<33x1xf32> to vector<33x36xf32>
    %13 = arith.addf %10, %12 : vector<33x36xf32>
    %c0_12 = arith.constant 0 : index
    %c0_13 = arith.constant 0 : index
    %c0_14 = arith.constant 0 : index
    %14 = vector.load %arg6[%c0_12, %c0_13, %c0_14] : memref<1x33x36xf32, #tpu.memory_space<vmem>>, vector<1x33x36xf32>
    %15 = vector.shape_cast %14 : vector<1x33x36xf32> to vector<33x36xf32>
    %16 = vector.shape_cast %13 : vector<33x36xf32> to vector<1x33x36xf32>
    tpu.vector_store %arg6[%c0_12, %c0_13, %c0_14], %16 {strides = array<i32>} : memref<1x33x36xf32, #tpu.memory_space<vmem>>, vector<1x33x36xf32>,
    return
  }
  func.func @transform_0(%arg0: i32) -> (i32, i32, i32) {
    %c0_i32 = arith.constant 0 : i32
    %c0_i32_0 = arith.constant 0 : i32
    %c0_i32_1 = arith.constant 0 : i32
    return %arg0, %c0_i32, %c0_i32_0 : i32, i32, i32
  }
  func.func @transform_1(%arg0: i32) -> (i32, i32) {
    %c0_i32 = arith.constant 0 : i32
    %c0_i32_0 = arith.constant 0 : i32
    %c0_i32_1 = arith.constant 0 : i32
    return %c0_i32, %c0_i32_0 : i32, i32
  }
  func.func @transform_2(%arg0: i32) -> (i32, i32) {
    %c0_i32 = arith.constant 0 : i32
    %c0_i32_0 = arith.constant 0 : i32
    %c0_i32_1 = arith.constant 0 : i32
    return %c0_i32, %c0_i32_0 : i32, i32
  }
  func.func @transform_3(%arg0: i32) -> (i32, i32) {
    %c0_i32 = arith.constant 0 : i32
    %c0_i32_0 = arith.constant 0 : i32
    %c0_i32_1 = arith.constant 0 : i32
    return %c0_i32, %c0_i32_0 : i32, i32
  }
  func.func @transform_4(%arg0: i32) -> (i32, i32) {
    %c0_i32 = arith.constant 0 : i32
    %c0_i32_0 = arith.constant 0 : i32
    %c0_i32_1 = arith.constant 0 : i32
    return %c0_i32, %c0_i32_0 : i32, i32
  }
  func.func @transform_5(%arg0: i32) -> (i32, i32, i32) {
    %c0_i32 = arith.constant 0 : i32
    %c0_i32_0 = arith.constant 0 : i32
    %c0_i32_1 = arith.constant 0 : i32
    return %arg0, %c0_i32, %c0_i32_0 : i32, i32, i32
  }
}

module attributes {stable_mosaic.version = 11 : i64} {
  func.func @_net_merge_kernel(%arg0: i32, %arg1: memref<1x4x256xf32, #tpu.memory_space<vmem>>, %arg2: memref<1x33x36xf32, #tpu.memory_space<vmem>>, %arg3: memref<32x4xf32, #tpu.memory_space<vmem>>, %arg4: memref<32x1xf32, #tpu.memory_space<vmem>>, %arg5: memref<33x32xf32, #tpu.memory_space<vmem>>, %arg6: memref<33x1xf32, #tpu.memory_space<vmem>>, %arg7: memref<33x1xf32, #tpu.memory_space<vmem>>, %arg8: memref<33x1xf32, #tpu.memory_space<vmem>>, %arg9: memref<33x33xf32, #tpu.memory_space<vmem>>, %arg10: memref<36x256xf32, #tpu.memory_space<vmem>>, %arg11: memref<1x256xf32, #tpu.memory_space<vmem>>, %arg12: memref<1x33x256xf32, #tpu.memory_space<vmem>>) attributes {dimension_semantics = [#tpu.dimension_semantics<parallel>], iteration_bounds = array<i64: 2>, scalar_prefetch = 0 : i64, scratch_operands = 0 : i64, tpu.core_type = #tpu.core_type<tc>, window_params = [{transform_indices = @transform_0, window_bounds = array<i64: 1, 4, 256>}, {transform_indices = @transform_1, window_bounds = array<i64: 1, 33, 36>}, {pipeline_mode = #tpu.pipeline_mode<synchronous>, transform_indices = @transform_2, window_bounds = array<i64: 32, 4>}, {pipeline_mode = #tpu.pipeline_mode<synchronous>, transform_indices = @transform_3, window_bounds = array<i64: 32, 1>}, {pipeline_mode = #tpu.pipeline_mode<synchronous>, transform_indices = @transform_4, window_bounds = array<i64: 33, 32>}, {pipeline_mode = #tpu.pipeline_mode<synchronous>, transform_indices = @transform_5, window_bounds = array<i64: 33, 1>}, {pipeline_mode = #tpu.pipeline_mode<synchronous>, transform_indices = @transform_6, window_bounds = array<i64: 33, 1>}, {pipeline_mode = #tpu.pipeline_mode<synchronous>, transform_indices = @transform_7, window_bounds = array<i64: 33, 1>}, {pipeline_mode = #tpu.pipeline_mode<synchronous>, transform_indices = @transform_8, window_bounds = array<i64: 33, 33>}, {pipeline_mode = #tpu.pipeline_mode<synchronous>, transform_indices = @transform_9, window_bounds = array<i64: 36, 256>}, {pipeline_mode = #tpu.pipeline_mode<synchronous>, transform_indices = @transform_10, window_bounds = array<i64: 1, 256>}, {transform_indices = @transform_11, window_bounds = array<i64: 1, 33, 256>}]} {
    %c0 = arith.constant 0 : index
    %c0_0 = arith.constant 0 : index
    %0 = vector.load %arg3[%c0, %c0_0] : memref<32x4xf32, #tpu.memory_space<vmem>>, vector<32x4xf32>
    %c0_1 = arith.constant 0 : index
    %c0_2 = arith.constant 0 : index
    %c0_3 = arith.constant 0 : index
    %1 = vector.load %arg1[%c0_1, %c0_2, %c0_3] : memref<1x4x256xf32, #tpu.memory_space<vmem>>, vector<1x4x256xf32>
    %2 = vector.shape_cast %1 : vector<1x4x256xf32> to vector<4x256xf32>
    %cst = arith.constant dense<0.000000e+00> : vector<32x256xf32>
    %3 = tpu.matmul %0, %2, %cst {dimension_numbers = #tpu.dot_dimension_numbers<[1], [0], [0], [1], [0, 0, 1, 1], [], []>} : vector<32x4xf32>, vector<4x256xf32>, vector<32x256xf32> -> vector<32x256xf32>
    %c0_4 = arith.constant 0 : index
    %c0_5 = arith.constant 0 : index
    %4 = vector.load %arg4[%c0_4, %c0_5] : memref<32x1xf32, #tpu.memory_space<vmem>>, vector<32x1xf32>
    %5 = vector.broadcast %4 : vector<32x1xf32> to vector<32x256xf32>
    %6 = arith.addf %3, %5 : vector<32x256xf32>
    %cst_6 = arith.constant 0.000000e+00 : f32
    %7 = vector.broadcast %cst_6 : f32 to vector<32x256xf32>
    %8 = arith.maximumf %6, %7 : vector<32x256xf32>
    %c0_7 = arith.constant 0 : index
    %c0_8 = arith.constant 0 : index
    %9 = vector.load %arg5[%c0_7, %c0_8] : memref<33x32xf32, #tpu.memory_space<vmem>>, vector<33x32xf32>
    %cst_9 = arith.constant dense<0.000000e+00> : vector<33x256xf32>
    %10 = tpu.matmul %9, %8, %cst_9 {dimension_numbers = #tpu.dot_dimension_numbers<[1], [0], [0], [1], [0, 0, 1, 1], [], []>} : vector<33x32xf32>, vector<32x256xf32>, vector<33x256xf32> -> vector<33x256xf32>
    %c0_10 = arith.constant 0 : index
    %c0_11 = arith.constant 0 : index
    %11 = vector.load %arg6[%c0_10, %c0_11] : memref<33x1xf32, #tpu.memory_space<vmem>>, vector<33x1xf32>
    %12 = vector.broadcast %11 : vector<33x1xf32> to vector<33x256xf32>
    %13 = arith.addf %10, %12 : vector<33x256xf32>
    %c0_12 = arith.constant 0 : index
    %c0_13 = arith.constant 0 : index
    %c0_14 = arith.constant 0 : index
    %14 = vector.load %arg2[%c0_12, %c0_13, %c0_14] : memref<1x33x36xf32, #tpu.memory_space<vmem>>, vector<1x33x36xf32>
    %15 = vector.shape_cast %14 : vector<1x33x36xf32> to vector<33x36xf32>
    %16 = vector.shape_cast %15 : vector<33x36xf32> to vector<33x36x1xf32>
    %c0_15 = arith.constant 0 : index
    %c0_16 = arith.constant 0 : index
    %17 = vector.load %arg10[%c0_15, %c0_16] : memref<36x256xf32, #tpu.memory_space<vmem>>, vector<36x256xf32>
    %18 = vector.shape_cast %17 : vector<36x256xf32> to vector<1x36x256xf32>
    %19 = vector.broadcast %16 : vector<33x36x1xf32> to vector<33x36x256xf32>
    %20 = vector.broadcast %18 : vector<1x36x256xf32> to vector<33x36x256xf32>
    %21 = arith.mulf %19, %20 : vector<33x36x256xf32>
    %cst_17 = arith.constant dense<0.000000e+00> : vector<33x256xf32>
    %22 = vector.multi_reduction <add>, %21, %cst_17 [1] : vector<33x36x256xf32> to vector<33x256xf32>
    %c0_18 = arith.constant 0 : index
    %c0_19 = arith.constant 0 : index
    %23 = vector.load %arg11[%c0_18, %c0_19] : memref<1x256xf32, #tpu.memory_space<vmem>>, vector<1x256xf32>
    %cst_20 = arith.constant 5.000000e-01 : f32
    %24 = vector.broadcast %cst_20 : f32 to vector<1x256xf32>
    %25 = arith.cmpf ogt, %23, %24 : vector<1x256xf32>
    %26 = arith.cmpf ogt, %22, %13 : vector<33x256xf32>
    %27 = vector.broadcast %25 : vector<1x256xi1> to vector<33x256xi1>
    %28 = arith.andi %26, %27 : vector<33x256xi1>
    %29 = arith.extui %28 : vector<33x256xi1> to vector<33x256xi32>
    %30 = arith.sitofp %29 : vector<33x256xi32> to vector<33x256xf32>
    %c0_21 = arith.constant 0 : index
    %c0_22 = arith.constant 0 : index
    %31 = vector.load %arg9[%c0_21, %c0_22] : memref<33x33xf32, #tpu.memory_space<vmem>>, vector<33x33xf32>
    %cst_23 = arith.constant dense<0.000000e+00> : vector<33x256xf32>
    %32 = tpu.matmul %31, %30, %cst_23 {dimension_numbers = #tpu.dot_dimension_numbers<[1], [0], [0], [1], [0, 0, 1, 1], [], []>} : vector<33x33xf32>, vector<33x256xf32>, vector<33x256xf32> -> vector<33x256xf32>
    %cst_24 = arith.constant 5.000000e-01 : f32
    %33 = vector.broadcast %cst_24 : f32 to vector<33x256xf32>
    %34 = arith.cmpf ogt, %32, %33 : vector<33x256xf32>
    %c0_25 = arith.constant 0 : index
    %c0_26 = arith.constant 0 : index
    %35 = vector.load %arg7[%c0_25, %c0_26] : memref<33x1xf32, #tpu.memory_space<vmem>>, vector<33x1xf32>
    %36 = vector.broadcast %35 : vector<33x1xf32> to vector<33x256xf32>
    %37 = arith.mulf %22, %36 : vector<33x256xf32>
    %c0_27 = arith.constant 0 : index
    %c0_28 = arith.constant 0 : index
    %38 = vector.load %arg8[%c0_27, %c0_28] : memref<33x1xf32, #tpu.memory_space<vmem>>, vector<33x1xf32>
    %39 = vector.broadcast %38 : vector<33x1xf32> to vector<33x256xf32>
    %40 = arith.addf %37, %39 : vector<33x256xf32>
    %41 = arith.select %34, %40, %13 : vector<33x256xi1>, vector<33x256xf32>
    %c0_29 = arith.constant 0 : index
    %c0_30 = arith.constant 0 : index
    %c0_31 = arith.constant 0 : index
    %42 = vector.load %arg12[%c0_29, %c0_30, %c0_31] : memref<1x33x256xf32, #tpu.memory_space<vmem>>, vector<1x33x256xf32>
    %43 = vector.shape_cast %42 : vector<1x33x256xf32> to vector<33x256xf32>
    %44 = vector.shape_cast %41 : vector<33x256xf32> to vector<1x33x256xf32>
    tpu.vector_store %arg12[%c0_29, %c0_30, %c0_31], %44 {strides = array<i32>} : memref<1x33x256xf32, #tpu.memory_space<vmem>>, vector<1x33x256xf32>,
    return
  }
  func.func @transform_0(%arg0: i32) -> (i32, i32, i32) {
    %c0_i32 = arith.constant 0 : i32
    %c0_i32_0 = arith.constant 0 : i32
    %c0_i32_1 = arith.constant 0 : i32
    return %arg0, %c0_i32, %c0_i32_0 : i32, i32, i32
  }
  func.func @transform_1(%arg0: i32) -> (i32, i32, i32) {
    %c0_i32 = arith.constant 0 : i32
    %c0_i32_0 = arith.constant 0 : i32
    %c0_i32_1 = arith.constant 0 : i32
    return %arg0, %c0_i32, %c0_i32_0 : i32, i32, i32
  }
  func.func @transform_2(%arg0: i32) -> (i32, i32) {
    %c0_i32 = arith.constant 0 : i32
    %c0_i32_0 = arith.constant 0 : i32
    %c0_i32_1 = arith.constant 0 : i32
    return %c0_i32, %c0_i32_0 : i32, i32
  }
  func.func @transform_3(%arg0: i32) -> (i32, i32) {
    %c0_i32 = arith.constant 0 : i32
    %c0_i32_0 = arith.constant 0 : i32
    %c0_i32_1 = arith.constant 0 : i32
    return %c0_i32, %c0_i32_0 : i32, i32
  }
  func.func @transform_4(%arg0: i32) -> (i32, i32) {
    %c0_i32 = arith.constant 0 : i32
    %c0_i32_0 = arith.constant 0 : i32
    %c0_i32_1 = arith.constant 0 : i32
    return %c0_i32, %c0_i32_0 : i32, i32
  }
  func.func @transform_5(%arg0: i32) -> (i32, i32) {
    %c0_i32 = arith.constant 0 : i32
    %c0_i32_0 = arith.constant 0 : i32
    %c0_i32_1 = arith.constant 0 : i32
    return %c0_i32, %c0_i32_0 : i32, i32
  }
  func.func @transform_6(%arg0: i32) -> (i32, i32) {
    %c0_i32 = arith.constant 0 : i32
    %c0_i32_0 = arith.constant 0 : i32
    %c0_i32_1 = arith.constant 0 : i32
    return %c0_i32, %c0_i32_0 : i32, i32
  }
  func.func @transform_7(%arg0: i32) -> (i32, i32) {
    %c0_i32 = arith.constant 0 : i32
    %c0_i32_0 = arith.constant 0 : i32
    %c0_i32_1 = arith.constant 0 : i32
    return %c0_i32, %c0_i32_0 : i32, i32
  }
  func.func @transform_8(%arg0: i32) -> (i32, i32) {
    %c0_i32 = arith.constant 0 : i32
    %c0_i32_0 = arith.constant 0 : i32
    %c0_i32_1 = arith.constant 0 : i32
    return %c0_i32, %c0_i32_0 : i32, i32
  }
  func.func @transform_9(%arg0: i32) -> (i32, i32) {
    %c0_i32 = arith.constant 0 : i32
    %c0_i32_0 = arith.constant 0 : i32
    %c0_i32_1 = arith.constant 0 : i32
    return %c0_i32, %c0_i32_0 : i32, i32
  }
  func.func @transform_10(%arg0: i32) -> (i32, i32) {
    %c0_i32 = arith.constant 0 : i32
    %c0_i32_0 = arith.constant 0 : i32
    %c0_i32_1 = arith.constant 0 : i32
    return %c0_i32, %c0_i32_0 : i32, i32
  }
  func.func @transform_11(%arg0: i32) -> (i32, i32, i32) {
    %c0_i32 = arith.constant 0 : i32
    %c0_i32_0 = arith.constant 0 : i32
    %c0_i32_1 = arith.constant 0 : i32
    return %arg0, %c0_i32, %c0_i32_0 : i32, i32, i32
  }
}

</mosaic_0001>

<llo_original>
// kernel: shell2scale_forward.2
$region0: #{shell2scale_forward.2}
  #allocation0 [shape = 'u32[]', space=smem, size = 0x4, offset = 0x4, fixed_abs, tag = 'smem constant byte address 0x4 - core index']
  #allocation1 [shape = 'u32[144,128]{1,0:T(1,128)}', space=vmem, size = 0x12000, scoped, tag = 'internal scratch']
  %s0 = inlined_call_operand.vmem [shape: f32[2,4,36], index: 0, kind: input, shape index: {}]
  %s1 = inlined_call_operand.vmem [shape: f32[32,4], index: 1, kind: input, shape index: {}]
  %s2 = inlined_call_operand.vmem [shape: f32[32,1], index: 2, kind: input, shape index: {}]
  %s3 = inlined_call_operand.vmem [shape: f32[33,32], index: 3, kind: input, shape index: {}]
  %s4 = inlined_call_operand.vmem [shape: f32[33,1], index: 4, kind: input, shape index: {}]
  %s5 = inlined_call_operand.vmem [shape: f32[2,33,36], index: 5, kind: output, shape index: {}]
  %s6 = sld [smem:[#allocation0]]
  $region53: #{shell2scale_forward.2} parent=0
    _
  %s8 = ssub.s32 1, %s6
  %s9 = scalar_select 0, %s8, %s6
  loop: start=0, step=1, limit=4
  $region2: #{shell2scale_forward.2} parent=0 // loop_pre_header
    _
  $region3: #{shell2scale_forward.2} parent=0 // loop_header
    %s11 = sphi 0, %s15
    %p12 = scmp.ge.s32.totalorder %s11, 4
    %s21 = sphi 0, %s23
    %s24 = sphi 0, %s21
    %s25 = sphi 0, %s24
    %s41 = sphi 0, %s25
    %s45 = sphi 0, %s45
    %s47 = sphi 0, %s45
    %s48 = sphi 0, %s47
    %s62 = sphi 0, %s48
    %s66 = sphi 0, %s66
    %s68 = sphi 0, %s66
    %s69 = sphi 0, %s68
    %s83 = sphi 0, %s69
    %s87 = sphi 0, %s87
    %s89 = sphi 0, %s87
    %s90 = sphi 0, %s89
    %s104 = sphi 0, %s90
    %s108 = sphi 0, %s108
    %s110 = sphi 0, %s108
    %s111 = sphi 0, %s110
    %s125 = sphi 0, %s111
    %s131 = sphi 0, %s133
    %s134 = sphi 0, %s131
    %s135 = sphi 0, %s134
    %s151 = sphi 0, %s135
  $region4: #{shell2scale_forward.2} parent=0 // loop_header_branch
    %14 = sbr.rel (%p12) target = $region8
  $region5: #{shell2scale_forward.2} parent=0 // loop_body
    %s16 = ssub.s32 %s11, 1
    %s17 = ssub.s32 %s11, 2
    %s18 = sadd.s32 %s11, 1
    %s19 = ssub.s32 %s11, %s18
    %p20 = scmp.eq.s32.totalorder %s19, 0
    %s22 = sadd.s32 %s21, 1
    %s23 = scalar_select %p20, %s21, %s22
    %p26 = pneg %p20
    %p27 = scmp.eq.s32.totalorder %s11, 1
    %p28 = por %p26, %p27
    %p29 = scmp.ne.s32.totalorder %s21, %s24
    %p30 = scmp.eq.s32.totalorder %s11, 0
    %p31 = por %p29, %p30
    %p32 = scmp.ne.s32.totalorder %s21, %s24
    %p33 = scmp.eq.s32.totalorder %s16, 1
    %p34 = por %p32, %p33
    %p35 = scmp.ne.s32.totalorder %s24, %s25
    %p36 = scmp.eq.s32.totalorder %s16, 0
    %p37 = por %p35, %p36
    %p38 = scmp.ne.s32.totalorder %s24, %s25
    %p39 = scmp.eq.s32.totalorder %s17, 1
    %p40 = por %p38, %p39
    %p42 = scmp.ne.s32.totalorder %s25, %s41
    %p43 = scmp.eq.s32.totalorder %s17, 0
    %p44 = por %p42, %p43
    %s46 = sadd.s32 %s45, 1
    %p49 = scmp.eq.s32.totalorder %s11, 1
    %p50 = scmp.ne.s32.totalorder %s45, %s47
    %p51 = scmp.eq.s32.totalorder %s11, 0
    %p52 = por %p50, %p51
    %p53 = scmp.ne.s32.totalorder %s45, %s47
    %p54 = scmp.eq.s32.totalorder %s16, 1
    %p55 = por %p53, %p54
    %p56 = scmp.ne.s32.totalorder %s47, %s48
    %p57 = scmp.eq.s32.totalorder %s16, 0
    %p58 = por %p56, %p57
    %p59 = scmp.ne.s32.totalorder %s47, %s48
    %p60 = scmp.eq.s32.totalorder %s17, 1
    %p61 = por %p59, %p60
    %p63 = scmp.ne.s32.totalorder %s48, %s62
    %p64 = scmp.eq.s32.totalorder %s17, 0
    %p65 = por %p63, %p64
    %s67 = sadd.s32 %s66, 1
    %p70 = scmp.eq.s32.totalorder %s11, 1
    %p71 = scmp.ne.s32.totalorder %s66, %s68
    %p72 = scmp.eq.s32.totalorder %s11, 0
    %p73 = por %p71, %p72
    %p74 = scmp.ne.s32.totalorder %s66, %s68
    %p75 = scmp.eq.s32.totalorder %s16, 1
    %p76 = por %p74, %p75
    %p77 = scmp.ne.s32.totalorder %s68, %s69
    %p78 = scmp.eq.s32.totalorder %s16, 0
    %p79 = por %p77, %p78
    %p80 = scmp.ne.s32.totalorder %s68, %s69
    %p81 = scmp.eq.s32.totalorder %s17, 1
    %p82 = por %p80, %p81
    %p84 = scmp.ne.s32.totalorder %s69, %s83
    %p85 = scmp.eq.s32.totalorder %s17, 0
    %p86 = por %p84, %p85
    %s88 = sadd.s32 %s87, 1
    %p91 = scmp.eq.s32.totalorder %s11, 1
    %p92 = scmp.ne.s32.totalorder %s87, %s89
    %p93 = scmp.eq.s32.totalorder %s11, 0
    %p94 = por %p92, %p93
    %p95 = scmp.ne.s32.totalorder %s87, %s89
    %p96 = scmp.eq.s32.totalorder %s16, 1
    %p97 = por %p95, %p96
    %p98 = scmp.ne.s32.totalorder %s89, %s90
    %p99 = scmp.eq.s32.totalorder %s16, 0
    %p100 = por %p98, %p99
    %p101 = scmp.ne.s32.totalorder %s89, %s90
    %p102 = scmp.eq.s32.totalorder %s17, 1
    %p103 = por %p101, %p102
    %p105 = scmp.ne.s32.totalorder %s90, %s104
    %p106 = scmp.eq.s32.totalorder %s17, 0
    %p107 = por %p105, %p106
    %s109 = sadd.s32 %s108, 1
    %p112 = scmp.eq.s32.totalorder %s11, 1
    %p113 = scmp.ne.s32.totalorder %s108, %s110
    %p114 = scmp.eq.s32.totalorder %s11, 0
    %p115 = por %p113, %p114
    %p116 = scmp.ne.s32.totalorder %s108, %s110
    %p117 = scmp.eq.s32.totalorder %s16, 1
    %p118 = por %p116, %p117
    %p119 = scmp.ne.s32.totalorder %s110, %s111
    %p120 = scmp.eq.s32.totalorder %s16, 0
    %p121 = por %p119, %p120
    %p122 = scmp.ne.s32.totalorder %s110, %s111
    %p123 = scmp.eq.s32.totalorder %s17, 1
    %p124 = por %p122, %p123
    %p126 = scmp.ne.s32.totalorder %s111, %s125
    %p127 = scmp.eq.s32.totalorder %s17, 0
    %p128 = por %p126, %p127
    %s129 = ssub.s32 %s11, %s18
    %p130 = scmp.eq.s32.totalorder %s129, 0
    %s132 = sadd.s32 %s131, 1
    %s133 = scalar_select %p130, %s131, %s132
    %p136 = pneg %p130
    %p137 = scmp.eq.s32.totalorder %s11, 1
    %p138 = por %p136, %p137
    %p139 = scmp.ne.s32.totalorder %s131, %s134
    %p140 = scmp.eq.s32.totalorder %s11, 0
    %p141 = por %p139, %p140
    %p142 = scmp.ne.s32.totalorder %s131, %s134
    %p143 = scmp.eq.s32.totalorder %s16, 1
    %p144 = por %p142, %p143
    %p145 = scmp.ne.s32.totalorder %s134, %s135
    %p146 = scmp.eq.s32.totalorder %s16, 0
    %p147 = por %p145, %p146
    %p148 = scmp.ne.s32.totalorder %s134, %s135
    %p149 = scmp.eq.s32.totalorder %s17, 1
    %p150 = por %p148, %p149
    %p152 = scmp.ne.s32.totalorder %s135, %s151
    %p153 = scmp.eq.s32.totalorder %s17, 0
    %p154 = por %p152, %p153
    %p155 = scmp.le.s32.totalorder 1, %s11
    %p156 = scmp.lt.s32.totalorder %s11, 3
    %p157 = pnand %p155, %p156
    %p158 = pneg %p157
    // Predicated region
    $region9: #{shell2scale_forward.2} parent=5 // pred_check
      _
    $region10: #{shell2scale_forward.2} parent=5 // pred_check_branch
      %160 = sbr.rel (%p157) target = $region12
    $region11: #{shell2scale_forward.2} parent=5 // pred_region
      %s161 = ssub.s32 %s11, 1
      // Predicated region
      $region13: #{shell2scale_forward.2} parent=11 // pred_check
        %p162 = pneg %p58
      $region14: #{shell2scale_forward.2} parent=11 // pred_check_branch
        %164 = sbr.rel (%p162) target = $region16
      $region15: #{shell2scale_forward.2} parent=11 // pred_region
        _
      $region16: #{shell2scale_forward.2} parent=11 // pred_fallthru
        _
      // Predicated region
      $region17: #{shell2scale_forward.2} parent=11 // pred_check
        %p165 = pneg %p79
      $region18: #{shell2scale_forward.2} parent=11 // pred_check_branch
        %167 = sbr.rel (%p165) target = $region20
      $region19: #{shell2scale_forward.2} parent=11 // pred_region
        _
      $region20: #{shell2scale_forward.2} parent=11 // pred_fallthru
        _
      // Predicated region
      $region21: #{shell2scale_forward.2} parent=11 // pred_check
        %p168 = pneg %p100
      $region22: #{shell2scale_forward.2} parent=11 // pred_check_branch
        %170 = sbr.rel (%p168) target = $region24
      $region23: #{shell2scale_forward.2} parent=11 // pred_region
        _
      $region24: #{shell2scale_forward.2} parent=11 // pred_fallthru
        _
      // Predicated region
      $region25: #{shell2scale_forward.2} parent=11 // pred_check
        %p171 = pneg %p121
      $region26: #{shell2scale_forward.2} parent=11 // pred_check_branch
        %173 = sbr.rel (%p171) target = $region28
      $region27: #{shell2scale_forward.2} parent=11 // pred_region
        _
      $region28: #{shell2scale_forward.2} parent=11 // pred_fallthru
        _
    $region12: #{shell2scale_forward.2} parent=5 // pred_fallthru
      _
    %p174 = scmp.lt.s32.totalorder %s11, 2
    // Predicated region
    $region29: #{shell2scale_forward.2} parent=5 // pred_check
      %p175 = pneg %p174
    $region30: #{shell2scale_forward.2} parent=5 // pred_check_branch
      %177 = sbr.rel (%p175) target = $region32
    $region31: #{shell2scale_forward.2} parent=5 // pred_region
      // Predicated region
      $region33: #{shell2scale_forward.2} parent=31 // pred_check
        %p178 = pneg %p31
      $region34: #{shell2scale_forward.2} parent=31 // pred_check_branch
        %180 = sbr.rel (%p178) target = $region36
      $region35: #{shell2scale_forward.2} parent=31 // pred_region
        %p181 = scmp.lt.s32.totalorder %s11, 1
        %s182 = scalar_select %p181, %s11, 1
        %s183 = smul.addr %s182, 4
        %s184 = scalar_lea.vmem %s0, %s183
      $region36: #{shell2scale_forward.2} parent=31 // pred_fallthru
        _
    $region32: #{shell2scale_forward.2} parent=5 // pred_fallthru
      _
    %p185 = scmp.le.s32.totalorder 1, %s11
    %p186 = scmp.lt.s32.totalorder %s11, 3
    %p187 = pnand %p185, %p186
    %p188 = pneg %p187
    // Predicated region
    $region37: #{shell2scale_forward.2} parent=5 // pred_check
      _
    $region38: #{shell2scale_forward.2} parent=5 // pred_check_branch
      %190 = sbr.rel (%p187) target = $region40
    $region39: #{shell2scale_forward.2} parent=5 // pred_region
      %s191 = ssub.s32 %s11, 1
      %p192 = scmp.lt.s32.totalorder %s16, 1
      %s193 = scalar_select %p192, %s16, 1
      %s194 = smul.addr %s193, 4
      %s195 = scalar_lea.vmem %s0, %s194
      %p196 = pneg %p37
      %p197 = pneg %p34
      %p198 = pneg %p58
      %p199 = pneg %p55
      %p200 = pneg %p79
      %p201 = pneg %p76
      %p202 = pneg %p100
      %p203 = pneg %p97
      %p204 = pneg %p121
      %p205 = pneg %p118
      %p206 = pneg %p147
      %p207 = pneg %p144
      %p208 = scmp.lt.s32.totalorder %s16, 1
      %s209 = scalar_select %p208, %s16, 1
      %s210 = smul.addr %s209, 5
      %s211 = smul.addr %s210, 8
      %s212 = scalar_lea.vmem %s5, %s211
      %p213 = scmp.lt.s32.totalorder %s16, 1
      %s214 = scalar_select %p213, %s16, 1
      %s215 = smul.addr %s214, 4
      %s216 = scalar_lea.vmem %s0, %s215
      %p217 = scmp.lt.s32.totalorder %s16, 1
      %s218 = scalar_select %p217, %s16, 1
      %s219 = smul.addr %s218, 5
      %s220 = smul.addr %s219, 8
      %s221 = scalar_lea.vmem %s5, %s220
      %v222 = vld [vmem:[%s1] sm:$0xff]
      %v223 = vld [vmem:[%s1 + $0x8] sm:$0xff]
      %v224 = vld [vmem:[%s1 + $0x10] sm:$0xff]
      %v225 = vld [vmem:[%s1 + $0x18] sm:$0xff]
      %v226 = vld [vmem:[%s216] sm:$0xf]
      %v227 = vld [vmem:[%s2] sm:$0xff]
      %v228 = vld [vmem:[%s2 + $0x8] sm:$0xff]
      %v229 = vld [vmem:[%s2 + $0x10] sm:$0xff]
      %v230 = vld [vmem:[%s2 + $0x18] sm:$0xff]
      %232 = vset.pattern.permute.xlu0 0
      %233 = vperm.xlu0 %232, %v227
      %v234 = vpop.permute.xlu0 %233
      %237 = vset.pattern.permute.xlu0 0
      %238 = vperm.xlu0 %237, %v228
      %v239 = vpop.permute.xlu0 %238
      %242 = vset.pattern.permute.xlu0 0
      %243 = vperm.xlu0 %242, %v229
      %v244 = vpop.permute.xlu0 %243
      %247 = vset.pattern.permute.xlu0 0
      %248 = vperm.xlu0 %247, %v230
      %v249 = vpop.permute.xlu0 %248
      %vm251 = vcmask 31744
      %v253 = vsel %vm251, %v222, 0
      %v256 = vsel %vm251, %v223, 0
      %v259 = vsel %vm251, %v224, 0
      %v262 = vsel %vm251, %v225, 0
      %vm264 = vcmask 1043456
      %v266 = vsel %vm264, %v226, 0
      %268 = vmatprep.subr.mxu0 0.0
      %269 = vmatpush1.msra.mxu0 %v266
      %270 = vmatprep.subr.mxu0 0.0
      %271 = vmatpush1.msra.mxu0 0.0
      %272 = vmatprep.subr.mxu0 0.0
      %273 = vmatpush1.msra.mxu0 0.0
      %274 = vmatprep.subr.mxu0 0.0
      %275 = vmatpush1.msra.mxu0 0.0
      %276 = vmatprep.subr.mxu0 0.0
      %277 = vmatpush1.msra.mxu0 0.0
      %278 = vmatprep.subr.mxu0 0.0
      %279 = vmatpush1.msra.mxu0 0.0
      %280 = vmatprep.subr.mxu0 0.0
      %281 = vmatpush1.msra.mxu0 0.0
      %282 = vmatprep.subr.mxu0 0.0
      %283 = vmatpush1.msra.mxu0 0.0
      %284 = vmatprep.subr.mxu0 0.0
      %285 = vmatpush1.msra.mxu0 0.0
      %286 = vmatprep.subr.mxu0 0.0
      %287 = vmatpush1.msra.mxu0 0.0
      %288 = vmatprep.subr.mxu0 0.0
      %289 = vmatpush1.msra.mxu0 0.0
      %290 = vmatprep.subr.mxu0 0.0
      %291 = vmatpush1.msra.mxu0 0.0
      %292 = vmatprep.subr.mxu0 0.0
      %293 = vmatpush1.msra.mxu0 0.0
      %294 = vmatprep.subr.mxu0 0.0
      %295 = vmatpush1.msra.mxu0 0.0
      %296 = vmatprep.subr.mxu0 0.0
      %297 = vmatpush1.msra.mxu0 0.0
      %298 = vmatprep.subr.mxu0 0.0
      %299 = vmatpush1.msra.mxu0 0.0
      %300 = vmatprep.subr.mxu0 0.0
      %301 = vmatpush1.msra.mxu0 0.0
      %302 = vmatprep.subr.mxu0 0.0
      %303 = vmatpush1.msra.mxu0 0.0
      %304 = vmatprep.subr.mxu0 0.0
      %305 = vmatpush1.msra.mxu0 0.0
      %306 = vmatprep.subr.mxu0 0.0
      %307 = vmatpush1.msra.mxu0 0.0
      %308 = vmatprep.subr.mxu0 0.0
      %309 = vmatpush1.msra.mxu0 0.0
      %310 = vmatprep.subr.mxu0 0.0
      %311 = vmatpush1.msra.mxu0 0.0
      %312 = vmatprep.subr.mxu0 0.0
      %313 = vmatpush1.msra.mxu0 0.0
      %314 = vmatprep.subr.mxu0 0.0
      %315 = vmatpush1.msra.mxu0 0.0
      %316 = vmatprep.subr.mxu0 0.0
      %317 = vmatpush1.msra.mxu0 0.0
      %318 = vmatprep.subr.mxu0 0.0
      %319 = vmatpush1.msra.mxu0 0.0
      %320 = vmatprep.subr.mxu0 0.0
      %321 = vmatpush1.msra.mxu0 0.0
      %322 = vmatprep.subr.mxu0 0.0
      %323 = vmatpush1.msra.mxu0 0.0
      %324 = vmatprep.subr.mxu0 0.0
      %325 = vmatpush1.msra.mxu0 0.0
      %326 = vmatprep.subr.mxu0 0.0
      %327 = vmatpush1.msra.mxu0 0.0
      %328 = vmatprep.subr.mxu0 0.0
      %329 = vmatpush1.msra.mxu0 0.0
      %330 = vmatprep.subr.mxu0 0.0
      %331 = vmatpush1.msra.mxu0 0.0
      %332 = vmatprep.mubr.f32.mxu0 0.0
      %333 = vmatmul.mubr.f32.gmra.mrb[0].mxu0 %v253
      %v334 = vpop.f32.mrb[0].mxu0
      %v335 = vadd.f32 %v234, %v334
      %v336 = vpop.f32.mrb[0].mxu0
      %337 = vmatprep.mubr.f32.mxu0 0.0
      %338 = vmatmul.mubr.f32.gmra.mrb[0].mxu0 %v256
      %v339 = vpop.f32.mrb[0].mxu0
      %v340 = vadd.f32 %v239, %v339
      %v341 = vpop.f32.mrb[0].mxu0
      %342 = vmatprep.mubr.f32.mxu0 0.0
      %343 = vmatmul.mubr.f32.gmra.mrb[0].mxu0 %v259
      %v344 = vpop.f32.mrb[0].mxu0
      %v345 = vadd.f32 %v244, %v344
      %v346 = vpop.f32.mrb[0].mxu0
      %347 = vmatprep.mubr.f32.mxu0 0.0
      %348 = vmatmul.mubr.f32.gmra.mrb[0].mxu0 %v262
      %v349 = vpop.f32.mrb[0].mxu0
      %v350 = vadd.f32 %v249, %v349
      %v351 = vpop.f32.mrb[0].mxu0
      %352 = vdwg.mxu0
      %v353 = vmax.f32 %v335, 0.0
      %v354 = vmax.f32 %v340, 0.0
      %v355 = vmax.f32 %v345, 0.0
      %v356 = vmax.f32 %v350, 0.0
      %v357 = vld [vmem:[%s3] sm:$0xff]
      %v358 = vld [vmem:[%s3 + $0x8] sm:$0xff]
      %v359 = vld [vmem:[%s3 + $0x10] sm:$0xff]
      %v360 = vld [vmem:[%s3 + $0x18] sm:$0xff]
      %v361 = vld [vmem:[%s3 + $0x20] sm:$0x1]
      %v362 = vld [vmem:[%s4] sm:$0xff]
      %v363 = vld [vmem:[%s4 + $0x8] sm:$0xff]
      %v364 = vld [vmem:[%s4 + $0x10] sm:$0xff]
      %v365 = vld [vmem:[%s4 + $0x18] sm:$0xff]
      %v366 = vld [vmem:[%s4 + $0x20] sm:$0x1]
      %368 = vset.pattern.permute.xlu0 0
      %369 = vperm.xlu0 %368, %v362
      %v370 = vpop.permute.xlu0 %369
      %373 = vset.pattern.permute.xlu0 0
      %374 = vperm.xlu0 %373, %v363
      %v375 = vpop.permute.xlu0 %374
      %378 = vset.pattern.permute.xlu0 0
      %379 = vperm.xlu0 %378, %v364
      %v380 = vpop.permute.xlu0 %379
      %383 = vset.pattern.permute.xlu0 0
      %384 = vperm.xlu0 %383, %v365
      %v385 = vpop.permute.xlu0 %384
      %388 = vset.pattern.permute.xlu0 0
      %389 = vperm.xlu0 %388, %v366
      %v390 = vpop.permute.xlu0 %389
      %vm392 = vcmask 261120
      %v394 = vsel %vm392, %v357, 0
      %v397 = vsel %vm392, %v358, 0
      %v400 = vsel %vm392, %v359, 0
      %v403 = vsel %vm392, %v360, 0
      %v406 = vsel %vm392, %v361, 0
      %408 = vmatprep.subr.mxu0 0.0
      %409 = vmatpush1.msra.mxu0 %v353
      %410 = vmatprep.subr.mxu0 0.0
      %411 = vmatpush1.msra.mxu0 %v354
      %412 = vmatprep.subr.mxu0 0.0
      %413 = vmatpush1.msra.mxu0 %v355
      %414 = vmatprep.subr.mxu0 0.0
      %415 = vmatpush1.msra.mxu0 %v356
      %416 = vmatprep.subr.mxu0 0.0
      %417 = vmatpush1.msra.mxu0 0.0
      %418 = vmatprep.subr.mxu0 0.0
      %419 = vmatpush1.msra.mxu0 0.0
      %420 = vmatprep.subr.mxu0 0.0
      %421 = vmatpush1.msra.mxu0 0.0
      %422 = vmatprep.subr.mxu0 0.0
      %423 = vmatpush1.msra.mxu0 0.0
      %424 = vmatprep.subr.mxu0 0.0
      %425 = vmatpush1.msra.mxu0 0.0
      %426 = vmatprep.subr.mxu0 0.0
      %427 = vmatpush1.msra.mxu0 0.0
      %428 = vmatprep.subr.mxu0 0.0
      %429 = vmatpush1.msra.mxu0 0.0
      %430 = vmatprep.subr.mxu0 0.0
      %431 = vmatpush1.msra.mxu0 0.0
      %432 = vmatprep.subr.mxu0 0.0
      %433 = vmatpush1.msra.mxu0 0.0
      %434 = vmatprep.subr.mxu0 0.0
      %435 = vmatpush1.msra.mxu0 0.0
      %436 = vmatprep.subr.mxu0 0.0
      %437 = vmatpush1.msra.mxu0 0.0
      %438 = vmatprep.subr.mxu0 0.0
      %439 = vmatpush1.msra.mxu0 0.0
      %440 = vmatprep.subr.mxu0 0.0
      %441 = vmatpush1.msra.mxu0 0.0
      %442 = vmatprep.subr.mxu0 0.0
      %443 = vmatpush1.msra.mxu0 0.0
      %444 = vmatprep.subr.mxu0 0.0
      %445 = vmatpush1.msra.mxu0 0.0
      %446 = vmatprep.subr.mxu0 0.0
      %447 = vmatpush1.msra.mxu0 0.0
      %448 = vmatprep.subr.mxu0 0.0
      %449 = vmatpush1.msra.mxu0 0.0
      %450 = vmatprep.subr.mxu0 0.0
      %451 = vmatpush1.msra.mxu0 0.0
      %452 = vmatprep.subr.mxu0 0.0
      %453 = vmatpush1.msra.mxu0 0.0
      %454 = vmatprep.subr.mxu0 0.0
      %455 = vmatpush1.msra.mxu0 0.0
      %456 = vmatprep.subr.mxu0 0.0
      %457 = vmatpush1.msra.mxu0 0.0
      %458 = vmatprep.subr.mxu0 0.0
      %459 = vmatpush1.msra.mxu0 0.0
      %460 = vmatprep.subr.mxu0 0.0
      %461 = vmatpush1.msra.mxu0 0.0
      %462 = vmatprep.subr.mxu0 0.0
      %463 = vmatpush1.msra.mxu0 0.0
      %464 = vmatprep.subr.mxu0 0.0
      %465 = vmatpush1.msra.mxu0 0.0
      %466 = vmatprep.subr.mxu0 0.0
      %467 = vmatpush1.msra.mxu0 0.0
      %468 = vmatprep.subr.mxu0 0.0
      %469 = vmatpush1.msra.mxu0 0.0
      %470 = vmatprep.subr.mxu0 0.0
      %471 = vmatpush1.msra.mxu0 0.0
      %472 = vmatprep.mubr.f32.mxu0 0.0
      %473 = vmatmul.mubr.f32.gmra.mrb[0].mxu0 %v394
      %v474 = vpop.f32.mrb[0].mxu0
      %v475 = vadd.f32 %v370, %v474
      %v476 = vpop.f32.mrb[0].mxu0
      %477 = vmatprep.mubr.f32.mxu0 0.0
      %478 = vmatmul.mubr.f32.gmra.mrb[0].mxu0 %v397
      %v479 = vpop.f32.mrb[0].mxu0
      %v480 = vadd.f32 %v375, %v479
      %v481 = vpop.f32.mrb[0].mxu0
      %482 = vmatprep.mubr.f32.mxu0 0.0
      %483 = vmatmul.mubr.f32.gmra.mrb[0].mxu0 %v400
      %v484 = vpop.f32.mrb[0].mxu0
      %v485 = vadd.f32 %v380, %v484
      %v486 = vpop.f32.mrb[0].mxu0
      %487 = vmatprep.mubr.f32.mxu0 0.0
      %488 = vmatmul.mubr.f32.gmra.mrb[0].mxu0 %v403
      %v489 = vpop.f32.mrb[0].mxu0
      %v490 = vadd.f32 %v385, %v489
      %v491 = vpop.f32.mrb[0].mxu0
      %492 = vmatprep.mubr.f32.mxu0 0.0
      %493 = vmatmul.mubr.f32.gmra.mrb[0].mxu0 %v406
      %v494 = vpop.f32.mrb[0].mxu0
      %v495 = vadd.f32 %v390, %v494
      %v496 = vpop.f32.mrb[0].mxu0
      %497 = vdwg.mxu0
      %vm498 = vcmask 293888
      %499 = vst.msk [vmem:[%s221] sm:$0xff] %vm498, %v475
      %500 = vst.msk [vmem:[%s221 + $0x8] sm:$0xff] %vm498, %v480
      %501 = vst.msk [vmem:[%s221 + $0x10] sm:$0xff] %vm498, %v485
      %502 = vst.msk [vmem:[%s221 + $0x18] sm:$0xff] %vm498, %v490
      %vm503 = vcmask 286720
      %504 = vst.msk [vmem:[%s221 + $0x20] sm:$0x1] %vm503, %v495
      %p505 = scmp.lt.s32.totalorder %s16, 1
      %s506 = scalar_select %p505, %s16, 1
      %s507 = smul.addr %s506, 5
      %s508 = smul.addr %s507, 8
      %s509 = scalar_lea.vmem %s5, %s508
      // Predicated region
      $region41: #{shell2scale_forward.2} parent=39 // pred_check
        %p510 = pneg %p144
      $region42: #{shell2scale_forward.2} parent=39 // pred_check_branch
        %512 = sbr.rel (%p510) target = $region44
      $region43: #{shell2scale_forward.2} parent=39 // pred_region
        _
      $region44: #{shell2scale_forward.2} parent=39 // pred_fallthru
        _
    $region40: #{shell2scale_forward.2} parent=5 // pred_fallthru
      _
    %p513 = scmp.le.s32.totalorder 2, %s11
    // Predicated region
    $region45: #{shell2scale_forward.2} parent=5 // pred_check
      %p514 = pneg %p513
    $region46: #{shell2scale_forward.2} parent=5 // pred_check_branch
      %516 = sbr.rel (%p514) target = $region48
    $region47: #{shell2scale_forward.2} parent=5 // pred_region
      %s517 = ssub.s32 %s11, 2
      // Predicated region
      $region49: #{shell2scale_forward.2} parent=47 // pred_check
        %p518 = pneg %p150
      $region50: #{shell2scale_forward.2} parent=47 // pred_check_branch
        %520 = sbr.rel (%p518) target = $region52
      $region51: #{shell2scale_forward.2} parent=47 // pred_region
        %p521 = scmp.lt.s32.totalorder %s17, 1
        %s522 = scalar_select %p521, %s17, 1
        %s523 = smul.addr %s522, 5
        %s524 = smul.addr %s523, 8
        %s525 = scalar_lea.vmem %s5, %s524
      $region52: #{shell2scale_forward.2} parent=47 // pred_fallthru
        _
    $region48: #{shell2scale_forward.2} parent=5 // pred_fallthru
      _
  $region6: #{shell2scale_forward.2} parent=0 // loop_footer
    %s15 = sadd.s32 1, %s11
  $region7: #{shell2scale_forward.2} parent=0 // loop_footer_branch
    %10 = sbr.rel target = $region3
  $region8: #{shell2scale_forward.2} parent=0 // loop_exit
    _

// kernel: shell2scale_forward.3
$region0: #{shell2scale_forward.3}
  #allocation0 [shape = 'u32[]', space=smem, size = 0x4, offset = 0x4, fixed_abs, tag = 'smem constant byte address 0x4 - core index']
  #allocation1 [shape = 'u32[144,128]{1,0:T(1,128)}', space=vmem, size = 0x12000, scoped, tag = 'internal scratch']
  %s0 = inlined_call_operand.vmem [shape: f32[2,4,256], index: 0, kind: input, shape index: {}]
  %s1 = inlined_call_operand.vmem [shape: f32[2,33,36], index: 1, kind: input, shape index: {}]
  %s2 = inlined_call_operand.vmem [shape: f32[32,4], index: 2, kind: input, shape index: {}]
  %s3 = inlined_call_operand.vmem [shape: f32[32,1], index: 3, kind: input, shape index: {}]
  %s4 = inlined_call_operand.vmem [shape: f32[33,32], index: 4, kind: input, shape index: {}]
  %s5 = inlined_call_operand.vmem [shape: f32[33,1], index: 5, kind: input, shape index: {}]
  %s6 = inlined_call_operand.vmem [shape: f32[33,1], index: 6, kind: input, shape index: {}]
  %s7 = inlined_call_operand.vmem [shape: f32[33,1], index: 7, kind: input, shape index: {}]
  %s8 = inlined_call_operand.vmem [shape: f32[33,33], index: 8, kind: input, shape index: {}]
  %s9 = inlined_call_operand.vmem [shape: f32[36,256], index: 9, kind: input, shape index: {}]
  %s10 = inlined_call_operand.vmem [shape: f32[1,256], index: 10, kind: input, shape index: {}]
  %s11 = inlined_call_operand.vmem [shape: f32[2,33,256], index: 11, kind: output, shape index: {}]
  %s12 = sld [smem:[#allocation0]]
  $region77: #{shell2scale_forward.3} parent=0
    _
  %s14 = ssub.s32 1, %s12
  %s15 = scalar_select 0, %s14, %s12
  loop: start=0, step=1, limit=4
  $region2: #{shell2scale_forward.3} parent=0 // loop_pre_header
    _
  $region3: #{shell2scale_forward.3} parent=0 // loop_header
    %s17 = sphi 0, %s21
    %p18 = scmp.ge.s32.totalorder %s17, 4
    %s27 = sphi 0, %s29
    %s30 = sphi 0, %s27
    %s31 = sphi 0, %s30
    %s47 = sphi 0, %s31
    %s53 = sphi 0, %s55
    %s56 = sphi 0, %s53
    %s57 = sphi 0, %s56
    %s73 = sphi 0, %s57
    %s77 = sphi 0, %s77
    %s79 = sphi 0, %s77
    %s80 = sphi 0, %s79
    %s94 = sphi 0, %s80
    %s98 = sphi 0, %s98
    %s100 = sphi 0, %s98
    %s101 = sphi 0, %s100
    %s115 = sphi 0, %s101
    %s119 = sphi 0, %s119
    %s121 = sphi 0, %s119
    %s122 = sphi 0, %s121
    %s136 = sphi 0, %s122
    %s140 = sphi 0, %s140
    %s142 = sphi 0, %s140
    %s143 = sphi 0, %s142
    %s157 = sphi 0, %s143
    %s161 = sphi 0, %s161
    %s163 = sphi 0, %s161
    %s164 = sphi 0, %s163
    %s178 = sphi 0, %s164
    %s182 = sphi 0, %s182
    %s184 = sphi 0, %s182
    %s185 = sphi 0, %s184
    %s199 = sphi 0, %s185
    %s203 = sphi 0, %s203
    %s205 = sphi 0, %s203
    %s206 = sphi 0, %s205
    %s220 = sphi 0, %s206
    %s224 = sphi 0, %s224
    %s226 = sphi 0, %s224
    %s227 = sphi 0, %s226
    %s241 = sphi 0, %s227
    %s245 = sphi 0, %s245
    %s247 = sphi 0, %s245
    %s248 = sphi 0, %s247
    %s262 = sphi 0, %s248
    %s268 = sphi 0, %s270
    %s271 = sphi 0, %s268
    %s272 = sphi 0, %s271
    %s288 = sphi 0, %s272
  $region4: #{shell2scale_forward.3} parent=0 // loop_header_branch
    %20 = sbr.rel (%p18) target = $region8
  $region5: #{shell2scale_forward.3} parent=0 // loop_body
    %s22 = ssub.s32 %s17, 1
    %s23 = ssub.s32 %s17, 2
    %s24 = sadd.s32 %s17, 1
    %s25 = ssub.s32 %s17, %s24
    %p26 = scmp.eq.s32.totalorder %s25, 0
    %s28 = sadd.s32 %s27, 1
    %s29 = scalar_select %p26, %s27, %s28
    %p32 = pneg %p26
    %p33 = scmp.eq.s32.totalorder %s17, 1
    %p34 = por %p32, %p33
    %p35 = scmp.ne.s32.totalorder %s27, %s30
    %p36 = scmp.eq.s32.totalorder %s17, 0
    %p37 = por %p35, %p36
    %p38 = scmp.ne.s32.totalorder %s27, %s30
    %p39 = scmp.eq.s32.totalorder %s22, 1
    %p40 = por %p38, %p39
    %p41 = scmp.ne.s32.totalorder %s30, %s31
    %p42 = scmp.eq.s32.totalorder %s22, 0
    %p43 = por %p41, %p42
    %p44 = scmp.ne.s32.totalorder %s30, %s31
    %p45 = scmp.eq.s32.totalorder %s23, 1
    %p46 = por %p44, %p45
    %p48 = scmp.ne.s32.totalorder %s31, %s47
    %p49 = scmp.eq.s32.totalorder %s23, 0
    %p50 = por %p48, %p49
    %s51 = ssub.s32 %s17, %s24
    %p52 = scmp.eq.s32.totalorder %s51, 0
    %s54 = sadd.s32 %s53, 1
    %s55 = scalar_select %p52, %s53, %s54
    %p58 = pneg %p52
    %p59 = scmp.eq.s32.totalorder %s17, 1
    %p60 = por %p58, %p59
    %p61 = scmp.ne.s32.totalorder %s53, %s56
    %p62 = scmp.eq.s32.totalorder %s17, 0
    %p63 = por %p61, %p62
    %p64 = scmp.ne.s32.totalorder %s53, %s56
    %p65 = scmp.eq.s32.totalorder %s22, 1
    %p66 = por %p64, %p65
    %p67 = scmp.ne.s32.totalorder %s56, %s57
    %p68 = scmp.eq.s32.totalorder %s22, 0
    %p69 = por %p67, %p68
    %p70 = scmp.ne.s32.totalorder %s56, %s57
    %p71 = scmp.eq.s32.totalorder %s23, 1
    %p72 = por %p70, %p71
    %p74 = scmp.ne.s32.totalorder %s57, %s73
    %p75 = scmp.eq.s32.totalorder %s23, 0
    %p76 = por %p74, %p75
    %s78 = sadd.s32 %s77, 1
    %p81 = scmp.eq.s32.totalorder %s17, 1
    %p82 = scmp.ne.s32.totalorder %s77, %s79
    %p83 = scmp.eq.s32.totalorder %s17, 0
    %p84 = por %p82, %p83
    %p85 = scmp.ne.s32.totalorder %s77, %s79
    %p86 = scmp.eq.s32.totalorder %s22, 1
    %p87 = por %p85, %p86
    %p88 = scmp.ne.s32.totalorder %s79, %s80
    %p89 = scmp.eq.s32.totalorder %s22, 0
    %p90 = por %p88, %p89
    %p91 = scmp.ne.s32.totalorder %s79, %s80
    %p92 = scmp.eq.s32.totalorder %s23, 1
    %p93 = por %p91, %p92
    %p95 = scmp.ne.s32.totalorder %s80, %s94
    %p96 = scmp.eq.s32.totalorder %s23, 0
    %p97 = por %p95, %p96
    %s99 = sadd.s32 %s98, 1
    %p102 = scmp.eq.s32.totalorder %s17, 1
    %p103 = scmp.ne.s32.totalorder %s98, %s100
    %p104 = scmp.eq.s32.totalorder %s17, 0
    %p105 = por %p103, %p104
    %p106 = scmp.ne.s32.totalorder %s98, %s100
    %p107 = scmp.eq.s32.totalorder %s22, 1
    %p108 = por %p106, %p107
    %p109 = scmp.ne.s32.totalorder %s100, %s101
    %p110 = scmp.eq.s32.totalorder %s22, 0
    %p111 = por %p109, %p110
    %p112 = scmp.ne.s32.totalorder %s100, %s101
    %p113 = scmp.eq.s32.totalorder %s23, 1
    %p114 = por %p112, %p113
    %p116 = scmp.ne.s32.totalorder %s101, %s115
    %p117 = scmp.eq.s32.totalorder %s23, 0
    %p118 = por %p116, %p117
    %s120 = sadd.s32 %s119, 1
    %p123 = scmp.eq.s32.totalorder %s17, 1
    %p124 = scmp.ne.s32.totalorder %s119, %s121
    %p125 = scmp.eq.s32.totalorder %s17, 0
    %p126 = por %p124, %p125
    %p127 = scmp.ne.s32.totalorder %s119, %s121
    %p128 = scmp.eq.s32.totalorder %s22, 1
    %p129 = por %p127, %p128
    %p130 = scmp.ne.s32.totalorder %s121, %s122
    %p131 = scmp.eq.s32.totalorder %s22, 0
    %p132 = por %p130, %p131
    %p133 = scmp.ne.s32.totalorder %s121, %s122
    %p134 = scmp.eq.s32.totalorder %s23, 1
    %p135 = por %p133, %p134
    %p137 = scmp.ne.s32.totalorder %s122, %s136
    %p138 = scmp.eq.s32.totalorder %s23, 0
    %p139 = por %p137, %p138
    %s141 = sadd.s32 %s140, 1
    %p144 = scmp.eq.s32.totalorder %s17, 1
    %p145 = scmp.ne.s32.totalorder %s140, %s142
    %p146 = scmp.eq.s32.totalorder %s17, 0
    %p147 = por %p145, %p146
    %p148 = scmp.ne.s32.totalorder %s140, %s142
    %p149 = scmp.eq.s32.totalorder %s22, 1
    %p150 = por %p148, %p149
    %p151 = scmp.ne.s32.totalorder %s142, %s143
    %p152 = scmp.eq.s32.totalorder %s22, 0
    %p153 = por %p151, %p152
    %p154 = scmp.ne.s32.totalorder %s142, %s143
    %p155 = scmp.eq.s32.totalorder %s23, 1
    %p156 = por %p154, %p155
    %p158 = scmp.ne.s32.totalorder %s143, %s157
    %p159 = scmp.eq.s32.totalorder %s23, 0
    %p160 = por %p158, %p159
    %s162 = sadd.s32 %s161, 1
    %p165 = scmp.eq.s32.totalorder %s17, 1
    %p166 = scmp.ne.s32.totalorder %s161, %s163
    %p167 = scmp.eq.s32.totalorder %s17, 0
    %p168 = por %p166, %p167
    %p169 = scmp.ne.s32.totalorder %s161, %s163
    %p170 = scmp.eq.s32.totalorder %s22, 1
    %p171 = por %p169, %p170
    %p172 = scmp.ne.s32.totalorder %s163, %s164
    %p173 = scmp.eq.s32.totalorder %s22, 0
    %p174 = por %p172, %p173
    %p175 = scmp.ne.s32.totalorder %s163, %s164
    %p176 = scmp.eq.s32.totalorder %s23, 1
    %p177 = por %p175, %p176
    %p179 = scmp.ne.s32.totalorder %s164, %s178
    %p180 = scmp.eq.s32.totalorder %s23, 0
    %p181 = por %p179, %p180
    %s183 = sadd.s32 %s182, 1
    %p186 = scmp.eq.s32.totalorder %s17, 1
    %p187 = scmp.ne.s32.totalorder %s182, %s184
    %p188 = scmp.eq.s32.totalorder %s17, 0
    %p189 = por %p187, %p188
    %p190 = scmp.ne.s32.totalorder %s182, %s184
    %p191 = scmp.eq.s32.totalorder %s22, 1
    %p192 = por %p190, %p191
    %p193 = scmp.ne.s32.totalorder %s184, %s185
    %p194 = scmp.eq.s32.totalorder %s22, 0
    %p195 = por %p193, %p194
    %p196 = scmp.ne.s32.totalorder %s184, %s185
    %p197 = scmp.eq.s32.totalorder %s23, 1
    %p198 = por %p196, %p197
    %p200 = scmp.ne.s32.totalorder %s185, %s199
    %p201 = scmp.eq.s32.totalorder %s23, 0
    %p202 = por %p200, %p201
    %s204 = sadd.s32 %s203, 1
    %p207 = scmp.eq.s32.totalorder %s17, 1
    %p208 = scmp.ne.s32.totalorder %s203, %s205
    %p209 = scmp.eq.s32.totalorder %s17, 0
    %p210 = por %p208, %p209
    %p211 = scmp.ne.s32.totalorder %s203, %s205
    %p212 = scmp.eq.s32.totalorder %s22, 1
    %p213 = por %p211, %p212
    %p214 = scmp.ne.s32.totalorder %s205, %s206
    %p215 = scmp.eq.s32.totalorder %s22, 0
    %p216 = por %p214, %p215
    %p217 = scmp.ne.s32.totalorder %s205, %s206
    %p218 = scmp.eq.s32.totalorder %s23, 1
    %p219 = por %p217, %p218
    %p221 = scmp.ne.s32.totalorder %s206, %s220
    %p222 = scmp.eq.s32.totalorder %s23, 0
    %p223 = por %p221, %p222
    %s225 = sadd.s32 %s224, 1
    %p228 = scmp.eq.s32.totalorder %s17, 1
    %p229 = scmp.ne.s32.totalorder %s224, %s226
    %p230 = scmp.eq.s32.totalorder %s17, 0
    %p231 = por %p229, %p230
    %p232 = scmp.ne.s32.totalorder %s224, %s226
    %p233 = scmp.eq.s32.totalorder %s22, 1
    %p234 = por %p232, %p233
    %p235 = scmp.ne.s32.totalorder %s226, %s227
    %p236 = scmp.eq.s32.totalorder %s22, 0
    %p237 = por %p235, %p236
    %p238 = scmp.ne.s32.totalorder %s226, %s227
    %p239 = scmp.eq.s32.totalorder %s23, 1
    %p240 = por %p238, %p239
    %p242 = scmp.ne.s32.totalorder %s227, %s241
    %p243 = scmp.eq.s32.totalorder %s23, 0
    %p244 = por %p242, %p243
    %s246 = sadd.s32 %s245, 1
    %p249 = scmp.eq.s32.totalorder %s17, 1
    %p250 = scmp.ne.s32.totalorder %s245, %s247
    %p251 = scmp.eq.s32.totalorder %s17, 0
    %p252 = por %p250, %p251
    %p253 = scmp.ne.s32.totalorder %s245, %s247
    %p254 = scmp.eq.s32.totalorder %s22, 1
    %p255 = por %p253, %p254
    %p256 = scmp.ne.s32.totalorder %s247, %s248
    %p257 = scmp.eq.s32.totalorder %s22, 0
    %p258 = por %p256, %p257
    %p259 = scmp.ne.s32.totalorder %s247, %s248
    %p260 = scmp.eq.s32.totalorder %s23, 1
    %p261 = por %p259, %p260
    %p263 = scmp.ne.s32.totalorder %s248, %s262
    %p264 = scmp.eq.s32.totalorder %s23, 0
    %p265 = por %p263, %p264
    %s266 = ssub.s32 %s17, %s24
    %p267 = scmp.eq.s32.totalorder %s266, 0
    %s269 = sadd.s32 %s268, 1
    %s270 = scalar_select %p267, %s268, %s269
    %p273 = pneg %p267
    %p274 = scmp.eq.s32.totalorder %s17, 1
    %p275 = por %p273, %p274
    %p276 = scmp.ne.s32.totalorder %s268, %s271
    %p277 = scmp.eq.s32.totalorder %s17, 0
    %p278 = por %p276, %p277
    %p279 = scmp.ne.s32.totalorder %s268, %s271
    %p280 = scmp.eq.s32.totalorder %s22, 1
    %p281 = por %p279, %p280
    %p282 = scmp.ne.s32.totalorder %s271, %s272
    %p283 = scmp.eq.s32.totalorder %s22, 0
    %p284 = por %p282, %p283
    %p285 = scmp.ne.s32.totalorder %s271, %s272
    %p286 = scmp.eq.s32.totalorder %s23, 1
    %p287 = por %p285, %p286
    %p289 = scmp.ne.s32.totalorder %s272, %s288
    %p290 = scmp.eq.s32.totalorder %s23, 0
    %p291 = por %p289, %p290
    %p292 = scmp.le.s32.totalorder 1, %s17
    %p293 = scmp.lt.s32.totalorder %s17, 3
    %p294 = pnand %p292, %p293
    %p295 = pneg %p294
    // Predicated region
    $region9: #{shell2scale_forward.3} parent=5 // pred_check
      _
    $region10: #{shell2scale_forward.3} parent=5 // pred_check_branch
      %297 = sbr.rel (%p294) target = $region12
    $region11: #{shell2scale_forward.3} parent=5 // pred_region
      %s298 = ssub.s32 %s17, 1
      // Predicated region
      $region13: #{shell2scale_forward.3} parent=11 // pred_check
        %p299 = pneg %p90
      $region14: #{shell2scale_forward.3} parent=11 // pred_check_branch
        %301 = sbr.rel (%p299) target = $region16
      $region15: #{shell2scale_forward.3} parent=11 // pred_region
        _
      $region16: #{shell2scale_forward.3} parent=11 // pred_fallthru
        _
      // Predicated region
      $region17: #{shell2scale_forward.3} parent=11 // pred_check
        %p302 = pneg %p111
      $region18: #{shell2scale_forward.3} parent=11 // pred_check_branch
        %304 = sbr.rel (%p302) target = $region20
      $region19: #{shell2scale_forward.3} parent=11 // pred_region
        _
      $region20: #{shell2scale_forward.3} parent=11 // pred_fallthru
        _
      // Predicated region
      $region21: #{shell2scale_forward.3} parent=11 // pred_check
        %p305 = pneg %p132
      $region22: #{shell2scale_forward.3} parent=11 // pred_check_branch
        %307 = sbr.rel (%p305) target = $region24
      $region23: #{shell2scale_forward.3} parent=11 // pred_region
        _
      $region24: #{shell2scale_forward.3} parent=11 // pred_fallthru
        _
      // Predicated region
      $region25: #{shell2scale_forward.3} parent=11 // pred_check
        %p308 = pneg %p153
      $region26: #{shell2scale_forward.3} parent=11 // pred_check_branch
        %310 = sbr.rel (%p308) target = $region28
      $region27: #{shell2scale_forward.3} parent=11 // pred_region
        _
      $region28: #{shell2scale_forward.3} parent=11 // pred_fallthru
        _
      // Predicated region
      $region29: #{shell2scale_forward.3} parent=11 // pred_check
        %p311 = pneg %p174
      $region30: #{shell2scale_forward.3} parent=11 // pred_check_branch
        %313 = sbr.rel (%p311) target = $region32
      $region31: #{shell2scale_forward.3} parent=11 // pred_region
        _
      $region32: #{shell2scale_forward.3} parent=11 // pred_fallthru
        _
      // Predicated region
      $region33: #{shell2scale_forward.3} parent=11 // pred_check
        %p314 = pneg %p195
      $region34: #{shell2scale_forward.3} parent=11 // pred_check_branch
        %316 = sbr.rel (%p314) target = $region36
      $region35: #{shell2scale_forward.3} parent=11 // pred_region
        _
      $region36: #{shell2scale_forward.3} parent=11 // pred_fallthru
        _
      // Predicated region
      $region37: #{shell2scale_forward.3} parent=11 // pred_check
        %p317 = pneg %p216
      $region38: #{shell2scale_forward.3} parent=11 // pred_check_branch
        %319 = sbr.rel (%p317) target = $region40
      $region39: #{shell2scale_forward.3} parent=11 // pred_region
        _
      $region40: #{shell2scale_forward.3} parent=11 // pred_fallthru
        _
      // Predicated region
      $region41: #{shell2scale_forward.3} parent=11 // pred_check
        %p320 = pneg %p237
      $region42: #{shell2scale_forward.3} parent=11 // pred_check_branch
        %322 = sbr.rel (%p320) target = $region44
      $region43: #{shell2scale_forward.3} parent=11 // pred_region
        _
      $region44: #{shell2scale_forward.3} parent=11 // pred_fallthru
        _
      // Predicated region
      $region45: #{shell2scale_forward.3} parent=11 // pred_check
        %p323 = pneg %p258
      $region46: #{shell2scale_forward.3} parent=11 // pred_check_branch
        %325 = sbr.rel (%p323) target = $region48
      $region47: #{shell2scale_forward.3} parent=11 // pred_region
        _
      $region48: #{shell2scale_forward.3} parent=11 // pred_fallthru
        _
    $region12: #{shell2scale_forward.3} parent=5 // pred_fallthru
      _
    %p326 = scmp.lt.s32.totalorder %s17, 2
    // Predicated region
    $region49: #{shell2scale_forward.3} parent=5 // pred_check
      %p327 = pneg %p326
    $region50: #{shell2scale_forward.3} parent=5 // pred_check_branch
      %329 = sbr.rel (%p327) target = $region52
    $region51: #{shell2scale_forward.3} parent=5 // pred_region
      // Predicated region
      $region53: #{shell2scale_forward.3} parent=51 // pred_check
        %p330 = pneg %p37
      $region54: #{shell2scale_forward.3} parent=51 // pred_check_branch
        %332 = sbr.rel (%p330) target = $region56
      $region55: #{shell2scale_forward.3} parent=51 // pred_region
        %p333 = scmp.lt.s32.totalorder %s17, 1
        %s334 = scalar_select %p333, %s17, 1
        %s335 = smul.addr %s334, 2
        %s336 = smul.addr %s335, 4
        %s337 = scalar_lea.vmem %s0, %s336
      $region56: #{shell2scale_forward.3} parent=51 // pred_fallthru
        _
      // Predicated region
      $region57: #{shell2scale_forward.3} parent=51 // pred_check
        %p338 = pneg %p63
      $region58: #{shell2scale_forward.3} parent=51 // pred_check_branch
        %340 = sbr.rel (%p338) target = $region60
      $region59: #{shell2scale_forward.3} parent=51 // pred_region
        %p341 = scmp.lt.s32.totalorder %s17, 1
        %s342 = scalar_select %p341, %s17, 1
        %s343 = smul.addr %s342, 5
        %s344 = smul.addr %s343, 8
        %s345 = scalar_lea.vmem %s1, %s344
      $region60: #{shell2scale_forward.3} parent=51 // pred_fallthru
        _
    $region52: #{shell2scale_forward.3} parent=5 // pred_fallthru
      _
    %p346 = scmp.le.s32.totalorder 1, %s17
    %p347 = scmp.lt.s32.totalorder %s17, 3
    %p348 = pnand %p346, %p347
    %p349 = pneg %p348
    // Predicated region
    $region61: #{shell2scale_forward.3} parent=5 // pred_check
      _
    $region62: #{shell2scale_forward.3} parent=5 // pred_check_branch
      %351 = sbr.rel (%p348) target = $region64
    $region63: #{shell2scale_forward.3} parent=5 // pred_region
      %s352 = ssub.s32 %s17, 1
      %p353 = scmp.lt.s32.totalorder %s22, 1
      %s354 = scalar_select %p353, %s22, 1
      %s355 = smul.addr %s354, 2
      %s356 = smul.addr %s355, 4
      %s357 = scalar_lea.vmem %s0, %s356
      %p358 = pneg %p43
      %p359 = pneg %p40
      %p360 = scmp.lt.s32.totalorder %s22, 1
      %s361 = scalar_select %p360, %s22, 1
      %s362 = smul.addr %s361, 5
      %s363 = smul.addr %s362, 8
      %s364 = scalar_lea.vmem %s1, %s363
      %p365 = pneg %p69
      %p366 = pneg %p66
      %p367 = pneg %p90
      %p368 = pneg %p87
      %p369 = pneg %p111
      %p370 = pneg %p108
      %p371 = pneg %p132
      %p372 = pneg %p129
      %p373 = pneg %p153
      %p374 = pneg %p150
      %p375 = pneg %p174
      %p376 = pneg %p171
      %p377 = pneg %p195
      %p378 = pneg %p192
      %p379 = pneg %p216
      %p380 = pneg %p213
      %p381 = pneg %p237
      %p382 = pneg %p234
      %p383 = pneg %p258
      %p384 = pneg %p255
      %p385 = pneg %p284
      %p386 = pneg %p281
      %p387 = scmp.lt.s32.totalorder %s22, 1
      %s388 = scalar_select %p387, %s22, 1
      %s389 = smul.addr %s388, 10
      %s390 = smul.addr %s389, 8
      %s391 = scalar_lea.vmem %s11, %s390
      %p392 = scmp.lt.s32.totalorder %s22, 1
      %s393 = scalar_select %p392, %s22, 1
      %s394 = smul.addr %s393, 2
      %s395 = smul.addr %s394, 4
      %s396 = scalar_lea.vmem %s0, %s395
      %p397 = scmp.lt.s32.totalorder %s22, 1
      %s398 = scalar_select %p397, %s22, 1
      %s399 = smul.addr %s398, 5
      %s400 = smul.addr %s399, 8
      %s401 = scalar_lea.vmem %s1, %s400
      %p402 = scmp.lt.s32.totalorder %s22, 1
      %s403 = scalar_select %p402, %s22, 1
      %s404 = smul.addr %s403, 10
      %s405 = smul.addr %s404, 8
      %s406 = scalar_lea.vmem %s11, %s405
      %v407 = vld [vmem:[%s2] sm:$0xff]
      %v408 = vld [vmem:[%s2 + $0x8] sm:$0xff]
      %v409 = vld [vmem:[%s2 + $0x10] sm:$0xff]
      %v410 = vld [vmem:[%s2 + $0x18] sm:$0xff]
      %v411 = vld [vmem:[%s396] sm:$0xff]
      %v412 = vld [vmem:[%s3] sm:$0xff]
      %v413 = vld [vmem:[%s3 + $0x8] sm:$0xff]
      %v414 = vld [vmem:[%s3 + $0x10] sm:$0xff]
      %v415 = vld [vmem:[%s3 + $0x18] sm:$0xff]
      %417 = vset.pattern.permute.xlu0 0
      %418 = vperm.xlu0 %417, %v412
      %v419 = vpop.permute.xlu0 %418
      %422 = vset.pattern.permute.xlu0 0
      %423 = vperm.xlu0 %422, %v413
      %v424 = vpop.permute.xlu0 %423
      %427 = vset.pattern.permute.xlu0 0
      %428 = vperm.xlu0 %427, %v414
      %v429 = vpop.permute.xlu0 %428
      %432 = vset.pattern.permute.xlu0 0
      %433 = vperm.xlu0 %432, %v415
      %v434 = vpop.permute.xlu0 %433
      %v437 = vcombine.high %v411, %v411
      %vm438 = vcmask 31744
      %v440 = vsel %vm438, %v407, 0
      %v443 = vsel %vm438, %v408, 0
      %v446 = vsel %vm438, %v409, 0
      %v449 = vsel %vm438, %v410, 0
      %vm451 = vcmask 1043456
      %v452 = vsel %vm451, %v411, 0
      %v454 = vsel %vm451, %v437, 0
      %456 = vmatprep.subr.mxu0 %v454
      %457 = vmatpush1.msra.mxu0 %v452
      %458 = vmatprep.subr.mxu0 0.0
      %459 = vmatpush1.msra.mxu0 0.0
      %460 = vmatprep.subr.mxu0 0.0
      %461 = vmatpush1.msra.mxu0 0.0
      %462 = vmatprep.subr.mxu0 0.0
      %463 = vmatpush1.msra.mxu0 0.0
      %464 = vmatprep.subr.mxu0 0.0
      %465 = vmatpush1.msra.mxu0 0.0
      %466 = vmatprep.subr.mxu0 0.0
      %467 = vmatpush1.msra.mxu0 0.0
      %468 = vmatprep.subr.mxu0 0.0
      %469 = vmatpush1.msra.mxu0 0.0
      %470 = vmatprep.subr.mxu0 0.0
      %471 = vmatpush1.msra.mxu0 0.0
      %472 = vmatprep.subr.mxu0 0.0
      %473 = vmatpush1.msra.mxu0 0.0
      %474 = vmatprep.subr.mxu0 0.0
      %475 = vmatpush1.msra.mxu0 0.0
      %476 = vmatprep.subr.mxu0 0.0
      %477 = vmatpush1.msra.mxu0 0.0
      %478 = vmatprep.subr.mxu0 0.0
      %479 = vmatpush1.msra.mxu0 0.0
      %480 = vmatprep.subr.mxu0 0.0
      %481 = vmatpush1.msra.mxu0 0.0
      %482 = vmatprep.subr.mxu0 0.0
      %483 = vmatpush1.msra.mxu0 0.0
      %484 = vmatprep.subr.mxu0 0.0
      %485 = vmatpush1.msra.mxu0 0.0
      %486 = vmatprep.subr.mxu0 0.0
      %487 = vmatpush1.msra.mxu0 0.0
      %488 = vmatprep.subr.mxu0 0.0
      %489 = vmatpush1.msra.mxu0 0.0
      %490 = vmatprep.subr.mxu0 0.0
      %491 = vmatpush1.msra.mxu0 0.0
      %492 = vmatprep.subr.mxu0 0.0
      %493 = vmatpush1.msra.mxu0 0.0
      %494 = vmatprep.subr.mxu0 0.0
      %495 = vmatpush1.msra.mxu0 0.0
      %496 = vmatprep.subr.mxu0 0.0
      %497 = vmatpush1.msra.mxu0 0.0
      %498 = vmatprep.subr.mxu0 0.0
      %499 = vmatpush1.msra.mxu0 0.0
      %500 = vmatprep.subr.mxu0 0.0
      %501 = vmatpush1.msra.mxu0 0.0
      %502 = vmatprep.subr.mxu0 0.0
      %503 = vmatpush1.msra.mxu0 0.0
      %504 = vmatprep.subr.mxu0 0.0
      %505 = vmatpush1.msra.mxu0 0.0
      %506 = vmatprep.subr.mxu0 0.0
      %507 = vmatpush1.msra.mxu0 0.0
      %508 = vmatprep.subr.mxu0 0.0
      %509 = vmatpush1.msra.mxu0 0.0
      %510 = vmatprep.subr.mxu0 0.0
      %511 = vmatpush1.msra.mxu0 0.0
      %512 = vmatprep.subr.mxu0 0.0
      %513 = vmatpush1.msra.mxu0 0.0
      %514 = vmatprep.subr.mxu0 0.0
      %515 = vmatpush1.msra.mxu0 0.0
      %516 = vmatprep.subr.mxu0 0.0
      %517 = vmatpush1.msra.mxu0 0.0
      %518 = vmatprep.subr.mxu0 0.0
      %519 = vmatpush1.msra.mxu0 0.0
      %520 = vmatprep.mubr.f32.mxu0 0.0
      %521 = vmatmul.mubr.f32.gmra.mrb[0].mxu0 %v440
      %v522 = vpop.f32.mrb[0].mxu0
      %v523 = vadd.f32 %v419, %v522
      %v524 = vpop.f32.mrb[0].mxu0
      %v525 = vadd.f32 %v419, %v524
      %526 = vmatprep.mubr.f32.mxu0 0.0
      %527 = vmatmul.mubr.f32.gmra.mrb[0].mxu0 %v443
      %v528 = vpop.f32.mrb[0].mxu0
      %v529 = vadd.f32 %v424, %v528
      %v530 = vpop.f32.mrb[0].mxu0
      %v531 = vadd.f32 %v424, %v530
      %532 = vmatprep.mubr.f32.mxu0 0.0
      %533 = vmatmul.mubr.f32.gmra.mrb[0].mxu0 %v446
      %v534 = vpop.f32.mrb[0].mxu0
      %v535 = vadd.f32 %v429, %v534
      %v536 = vpop.f32.mrb[0].mxu0
      %v537 = vadd.f32 %v429, %v536
      %538 = vmatprep.mubr.f32.mxu0 0.0
      %539 = vmatmul.mubr.f32.gmra.mrb[0].mxu0 %v449
      %v540 = vpop.f32.mrb[0].mxu0
      %v541 = vadd.f32 %v434, %v540
      %v542 = vpop.f32.mrb[0].mxu0
      %v543 = vadd.f32 %v434, %v542
      %544 = vdwg.mxu0
      %v545 = vmax.f32 %v523, 0.0
      %v546 = vmax.f32 %v525, 0.0
      %v547 = vmax.f32 %v529, 0.0
      %v548 = vmax.f32 %v531, 0.0
      %v549 = vmax.f32 %v535, 0.0
      %v550 = vmax.f32 %v537, 0.0
      %v551 = vmax.f32 %v541, 0.0
      %v552 = vmax.f32 %v543, 0.0
      %v553 = vld [vmem:[%s4] sm:$0xff]
      %v554 = vld [vmem:[%s4 + $0x8] sm:$0xff]
      %v555 = vld [vmem:[%s4 + $0x10] sm:$0xff]
      %v556 = vld [vmem:[%s4 + $0x18] sm:$0xff]
      %v557 = vld [vmem:[%s4 + $0x20] sm:$0x1]
      %v558 = vld [vmem:[%s5] sm:$0xff]
      %v559 = vld [vmem:[%s5 + $0x8] sm:$0xff]
      %v560 = vld [vmem:[%s5 + $0x10] sm:$0xff]
      %v561 = vld [vmem:[%s5 + $0x18] sm:$0xff]
      %v562 = vld [vmem:[%s5 + $0x20] sm:$0x1]
      %564 = vset.pattern.permute.xlu0 0
      %565 = vperm.xlu0 %564, %v558
      %v566 = vpop.permute.xlu0 %565
      %569 = vset.pattern.permute.xlu0 0
      %570 = vperm.xlu0 %569, %v559
      %v571 = vpop.permute.xlu0 %570
      %574 = vset.pattern.permute.xlu0 0
      %575 = vperm.xlu0 %574, %v560
      %v576 = vpop.permute.xlu0 %575
      %579 = vset.pattern.permute.xlu0 0
      %580 = vperm.xlu0 %579, %v561
      %v581 = vpop.permute.xlu0 %580
      %584 = vset.pattern.permute.xlu0 0
      %585 = vperm.xlu0 %584, %v562
      %v586 = vpop.permute.xlu0 %585
      %vm588 = vcmask 261120
      %v590 = vsel %vm588, %v553, 0
      %v593 = vsel %vm588, %v554, 0
      %v596 = vsel %vm588, %v555, 0
      %v599 = vsel %vm588, %v556, 0
      %v602 = vsel %vm588, %v557, 0
      %604 = vmatprep.subr.mxu0 %v546
      %605 = vmatpush1.msra.mxu0 %v545
      %606 = vmatprep.subr.mxu0 %v548
      %607 = vmatpush1.msra.mxu0 %v547
      %608 = vmatprep.subr.mxu0 %v550
      %609 = vmatpush1.msra.mxu0 %v549
      %610 = vmatprep.subr.mxu0 %v552
      %611 = vmatpush1.msra.mxu0 %v551
      %612 = vmatprep.subr.mxu0 0.0
      %613 = vmatpush1.msra.mxu0 0.0
      %614 = vmatprep.subr.mxu0 0.0
      %615 = vmatpush1.msra.mxu0 0.0
      %616 = vmatprep.subr.mxu0 0.0
      %617 = vmatpush1.msra.mxu0 0.0
      %618 = vmatprep.subr.mxu0 0.0
      %619 = vmatpush1.msra.mxu0 0.0
      %620 = vmatprep.subr.mxu0 0.0
      %621 = vmatpush1.msra.mxu0 0.0
      %622 = vmatprep.subr.mxu0 0.0
      %623 = vmatpush1.msra.mxu0 0.0
      %624 = vmatprep.subr.mxu0 0.0
      %625 = vmatpush1.msra.mxu0 0.0
      %626 = vmatprep.subr.mxu0 0.0
      %627 = vmatpush1.msra.mxu0 0.0
      %628 = vmatprep.subr.mxu0 0.0
      %629 = vmatpush1.msra.mxu0 0.0
      %630 = vmatprep.subr.mxu0 0.0
      %631 = vmatpush1.msra.mxu0 0.0
      %632 = vmatprep.subr.mxu0 0.0
      %633 = vmatpush1.msra.mxu0 0.0
      %634 = vmatprep.subr.mxu0 0.0
      %635 = vmatpush1.msra.mxu0 0.0
      %636 = vmatprep.subr.mxu0 0.0
      %637 = vmatpush1.msra.mxu0 0.0
      %638 = vmatprep.subr.mxu0 0.0
      %639 = vmatpush1.msra.mxu0 0.0
      %640 = vmatprep.subr.mxu0 0.0
      %641 = vmatpush1.msra.mxu0 0.0
      %642 = vmatprep.subr.mxu0 0.0
      %643 = vmatpush1.msra.mxu0 0.0
      %644 = vmatprep.subr.mxu0 0.0
      %645 = vmatpush1.msra.mxu0 0.0
      %646 = vmatprep.subr.mxu0 0.0
      %647 = vmatpush1.msra.mxu0 0.0
      %648 = vmatprep.subr.mxu0 0.0
      %649 = vmatpush1.msra.mxu0 0.0
      %650 = vmatprep.subr.mxu0 0.0
      %651 = vmatpush1.msra.mxu0 0.0
      %652 = vmatprep.subr.mxu0 0.0
      %653 = vmatpush1.msra.mxu0 0.0
      %654 = vmatprep.subr.mxu0 0.0
      %655 = vmatpush1.msra.mxu0 0.0
      %656 = vmatprep.subr.mxu0 0.0
      %657 = vmatpush1.msra.mxu0 0.0
      %658 = vmatprep.subr.mxu0 0.0
      %659 = vmatpush1.msra.mxu0 0.0
      %660 = vmatprep.subr.mxu0 0.0
      %661 = vmatpush1.msra.mxu0 0.0
      %662 = vmatprep.subr.mxu0 0.0
      %663 = vmatpush1.msra.mxu0 0.0
      %664 = vmatprep.subr.mxu0 0.0
      %665 = vmatpush1.msra.mxu0 0.0
      %666 = vmatprep.subr.mxu0 0.0
      %667 = vmatpush1.msra.mxu0 0.0
      %668 = vmatprep.mubr.f32.mxu0 0.0
      %669 = vmatmul.mubr.f32.gmra.mrb[0].mxu0 %v590
      %v670 = vpop.f32.mrb[0].mxu0
      %v671 = vadd.f32 %v566, %v670
      %v672 = vpop.f32.mrb[0].mxu0
      %v673 = vadd.f32 %v566, %v672
      %674 = vmatprep.mubr.f32.mxu0 0.0
      %675 = vmatmul.mubr.f32.gmra.mrb[0].mxu0 %v593
      %v676 = vpop.f32.mrb[0].mxu0
      %v677 = vadd.f32 %v571, %v676
      %v678 = vpop.f32.mrb[0].mxu0
      %v679 = vadd.f32 %v571, %v678
      %680 = vmatprep.mubr.f32.mxu0 0.0
      %681 = vmatmul.mubr.f32.gmra.mrb[0].mxu0 %v596
      %v682 = vpop.f32.mrb[0].mxu0
      %v683 = vadd.f32 %v576, %v682
      %v684 = vpop.f32.mrb[0].mxu0
      %v685 = vadd.f32 %v576, %v684
      %686 = vmatprep.mubr.f32.mxu0 0.0
      %687 = vmatmul.mubr.f32.gmra.mrb[0].mxu0 %v599
      %v688 = vpop.f32.mrb[0].mxu0
      %v689 = vadd.f32 %v581, %v688
      %v690 = vpop.f32.mrb[0].mxu0
      %v691 = vadd.f32 %v581, %v690
      %692 = vmatprep.mubr.f32.mxu0 0.0
      %693 = vmatmul.mubr.f32.gmra.mrb[0].mxu0 %v602
      %v694 = vpop.f32.mrb[0].mxu0
      %v695 = vadd.f32 %v586, %v694
      %v696 = vpop.f32.mrb[0].mxu0
      %v697 = vadd.f32 %v586, %v696
      %698 = vdwg.mxu0
      %v699 = vld [vmem:[%s401] sm:$0xff]
      %v700 = vld [vmem:[%s401 + $0x8] sm:$0xff]
      %v701 = vld [vmem:[%s401 + $0x10] sm:$0xff]
      %v702 = vld [vmem:[%s401 + $0x18] sm:$0xff]
      %v703 = vld [vmem:[%s401 + $0x20] sm:$0x1]
      %v704 = vlaneseq
      %v705 = vshrl.u32 %v704, 7
      %v706 = vsub.s32 0, %v705
      %v707 = vrot.slane %v699, %v706
      %709 = vbcast.lane.b32.xlu0 %v707, 256
      %v710 = vpop.permute.xlu0 %709
      %s712 = sor.u32 256, 8
      %713 = vbcast.lane.b32.xlu0 %v707, %s712
      %v714 = vpop.permute.xlu0 %713
      %s716 = sor.u32 256, 16
      %717 = vbcast.lane.b32.xlu0 %v707, %s716
      %v718 = vpop.permute.xlu0 %717
      %s720 = sor.u32 256, 24
      %721 = vbcast.lane.b32.xlu0 %v707, %s720
      %v722 = vpop.permute.xlu0 %721
      %s724 = sor.u32 256, 32
      %725 = vbcast.lane.b32.xlu0 %v707, %s724
      %v726 = vpop.permute.xlu0 %725
      %v727 = vlaneseq
      %v728 = vshrl.u32 %v727, 7
      %v729 = vsub.s32 1, %v728
      %v730 = vrot.slane %v699, %v729
      %732 = vbcast.lane.b32.xlu0 %v730, 256
      %v733 = vpop.permute.xlu0 %732
      %s735 = sor.u32 256, 8
      %736 = vbcast.lane.b32.xlu0 %v730, %s735
      %v737 = vpop.permute.xlu0 %736
      %s739 = sor.u32 256, 16
      %740 = vbcast.lane.b32.xlu0 %v730, %s739
      %v741 = vpop.permute.xlu0 %740
      %s743 = sor.u32 256, 24
      %744 = vbcast.lane.b32.xlu0 %v730, %s743
      %v745 = vpop.permute.xlu0 %744
      %s747 = sor.u32 256, 32
      %748 = vbcast.lane.b32.xlu0 %v730, %s747
      %v749 = vpop.permute.xlu0 %748
      %v750 = vlaneseq
      %v751 = vshrl.u32 %v750, 7
      %v752 = vsub.s32 2, %v751
      %v753 = vrot.slane %v699, %v752
      %755 = vbcast.lane.b32.xlu0 %v753, 256
      %v756 = vpop.permute.xlu0 %755
      %s758 = sor.u32 256, 8
      %759 = vbcast.lane.b32.xlu0 %v753, %s758
      %v760 = vpop.permute.xlu0 %759
      %s762 = sor.u32 256, 16
      %763 = vbcast.lane.b32.xlu0 %v753, %s762
      %v764 = vpop.permute.xlu0 %763
      %s766 = sor.u32 256, 24
      %767 = vbcast.lane.b32.xlu0 %v753, %s766
      %v768 = vpop.permute.xlu0 %767
      %s770 = sor.u32 256, 32
      %771 = vbcast.lane.b32.xlu0 %v753, %s770
      %v772 = vpop.permute.xlu0 %771
      %v773 = vlaneseq
      %v774 = vshrl.u32 %v773, 7
      %v775 = vsub.s32 3, %v774
      %v776 = vrot.slane %v699, %v775
      %778 = vbcast.lane.b32.xlu0 %v776, 256
      %v779 = vpop.permute.xlu0 %778
      %s781 = sor.u32 256, 8
      %782 = vbcast.lane.b32.xlu0 %v776, %s781
      %v783 = vpop.permute.xlu0 %782
      %s785 = sor.u32 256, 16
      %786 = vbcast.lane.b32.xlu0 %v776, %s785
      %v787 = vpop.permute.xlu0 %786
      %s789 = sor.u32 256, 24
      %790 = vbcast.lane.b32.xlu0 %v776, %s789
      %v791 = vpop.permute.xlu0 %790
      %s793 = sor.u32 256, 32
      %794 = vbcast.lane.b32.xlu0 %v776, %s793
      %v795 = vpop.permute.xlu0 %794
      %v796 = vlaneseq
      %v797 = vshrl.u32 %v796, 7
      %v798 = vsub.s32 4, %v797
      %v799 = vrot.slane %v699, %v798
      %801 = vbcast.lane.b32.xlu0 %v799, 256
      %v802 = vpop.permute.xlu0 %801
      %s804 = sor.u32 256, 8
      %805 = vbcast.lane.b32.xlu0 %v799, %s804
      %v806 = vpop.permute.xlu0 %805
      %s808 = sor.u32 256, 16
      %809 = vbcast.lane.b32.xlu0 %v799, %s808
      %v810 = vpop.permute.xlu0 %809
      %s812 = sor.u32 256, 24
      %813 = vbcast.lane.b32.xlu0 %v799, %s812
      %v814 = vpop.permute.xlu0 %813
      %s816 = sor.u32 256, 32
      %817 = vbcast.lane.b32.xlu0 %v799, %s816
      %v818 = vpop.permute.xlu0 %817
      %v819 = vlaneseq
      %v820 = vshrl.u32 %v819, 7
      %v821 = vsub.s32 5, %v820
      %v822 = vrot.slane %v699, %v821
      %824 = vbcast.lane.b32.xlu0 %v822, 256
      %v825 = vpop.permute.xlu0 %824
      %s827 = sor.u32 256, 8
      %828 = vbcast.lane.b32.xlu0 %v822, %s827
      %v829 = vpop.permute.xlu0 %828
      %s831 = sor.u32 256, 16
      %832 = vbcast.lane.b32.xlu0 %v822, %s831
      %v833 = vpop.permute.xlu0 %832
      %s835 = sor.u32 256, 24
      %836 = vbcast.lane.b32.xlu0 %v822, %s835
      %v837 = vpop.permute.xlu0 %836
      %s839 = sor.u32 256, 32
      %840 = vbcast.lane.b32.xlu0 %v822, %s839
      %v841 = vpop.permute.xlu0 %840
      %v842 = vlaneseq
      %v843 = vshrl.u32 %v842, 7
      %v844 = vsub.s32 6, %v843
      %v845 = vrot.slane %v699, %v844
      %847 = vbcast.lane.b32.xlu0 %v845, 256
      %v848 = vpop.permute.xlu0 %847
      %s850 = sor.u32 256, 8
      %851 = vbcast.lane.b32.xlu0 %v845, %s850
      %v852 = vpop.permute.xlu0 %851
      %s854 = sor.u32 256, 16
      %855 = vbcast.lane.b32.xlu0 %v845, %s854
      %v856 = vpop.permute.xlu0 %855
      %s858 = sor.u32 256, 24
      %859 = vbcast.lane.b32.xlu0 %v845, %s858
      %v860 = vpop.permute.xlu0 %859
      %s862 = sor.u32 256, 32
      %863 = vbcast.lane.b32.xlu0 %v845, %s862
      %v864 = vpop.permute.xlu0 %863
      %v865 = vlaneseq
      %v866 = vshrl.u32 %v865, 7
      %v867 = vsub.s32 7, %v866
      %v868 = vrot.slane %v699, %v867
      %870 = vbcast.lane.b32.xlu0 %v868, 256
      %v871 = vpop.permute.xlu0 %870
      %s873 = sor.u32 256, 8
      %874 = vbcast.lane.b32.xlu0 %v868, %s873
      %v875 = vpop.permute.xlu0 %874
      %s877 = sor.u32 256, 16
      %878 = vbcast.lane.b32.xlu0 %v868, %s877
      %v879 = vpop.permute.xlu0 %878
      %s881 = sor.u32 256, 24
      %882 = vbcast.lane.b32.xlu0 %v868, %s881
      %v883 = vpop.permute.xlu0 %882
      %s885 = sor.u32 256, 32
      %886 = vbcast.lane.b32.xlu0 %v868, %s885
      %v887 = vpop.permute.xlu0 %886
      %v888 = vlaneseq
      %v889 = vshrl.u32 %v888, 7
      %v890 = vsub.s32 0, %v889
      %v891 = vrot.slane %v700, %v890
      %893 = vbcast.lane.b32.xlu0 %v891, 256
      %v894 = vpop.permute.xlu0 %893
      %s896 = sor.u32 256, 8
      %897 = vbcast.lane.b32.xlu0 %v891, %s896
      %v898 = vpop.permute.xlu0 %897
      %s900 = sor.u32 256, 16
      %901 = vbcast.lane.b32.xlu0 %v891, %s900
      %v902 = vpop.permute.xlu0 %901
      %s904 = sor.u32 256, 24
      %905 = vbcast.lane.b32.xlu0 %v891, %s904
      %v906 = vpop.permute.xlu0 %905
      %s908 = sor.u32 256, 32
      %909 = vbcast.lane.b32.xlu0 %v891, %s908
      %v910 = vpop.permute.xlu0 %909
      %v911 = vlaneseq
      %v912 = vshrl.u32 %v911, 7
      %v913 = vsub.s32 1, %v912
      %v914 = vrot.slane %v700, %v913
      %916 = vbcast.lane.b32.xlu0 %v914, 256
      %v917 = vpop.permute.xlu0 %916
      %s919 = sor.u32 256, 8
      %920 = vbcast.lane.b32.xlu0 %v914, %s919
      %v921 = vpop.permute.xlu0 %920
      %s923 = sor.u32 256, 16
      %924 = vbcast.lane.b32.xlu0 %v914, %s923
      %v925 = vpop.permute.xlu0 %924
      %s927 = sor.u32 256, 24
      %928 = vbcast.lane.b32.xlu0 %v914, %s927
      %v929 = vpop.permute.xlu0 %928
      %s931 = sor.u32 256, 32
      %932 = vbcast.lane.b32.xlu0 %v914, %s931
      %v933 = vpop.permute.xlu0 %932
      %v934 = vlaneseq
      %v935 = vshrl.u32 %v934, 7
      %v936 = vsub.s32 2, %v935
      %v937 = vrot.slane %v700, %v936
      %939 = vbcast.lane.b32.xlu0 %v937, 256
      %v940 = vpop.permute.xlu0 %939
      %s942 = sor.u32 256, 8
      %943 = vbcast.lane.b32.xlu0 %v937, %s942
      %v944 = vpop.permute.xlu0 %943
      %s946 = sor.u32 256, 16
      %947 = vbcast.lane.b32.xlu0 %v937, %s946
      %v948 = vpop.permute.xlu0 %947
      %s950 = sor.u32 256, 24
      %951 = vbcast.lane.b32.xlu0 %v937, %s950
      %v952 = vpop.permute.xlu0 %951
      %s954 = sor.u32 256, 32
      %955 = vbcast.lane.b32.xlu0 %v937, %s954
      %v956 = vpop.permute.xlu0 %955
      %v957 = vlaneseq
      %v958 = vshrl.u32 %v957, 7
      %v959 = vsub.s32 3, %v958
      %v960 = vrot.slane %v700, %v959
      %962 = vbcast.lane.b32.xlu0 %v960, 256
      %v963 = vpop.permute.xlu0 %962
      %s965 = sor.u32 256, 8
      %966 = vbcast.lane.b32.xlu0 %v960, %s965
      %v967 = vpop.permute.xlu0 %966
      %s969 = sor.u32 256, 16
      %970 = vbcast.lane.b32.xlu0 %v960, %s969
      %v971 = vpop.permute.xlu0 %970
      %s973 = sor.u32 256, 24
      %974 = vbcast.lane.b32.xlu0 %v960, %s973
      %v975 = vpop.permute.xlu0 %974
      %s977 = sor.u32 256, 32
      %978 = vbcast.lane.b32.xlu0 %v960, %s977
      %v979 = vpop.permute.xlu0 %978
      %v980 = vlaneseq
      %v981 = vshrl.u32 %v980, 7
      %v982 = vsub.s32 4, %v981
      %v983 = vrot.slane %v700, %v982
      %985 = vbcast.lane.b32.xlu0 %v983, 256
      %v986 = vpop.permute.xlu0 %985
      %s988 = sor.u32 256, 8
      %989 = vbcast.lane.b32.xlu0 %v983, %s988
      %v990 = vpop.permute.xlu0 %989
      %s992 = sor.u32 256, 16
      %993 = vbcast.lane.b32.xlu0 %v983, %s992
      %v994 = vpop.permute.xlu0 %993
      %s996 = sor.u32 256, 24
      %997 = vbcast.lane.b32.xlu0 %v983, %s996
      %v998 = vpop.permute.xlu0 %997
      %s1000 = sor.u32 256, 32
      %1001 = vbcast.lane.b32.xlu0 %v983, %s1000
      %v1002 = vpop.permute.xlu0 %1001
      %v1003 = vlaneseq
      %v1004 = vshrl.u32 %v1003, 7
      %v1005 = vsub.s32 5, %v1004
      %v1006 = vrot.slane %v700, %v1005
      %1008 = vbcast.lane.b32.xlu0 %v1006, 256
      %v1009 = vpop.permute.xlu0 %1008
      %s1011 = sor.u32 256, 8
      %1012 = vbcast.lane.b32.xlu0 %v1006, %s1011
      %v1013 = vpop.permute.xlu0 %1012
      %s1015 = sor.u32 256, 16
      %1016 = vbcast.lane.b32.xlu0 %v1006, %s1015
      %v1017 = vpop.permute.xlu0 %1016
      %s1019 = sor.u32 256, 24
      %1020 = vbcast.lane.b32.xlu0 %v1006, %s1019
      %v1021 = vpop.permute.xlu0 %1020
      %s1023 = sor.u32 256, 32
      %1024 = vbcast.lane.b32.xlu0 %v1006, %s1023
      %v1025 = vpop.permute.xlu0 %1024
      %v1026 = vlaneseq
      %v1027 = vshrl.u32 %v1026, 7
      %v1028 = vsub.s32 6, %v1027
      %v1029 = vrot.slane %v700, %v1028
      %1031 = vbcast.lane.b32.xlu0 %v1029, 256
      %v1032 = vpop.permute.xlu0 %1031
      %s1034 = sor.u32 256, 8
      %1035 = vbcast.lane.b32.xlu0 %v1029, %s1034
      %v1036 = vpop.permute.xlu0 %1035
      %s1038 = sor.u32 256, 16
      %1039 = vbcast.lane.b32.xlu0 %v1029, %s1038
      %v1040 = vpop.permute.xlu0 %1039
      %s1042 = sor.u32 256, 24
      %1043 = vbcast.lane.b32.xlu0 %v1029, %s1042
      %v1044 = vpop.permute.xlu0 %1043
      %s1046 = sor.u32 256, 32
      %1047 = vbcast.lane.b32.xlu0 %v1029, %s1046
      %v1048 = vpop.permute.xlu0 %1047
      %v1049 = vlaneseq
      %v1050 = vshrl.u32 %v1049, 7
      %v1051 = vsub.s32 7, %v1050
      %v1052 = vrot.slane %v700, %v1051
      %1054 = vbcast.lane.b32.xlu0 %v1052, 256
      %v1055 = vpop.permute.xlu0 %1054
      %s1057 = sor.u32 256, 8
      %1058 = vbcast.lane.b32.xlu0 %v1052, %s1057
      %v1059 = vpop.permute.xlu0 %1058
      %s1061 = sor.u32 256, 16
      %1062 = vbcast.lane.b32.xlu0 %v1052, %s1061
      %v1063 = vpop.permute.xlu0 %1062
      %s1065 = sor.u32 256, 24
      %1066 = vbcast.lane.b32.xlu0 %v1052, %s1065
      %v1067 = vpop.permute.xlu0 %1066
      %s1069 = sor.u32 256, 32
      %1070 = vbcast.lane.b32.xlu0 %v1052, %s1069
      %v1071 = vpop.permute.xlu0 %1070
      %v1072 = vlaneseq
      %v1073 = vshrl.u32 %v1072, 7
      %v1074 = vsub.s32 0, %v1073
      %v1075 = vrot.slane %v701, %v1074
      %1077 = vbcast.lane.b32.xlu0 %v1075, 256
      %v1078 = vpop.permute.xlu0 %1077
      %s1080 = sor.u32 256, 8
      %1081 = vbcast.lane.b32.xlu0 %v1075, %s1080
      %v1082 = vpop.permute.xlu0 %1081
      %s1084 = sor.u32 256, 16
      %1085 = vbcast.lane.b32.xlu0 %v1075, %s1084
      %v1086 = vpop.permute.xlu0 %1085
      %s1088 = sor.u32 256, 24
      %1089 = vbcast.lane.b32.xlu0 %v1075, %s1088
      %v1090 = vpop.permute.xlu0 %1089
      %s1092 = sor.u32 256, 32
      %1093 = vbcast.lane.b32.xlu0 %v1075, %s1092
      %v1094 = vpop.permute.xlu0 %1093
      %v1095 = vlaneseq
      %v1096 = vshrl.u32 %v1095, 7
      %v1097 = vsub.s32 1, %v1096
      %v1098 = vrot.slane %v701, %v1097
      %1100 = vbcast.lane.b32.xlu0 %v1098, 256
      %v1101 = vpop.permute.xlu0 %1100
      %s1103 = sor.u32 256, 8
      %1104 = vbcast.lane.b32.xlu0 %v1098, %s1103
      %v1105 = vpop.permute.xlu0 %1104
      %s1107 = sor.u32 256, 16
      %1108 = vbcast.lane.b32.xlu0 %v1098, %s1107
      %v1109 = vpop.permute.xlu0 %1108
      %s1111 = sor.u32 256, 24
      %1112 = vbcast.lane.b32.xlu0 %v1098, %s1111
      %v1113 = vpop.permute.xlu0 %1112
      %s1115 = sor.u32 256, 32
      %1116 = vbcast.lane.b32.xlu0 %v1098, %s1115
      %v1117 = vpop.permute.xlu0 %1116
      %v1118 = vlaneseq
      %v1119 = vshrl.u32 %v1118, 7
      %v1120 = vsub.s32 2, %v1119
      %v1121 = vrot.slane %v701, %v1120
      %1123 = vbcast.lane.b32.xlu0 %v1121, 256
      %v1124 = vpop.permute.xlu0 %1123
      %s1126 = sor.u32 256, 8
      %1127 = vbcast.lane.b32.xlu0 %v1121, %s1126
      %v1128 = vpop.permute.xlu0 %1127
      %s1130 = sor.u32 256, 16
      %1131 = vbcast.lane.b32.xlu0 %v1121, %s1130
      %v1132 = vpop.permute.xlu0 %1131
      %s1134 = sor.u32 256, 24
      %1135 = vbcast.lane.b32.xlu0 %v1121, %s1134
      %v1136 = vpop.permute.xlu0 %1135
      %s1138 = sor.u32 256, 32
      %1139 = vbcast.lane.b32.xlu0 %v1121, %s1138
      %v1140 = vpop.permute.xlu0 %1139
      %v1141 = vlaneseq
      %v1142 = vshrl.u32 %v1141, 7
      %v1143 = vsub.s32 3, %v1142
      %v1144 = vrot.slane %v701, %v1143
      %1146 = vbcast.lane.b32.xlu0 %v1144, 256
      %v1147 = vpop.permute.xlu0 %1146
      %s1149 = sor.u32 256, 8
      %1150 = vbcast.lane.b32.xlu0 %v1144, %s1149
      %v1151 = vpop.permute.xlu0 %1150
      %s1153 = sor.u32 256, 16
      %1154 = vbcast.lane.b32.xlu0 %v1144, %s1153
      %v1155 = vpop.permute.xlu0 %1154
      %s1157 = sor.u32 256, 24
      %1158 = vbcast.lane.b32.xlu0 %v1144, %s1157
      %v1159 = vpop.permute.xlu0 %1158
      %s1161 = sor.u32 256, 32
      %1162 = vbcast.lane.b32.xlu0 %v1144, %s1161
      %v1163 = vpop.permute.xlu0 %1162
      %v1164 = vlaneseq
      %v1165 = vshrl.u32 %v1164, 7
      %v1166 = vsub.s32 4, %v1165
      %v1167 = vrot.slane %v701, %v1166
      %1169 = vbcast.lane.b32.xlu0 %v1167, 256
      %v1170 = vpop.permute.xlu0 %1169
      %s1172 = sor.u32 256, 8
      %1173 = vbcast.lane.b32.xlu0 %v1167, %s1172
      %v1174 = vpop.permute.xlu0 %1173
      %s1176 = sor.u32 256, 16
      %1177 = vbcast.lane.b32.xlu0 %v1167, %s1176
      %v1178 = vpop.permute.xlu0 %1177
      %s1180 = sor.u32 256, 24
      %1181 = vbcast.lane.b32.xlu0 %v1167, %s1180
      %v1182 = vpop.permute.xlu0 %1181
      %s1184 = sor.u32 256, 32
      %1185 = vbcast.lane.b32.xlu0 %v1167, %s1184
      %v1186 = vpop.permute.xlu0 %1185
      %v1187 = vlaneseq
      %v1188 = vshrl.u32 %v1187, 7
      %v1189 = vsub.s32 5, %v1188
      %v1190 = vrot.slane %v701, %v1189
      %1192 = vbcast.lane.b32.xlu0 %v1190, 256
      %v1193 = vpop.permute.xlu0 %1192
      %s1195 = sor.u32 256, 8
      %1196 = vbcast.lane.b32.xlu0 %v1190, %s1195
      %v1197 = vpop.permute.xlu0 %1196
      %s1199 = sor.u32 256, 16
      %1200 = vbcast.lane.b32.xlu0 %v1190, %s1199
      %v1201 = vpop.permute.xlu0 %1200
      %s1203 = sor.u32 256, 24
      %1204 = vbcast.lane.b32.xlu0 %v1190, %s1203
      %v1205 = vpop.permute.xlu0 %1204
      %s1207 = sor.u32 256, 32
      %1208 = vbcast.lane.b32.xlu0 %v1190, %s1207
      %v1209 = vpop.permute.xlu0 %1208
      %v1210 = vlaneseq
      %v1211 = vshrl.u32 %v1210, 7
      %v1212 = vsub.s32 6, %v1211
      %v1213 = vrot.slane %v701, %v1212
      %1215 = vbcast.lane.b32.xlu0 %v1213, 256
      %v1216 = vpop.permute.xlu0 %1215
      %s1218 = sor.u32 256, 8
      %1219 = vbcast.lane.b32.xlu0 %v1213, %s1218
      %v1220 = vpop.permute.xlu0 %1219
      %s1222 = sor.u32 256, 16
      %1223 = vbcast.lane.b32.xlu0 %v1213, %s1222
      %v1224 = vpop.permute.xlu0 %1223
      %s1226 = sor.u32 256, 24
      %1227 = vbcast.lane.b32.xlu0 %v1213, %s1226
      %v1228 = vpop.permute.xlu0 %1227
      %s1230 = sor.u32 256, 32
      %1231 = vbcast.lane.b32.xlu0 %v1213, %s1230
      %v1232 = vpop.permute.xlu0 %1231
      %v1233 = vlaneseq
      %v1234 = vshrl.u32 %v1233, 7
      %v1235 = vsub.s32 7, %v1234
      %v1236 = vrot.slane %v701, %v1235
      %1238 = vbcast.lane.b32.xlu0 %v1236, 256
      %v1239 = vpop.permute.xlu0 %1238
      %s1241 = sor.u32 256, 8
      %1242 = vbcast.lane.b32.xlu0 %v1236, %s1241
      %v1243 = vpop.permute.xlu0 %1242
      %s1245 = sor.u32 256, 16
      %1246 = vbcast.lane.b32.xlu0 %v1236, %s1245
      %v1247 = vpop.permute.xlu0 %1246
      %s1249 = sor.u32 256, 24
      %1250 = vbcast.lane.b32.xlu0 %v1236, %s1249
      %v1251 = vpop.permute.xlu0 %1250
      %s1253 = sor.u32 256, 32
      %1254 = vbcast.lane.b32.xlu0 %v1236, %s1253
      %v1255 = vpop.permute.xlu0 %1254
      %v1256 = vlaneseq
      %v1257 = vshrl.u32 %v1256, 7
      %v1258 = vsub.s32 0, %v1257
      %v1259 = vrot.slane %v702, %v1258
      %1261 = vbcast.lane.b32.xlu0 %v1259, 256
      %v1262 = vpop.permute.xlu0 %1261
      %s1264 = sor.u32 256, 8
      %1265 = vbcast.lane.b32.xlu0 %v1259, %s1264
      %v1266 = vpop.permute.xlu0 %1265
      %s1268 = sor.u32 256, 16
      %1269 = vbcast.lane.b32.xlu0 %v1259, %s1268
      %v1270 = vpop.permute.xlu0 %1269
      %s1272 = sor.u32 256, 24
      %1273 = vbcast.lane.b32.xlu0 %v1259, %s1272
      %v1274 = vpop.permute.xlu0 %1273
      %s1276 = sor.u32 256, 32
      %1277 = vbcast.lane.b32.xlu0 %v1259, %s1276
      %v1278 = vpop.permute.xlu0 %1277
      %v1279 = vlaneseq
      %v1280 = vshrl.u32 %v1279, 7
      %v1281 = vsub.s32 1, %v1280
      %v1282 = vrot.slane %v702, %v1281
      %1284 = vbcast.lane.b32.xlu0 %v1282, 256
      %v1285 = vpop.permute.xlu0 %1284
      %s1287 = sor.u32 256, 8
      %1288 = vbcast.lane.b32.xlu0 %v1282, %s1287
      %v1289 = vpop.permute.xlu0 %1288
      %s1291 = sor.u32 256, 16
      %1292 = vbcast.lane.b32.xlu0 %v1282, %s1291
      %v1293 = vpop.permute.xlu0 %1292
      %s1295 = sor.u32 256, 24
      %1296 = vbcast.lane.b32.xlu0 %v1282, %s1295
      %v1297 = vpop.permute.xlu0 %1296
      %s1299 = sor.u32 256, 32
      %1300 = vbcast.lane.b32.xlu0 %v1282, %s1299
      %v1301 = vpop.permute.xlu0 %1300
      %v1302 = vlaneseq
      %v1303 = vshrl.u32 %v1302, 7
      %v1304 = vsub.s32 2, %v1303
      %v1305 = vrot.slane %v702, %v1304
      %1307 = vbcast.lane.b32.xlu0 %v1305, 256
      %v1308 = vpop.permute.xlu0 %1307
      %s1310 = sor.u32 256, 8
      %1311 = vbcast.lane.b32.xlu0 %v1305, %s1310
      %v1312 = vpop.permute.xlu0 %1311
      %s1314 = sor.u32 256, 16
      %1315 = vbcast.lane.b32.xlu0 %v1305, %s1314
      %v1316 = vpop.permute.xlu0 %1315
      %s1318 = sor.u32 256, 24
      %1319 = vbcast.lane.b32.xlu0 %v1305, %s1318
      %v1320 = vpop.permute.xlu0 %1319
      %s1322 = sor.u32 256, 32
      %1323 = vbcast.lane.b32.xlu0 %v1305, %s1322
      %v1324 = vpop.permute.xlu0 %1323
      %v1325 = vlaneseq
      %v1326 = vshrl.u32 %v1325, 7
      %v1327 = vsub.s32 3, %v1326
      %v1328 = vrot.slane %v702, %v1327
      %1330 = vbcast.lane.b32.xlu0 %v1328, 256
      %v1331 = vpop.permute.xlu0 %1330
      %s1333 = sor.u32 256, 8
      %1334 = vbcast.lane.b32.xlu0 %v1328, %s1333
      %v1335 = vpop.permute.xlu0 %1334
      %s1337 = sor.u32 256, 16
      %1338 = vbcast.lane.b32.xlu0 %v1328, %s1337
      %v1339 = vpop.permute.xlu0 %1338
      %s1341 = sor.u32 256, 24
      %1342 = vbcast.lane.b32.xlu0 %v1328, %s1341
      %v1343 = vpop.permute.xlu0 %1342
      %s1345 = sor.u32 256, 32
      %1346 = vbcast.lane.b32.xlu0 %v1328, %s1345
      %v1347 = vpop.permute.xlu0 %1346
      %v1348 = vlaneseq
      %v1349 = vshrl.u32 %v1348, 7
      %v1350 = vsub.s32 4, %v1349
      %v1351 = vrot.slane %v702, %v1350
      %1353 = vbcast.lane.b32.xlu0 %v1351, 256
      %v1354 = vpop.permute.xlu0 %1353
      %s1356 = sor.u32 256, 8
      %1357 = vbcast.lane.b32.xlu0 %v1351, %s1356
      %v1358 = vpop.permute.xlu0 %1357
      %s1360 = sor.u32 256, 16
      %1361 = vbcast.lane.b32.xlu0 %v1351, %s1360
      %v1362 = vpop.permute.xlu0 %1361
      %s1364 = sor.u32 256, 24
      %1365 = vbcast.lane.b32.xlu0 %v1351, %s1364
      %v1366 = vpop.permute.xlu0 %1365
      %s1368 = sor.u32 256, 32
      %1369 = vbcast.lane.b32.xlu0 %v1351, %s1368
      %v1370 = vpop.permute.xlu0 %1369
      %v1371 = vlaneseq
      %v1372 = vshrl.u32 %v1371, 7
      %v1373 = vsub.s32 5, %v1372
      %v1374 = vrot.slane %v702, %v1373
      %1376 = vbcast.lane.b32.xlu0 %v1374, 256
      %v1377 = vpop.permute.xlu0 %1376
      %s1379 = sor.u32 256, 8
      %1380 = vbcast.lane.b32.xlu0 %v1374, %s1379
      %v1381 = vpop.permute.xlu0 %1380
      %s1383 = sor.u32 256, 16
      %1384 = vbcast.lane.b32.xlu0 %v1374, %s1383
      %v1385 = vpop.permute.xlu0 %1384
      %s1387 = sor.u32 256, 24
      %1388 = vbcast.lane.b32.xlu0 %v1374, %s1387
      %v1389 = vpop.permute.xlu0 %1388
      %s1391 = sor.u32 256, 32
      %1392 = vbcast.lane.b32.xlu0 %v1374, %s1391
      %v1393 = vpop.permute.xlu0 %1392
      %v1394 = vlaneseq
      %v1395 = vshrl.u32 %v1394, 7
      %v1396 = vsub.s32 6, %v1395
      %v1397 = vrot.slane %v702, %v1396
      %1399 = vbcast.lane.b32.xlu0 %v1397, 256
      %v1400 = vpop.permute.xlu0 %1399
      %s1402 = sor.u32 256, 8
      %1403 = vbcast.lane.b32.xlu0 %v1397, %s1402
      %v1404 = vpop.permute.xlu0 %1403
      %s1406 = sor.u32 256, 16
      %1407 = vbcast.lane.b32.xlu0 %v1397, %s1406
      %v1408 = vpop.permute.xlu0 %1407
      %s1410 = sor.u32 256, 24
      %1411 = vbcast.lane.b32.xlu0 %v1397, %s1410
      %v1412 = vpop.permute.xlu0 %1411
      %s1414 = sor.u32 256, 32
      %1415 = vbcast.lane.b32.xlu0 %v1397, %s1414
      %v1416 = vpop.permute.xlu0 %1415
      %v1417 = vlaneseq
      %v1418 = vshrl.u32 %v1417, 7
      %v1419 = vsub.s32 7, %v1418
      %v1420 = vrot.slane %v702, %v1419
      %1422 = vbcast.lane.b32.xlu0 %v1420, 256
      %v1423 = vpop.permute.xlu0 %1422
      %s1425 = sor.u32 256, 8
      %1426 = vbcast.lane.b32.xlu0 %v1420, %s1425
      %v1427 = vpop.permute.xlu0 %1426
      %s1429 = sor.u32 256, 16
      %1430 = vbcast.lane.b32.xlu0 %v1420, %s1429
      %v1431 = vpop.permute.xlu0 %1430
      %s1433 = sor.u32 256, 24
      %1434 = vbcast.lane.b32.xlu0 %v1420, %s1433
      %v1435 = vpop.permute.xlu0 %1434
      %s1437 = sor.u32 256, 32
      %1438 = vbcast.lane.b32.xlu0 %v1420, %s1437
      %v1439 = vpop.permute.xlu0 %1438
      %v1440 = vlaneseq
      %v1441 = vshrl.u32 %v1440, 7
      %v1442 = vsub.s32 0, %v1441
      %v1443 = vrot.slane %v703, %v1442
      %1445 = vbcast.lane.b32.xlu0 %v1443, 256
      %v1446 = vpop.permute.xlu0 %1445
      %s1448 = sor.u32 256, 8
      %1449 = vbcast.lane.b32.xlu0 %v1443, %s1448
      %v1450 = vpop.permute.xlu0 %1449
      %s1452 = sor.u32 256, 16
      %1453 = vbcast.lane.b32.xlu0 %v1443, %s1452
      %v1454 = vpop.permute.xlu0 %1453
      %s1456 = sor.u32 256, 24
      %1457 = vbcast.lane.b32.xlu0 %v1443, %s1456
      %v1458 = vpop.permute.xlu0 %1457
      %s1460 = sor.u32 256, 32
      %1461 = vbcast.lane.b32.xlu0 %v1443, %s1460
      %v1462 = vpop.permute.xlu0 %1461
      %v1463 = vld [vmem:[%s9] sm:$0xff]
      %v1464 = vld [vmem:[%s9 + $0x8] sm:$0xff]
      %v1465 = vld [vmem:[%s9 + $0x10] sm:$0xff]
      %v1466 = vld [vmem:[%s9 + $0x18] sm:$0xff]
      %v1467 = vld [vmem:[%s9 + $0x20] sm:$0xff]
      %v1468 = vld [vmem:[%s9 + $0x28] sm:$0xff]
      %v1469 = vld [vmem:[%s9 + $0x30] sm:$0xff]
      %v1470 = vld [vmem:[%s9 + $0x38] sm:$0xff]
      %v1471 = vld [vmem:[%s9 + $0x40] sm:$0xf]
      %v1472 = vld [vmem:[%s9 + $0x48] sm:$0xf]
      %v1473 = vmul.f32 %v710, %v1463
      %v1474 = vmul.f32 %v710, %v1464
      %v1475 = vmul.f32 %v714, %v1465
      %v1476 = vmul.f32 %v714, %v1466
      %v1477 = vmul.f32 %v718, %v1467
      %v1478 = vmul.f32 %v718, %v1468
      %v1479 = vmul.f32 %v722, %v1469
      %v1480 = vmul.f32 %v722, %v1470
      %v1481 = vmul.f32 %v726, %v1471
      %v1482 = vmul.f32 %v726, %v1472
      %v1483 = vmul.f32 %v733, %v1463
      %v1484 = vmul.f32 %v733, %v1464
      %v1485 = vmul.f32 %v737, %v1465
      %v1486 = vmul.f32 %v737, %v1466
      %v1487 = vmul.f32 %v741, %v1467
      %v1488 = vmul.f32 %v741, %v1468
      %v1489 = vmul.f32 %v745, %v1469
      %v1490 = vmul.f32 %v745, %v1470
      %v1491 = vmul.f32 %v749, %v1471
      %v1492 = vmul.f32 %v749, %v1472
      %v1493 = vmul.f32 %v756, %v1463
      %v1494 = vmul.f32 %v756, %v1464
      %v1495 = vmul.f32 %v760, %v1465
      %v1496 = vmul.f32 %v760, %v1466
      %v1497 = vmul.f32 %v764, %v1467
      %v1498 = vmul.f32 %v764, %v1468
      %v1499 = vmul.f32 %v768, %v1469
      %v1500 = vmul.f32 %v768, %v1470
      %v1501 = vmul.f32 %v772, %v1471
      %v1502 = vmul.f32 %v772, %v1472
      %v1503 = vmul.f32 %v779, %v1463
      %v1504 = vmul.f32 %v779, %v1464
      %v1505 = vmul.f32 %v783, %v1465
      %v1506 = vmul.f32 %v783, %v1466
      %v1507 = vmul.f32 %v787, %v1467
      %v1508 = vmul.f32 %v787, %v1468
      %v1509 = vmul.f32 %v791, %v1469
      %v1510 = vmul.f32 %v791, %v1470
      %v1511 = vmul.f32 %v795, %v1471
      %v1512 = vmul.f32 %v795, %v1472
      %v1513 = vmul.f32 %v802, %v1463
      %v1514 = vmul.f32 %v802, %v1464
      %v1515 = vmul.f32 %v806, %v1465
      %v1516 = vmul.f32 %v806, %v1466
      %v1517 = vmul.f32 %v810, %v1467
      %v1518 = vmul.f32 %v810, %v1468
      %v1519 = vmul.f32 %v814, %v1469
      %v1520 = vmul.f32 %v814, %v1470
      %v1521 = vmul.f32 %v818, %v1471
      %v1522 = vmul.f32 %v818, %v1472
      %v1523 = vmul.f32 %v825, %v1463
      %v1524 = vmul.f32 %v825, %v1464
      %v1525 = vmul.f32 %v829, %v1465
      %v1526 = vmul.f32 %v829, %v1466
      %v1527 = vmul.f32 %v833, %v1467
      %v1528 = vmul.f32 %v833, %v1468
      %v1529 = vmul.f32 %v837, %v1469
      %v1530 = vmul.f32 %v837, %v1470
      %v1531 = vmul.f32 %v841, %v1471
      %v1532 = vmul.f32 %v841, %v1472
      %v1533 = vmul.f32 %v848, %v1463
      %v1534 = vmul.f32 %v848, %v1464
      %v1535 = vmul.f32 %v852, %v1465
      %v1536 = vmul.f32 %v852, %v1466
      %v1537 = vmul.f32 %v856, %v1467
      %v1538 = vmul.f32 %v856, %v1468
      %v1539 = vmul.f32 %v860, %v1469
      %v1540 = vmul.f32 %v860, %v1470
      %v1541 = vmul.f32 %v864, %v1471
      %v1542 = vmul.f32 %v864, %v1472
      %v1543 = vmul.f32 %v871, %v1463
      %v1544 = vmul.f32 %v871, %v1464
      %v1545 = vmul.f32 %v875, %v1465
      %v1546 = vmul.f32 %v875, %v1466
      %v1547 = vmul.f32 %v879, %v1467
      %v1548 = vmul.f32 %v879, %v1468
      %v1549 = vmul.f32 %v883, %v1469
      %v1550 = vmul.f32 %v883, %v1470
      %v1551 = vmul.f32 %v887, %v1471
      %v1552 = vmul.f32 %v887, %v1472
      %v1553 = vmul.f32 %v894, %v1463
      %v1554 = vmul.f32 %v894, %v1464
      %v1555 = vmul.f32 %v898, %v1465
      %v1556 = vmul.f32 %v898, %v1466
      %v1557 = vmul.f32 %v902, %v1467
      %v1558 = vmul.f32 %v902, %v1468
      %v1559 = vmul.f32 %v906, %v1469
      %v1560 = vmul.f32 %v906, %v1470
      %v1561 = vmul.f32 %v910, %v1471
      %v1562 = vmul.f32 %v910, %v1472
      %v1563 = vmul.f32 %v917, %v1463
      %v1564 = vmul.f32 %v917, %v1464
      %v1565 = vmul.f32 %v921, %v1465
      %v1566 = vmul.f32 %v921, %v1466
      %v1567 = vmul.f32 %v925, %v1467
      %v1568 = vmul.f32 %v925, %v1468
      %v1569 = vmul.f32 %v929, %v1469
      %v1570 = vmul.f32 %v929, %v1470
      %v1571 = vmul.f32 %v933, %v1471
      %v1572 = vmul.f32 %v933, %v1472
      %v1573 = vmul.f32 %v940, %v1463
      %v1574 = vmul.f32 %v940, %v1464
      %v1575 = vmul.f32 %v944, %v1465
      %v1576 = vmul.f32 %v944, %v1466
      %v1577 = vmul.f32 %v948, %v1467
      %v1578 = vmul.f32 %v948, %v1468
      %v1579 = vmul.f32 %v952, %v1469
      %v1580 = vmul.f32 %v952, %v1470
      %v1581 = vmul.f32 %v956, %v1471
      %v1582 = vmul.f32 %v956, %v1472
      %v1583 = vmul.f32 %v963, %v1463
      %v1584 = vmul.f32 %v963, %v1464
      %v1585 = vmul.f32 %v967, %v1465
      %v1586 = vmul.f32 %v967, %v1466
      %v1587 = vmul.f32 %v971, %v1467
      %v1588 = vmul.f32 %v971, %v1468
      %v1589 = vmul.f32 %v975, %v1469
      %v1590 = vmul.f32 %v975, %v1470
      %v1591 = vmul.f32 %v979, %v1471
      %v1592 = vmul.f32 %v979, %v1472
      %v1593 = vmul.f32 %v986, %v1463
      %v1594 = vmul.f32 %v986, %v1464
      %v1595 = vmul.f32 %v990, %v1465
      %v1596 = vmul.f32 %v990, %v1466
      %v1597 = vmul.f32 %v994, %v1467
      %v1598 = vmul.f32 %v994, %v1468
      %v1599 = vmul.f32 %v998, %v1469
      %v1600 = vmul.f32 %v998, %v1470
      %v1601 = vmul.f32 %v1002, %v1471
      %v1602 = vmul.f32 %v1002, %v1472
      %v1603 = vmul.f32 %v1009, %v1463
      %v1604 = vmul.f32 %v1009, %v1464
      %v1605 = vmul.f32 %v1013, %v1465
      %v1606 = vmul.f32 %v1013, %v1466
      %v1607 = vmul.f32 %v1017, %v1467
      %v1608 = vmul.f32 %v1017, %v1468
      %v1609 = vmul.f32 %v1021, %v1469
      %v1610 = vmul.f32 %v1021, %v1470
      %v1611 = vmul.f32 %v1025, %v1471
      %v1612 = vmul.f32 %v1025, %v1472
      %v1613 = vmul.f32 %v1032, %v1463
      %v1614 = vmul.f32 %v1032, %v1464
      %v1615 = vmul.f32 %v1036, %v1465
      %v1616 = vmul.f32 %v1036, %v1466
      %v1617 = vmul.f32 %v1040, %v1467
      %v1618 = vmul.f32 %v1040, %v1468
      %v1619 = vmul.f32 %v1044, %v1469
      %v1620 = vmul.f32 %v1044, %v1470
      %v1621 = vmul.f32 %v1048, %v1471
      %v1622 = vmul.f32 %v1048, %v1472
      %v1623 = vmul.f32 %v1055, %v1463
      %v1624 = vmul.f32 %v1055, %v1464
      %v1625 = vmul.f32 %v1059, %v1465
      %v1626 = vmul.f32 %v1059, %v1466
      %v1627 = vmul.f32 %v1063, %v1467
      %v1628 = vmul.f32 %v1063, %v1468
      %v1629 = vmul.f32 %v1067, %v1469
      %v1630 = vmul.f32 %v1067, %v1470
      %v1631 = vmul.f32 %v1071, %v1471
      %v1632 = vmul.f32 %v1071, %v1472
      %v1633 = vmul.f32 %v1078, %v1463
      %v1634 = vmul.f32 %v1078, %v1464
      %v1635 = vmul.f32 %v1082, %v1465
      %v1636 = vmul.f32 %v1082, %v1466
      %v1637 = vmul.f32 %v1086, %v1467
      %v1638 = vmul.f32 %v1086, %v1468
      %v1639 = vmul.f32 %v1090, %v1469
      %v1640 = vmul.f32 %v1090, %v1470
      %v1641 = vmul.f32 %v1094, %v1471
      %v1642 = vmul.f32 %v1094, %v1472
      %v1643 = vmul.f32 %v1101, %v1463
      %v1644 = vmul.f32 %v1101, %v1464
      %v1645 = vmul.f32 %v1105, %v1465
      %v1646 = vmul.f32 %v1105, %v1466
      %v1647 = vmul.f32 %v1109, %v1467
      %v1648 = vmul.f32 %v1109, %v1468
      %v1649 = vmul.f32 %v1113, %v1469
      %v1650 = vmul.f32 %v1113, %v1470
      %v1651 = vmul.f32 %v1117, %v1471
      %v1652 = vmul.f32 %v1117, %v1472
      %v1653 = vmul.f32 %v1124, %v1463
      %v1654 = vmul.f32 %v1124, %v1464
      %v1655 = vmul.f32 %v1128, %v1465
      %v1656 = vmul.f32 %v1128, %v1466
      %v1657 = vmul.f32 %v1132, %v1467
      %v1658 = vmul.f32 %v1132, %v1468
      %v1659 = vmul.f32 %v1136, %v1469
      %v1660 = vmul.f32 %v1136, %v1470
      %v1661 = vmul.f32 %v1140, %v1471
      %v1662 = vmul.f32 %v1140, %v1472
      %v1663 = vmul.f32 %v1147, %v1463
      %v1664 = vmul.f32 %v1147, %v1464
      %v1665 = vmul.f32 %v1151, %v1465
      %v1666 = vmul.f32 %v1151, %v1466
      %v1667 = vmul.f32 %v1155, %v1467
      %v1668 = vmul.f32 %v1155, %v1468
      %v1669 = vmul.f32 %v1159, %v1469
      %v1670 = vmul.f32 %v1159, %v1470
      %v1671 = vmul.f32 %v1163, %v1471
      %v1672 = vmul.f32 %v1163, %v1472
      %v1673 = vmul.f32 %v1170, %v1463
      %v1674 = vmul.f32 %v1170, %v1464
      %v1675 = vmul.f32 %v1174, %v1465
      %v1676 = vmul.f32 %v1174, %v1466
      %v1677 = vmul.f32 %v1178, %v1467
      %v1678 = vmul.f32 %v1178, %v1468
      %v1679 = vmul.f32 %v1182, %v1469
      %v1680 = vmul.f32 %v1182, %v1470
      %v1681 = vmul.f32 %v1186, %v1471
      %v1682 = vmul.f32 %v1186, %v1472
      %v1683 = vmul.f32 %v1193, %v1463
      %v1684 = vmul.f32 %v1193, %v1464
      %v1685 = vmul.f32 %v1197, %v1465
      %v1686 = vmul.f32 %v1197, %v1466
      %v1687 = vmul.f32 %v1201, %v1467
      %v1688 = vmul.f32 %v1201, %v1468
      %v1689 = vmul.f32 %v1205, %v1469
      %v1690 = vmul.f32 %v1205, %v1470
      %v1691 = vmul.f32 %v1209, %v1471
      %v1692 = vmul.f32 %v1209, %v1472
      %v1693 = vmul.f32 %v1216, %v1463
      %v1694 = vmul.f32 %v1216, %v1464
      %v1695 = vmul.f32 %v1220, %v1465
      %v1696 = vmul.f32 %v1220, %v1466
      %v1697 = vmul.f32 %v1224, %v1467
      %v1698 = vmul.f32 %v1224, %v1468
      %v1699 = vmul.f32 %v1228, %v1469
      %v1700 = vmul.f32 %v1228, %v1470
      %v1701 = vmul.f32 %v1232, %v1471
      %v1702 = vmul.f32 %v1232, %v1472
      %v1703 = vmul.f32 %v1239, %v1463
      %v1704 = vmul.f32 %v1239, %v1464
      %v1705 = vmul.f32 %v1243, %v1465
      %v1706 = vmul.f32 %v1243, %v1466
      %v1707 = vmul.f32 %v1247, %v1467
      %v1708 = vmul.f32 %v1247, %v1468
      %v1709 = vmul.f32 %v1251, %v1469
      %v1710 = vmul.f32 %v1251, %v1470
      %v1711 = vmul.f32 %v1255, %v1471
      %v1712 = vmul.f32 %v1255, %v1472
      %v1713 = vmul.f32 %v1262, %v1463
      %v1714 = vmul.f32 %v1262, %v1464
      %v1715 = vmul.f32 %v1266, %v1465
      %v1716 = vmul.f32 %v1266, %v1466
      %v1717 = vmul.f32 %v1270, %v1467
      %v1718 = vmul.f32 %v1270, %v1468
      %v1719 = vmul.f32 %v1274, %v1469
      %v1720 = vmul.f32 %v1274, %v1470
      %v1721 = vmul.f32 %v1278, %v1471
      %v1722 = vmul.f32 %v1278, %v1472
      %v1723 = vmul.f32 %v1285, %v1463
      %v1724 = vmul.f32 %v1285, %v1464
      %v1725 = vmul.f32 %v1289, %v1465
      %v1726 = vmul.f32 %v1289, %v1466
      %v1727 = vmul.f32 %v1293, %v1467
      %v1728 = vmul.f32 %v1293, %v1468
      %v1729 = vmul.f32 %v1297, %v1469
      %v1730 = vmul.f32 %v1297, %v1470
      %v1731 = vmul.f32 %v1301, %v1471
      %v1732 = vmul.f32 %v1301, %v1472
      %v1733 = vmul.f32 %v1308, %v1463
      %v1734 = vmul.f32 %v1308, %v1464
      %v1735 = vmul.f32 %v1312, %v1465
      %v1736 = vmul.f32 %v1312, %v1466
      %v1737 = vmul.f32 %v1316, %v1467
      %v1738 = vmul.f32 %v1316, %v1468
      %v1739 = vmul.f32 %v1320, %v1469
      %v1740 = vmul.f32 %v1320, %v1470
      %v1741 = vmul.f32 %v1324, %v1471
      %v1742 = vmul.f32 %v1324, %v1472
      %v1743 = vmul.f32 %v1331, %v1463
      %v1744 = vmul.f32 %v1331, %v1464
      %v1745 = vmul.f32 %v1335, %v1465
      %v1746 = vmul.f32 %v1335, %v1466
      %v1747 = vmul.f32 %v1339, %v1467
      %v1748 = vmul.f32 %v1339, %v1468
      %v1749 = vmul.f32 %v1343, %v1469
      %v1750 = vmul.f32 %v1343, %v1470
      %v1751 = vmul.f32 %v1347, %v1471
      %v1752 = vmul.f32 %v1347, %v1472
      %v1753 = vmul.f32 %v1354, %v1463
      %v1754 = vmul.f32 %v1354, %v1464
      %v1755 = vmul.f32 %v1358, %v1465
      %v1756 = vmul.f32 %v1358, %v1466
      %v1757 = vmul.f32 %v1362, %v1467
      %v1758 = vmul.f32 %v1362, %v1468
      %v1759 = vmul.f32 %v1366, %v1469
      %v1760 = vmul.f32 %v1366, %v1470
      %v1761 = vmul.f32 %v1370, %v1471
      %v1762 = vmul.f32 %v1370, %v1472
      %v1763 = vmul.f32 %v1377, %v1463
      %v1764 = vmul.f32 %v1377, %v1464
      %v1765 = vmul.f32 %v1381, %v1465
      %v1766 = vmul.f32 %v1381, %v1466
      %v1767 = vmul.f32 %v1385, %v1467
      %v1768 = vmul.f32 %v1385, %v1468
      %v1769 = vmul.f32 %v1389, %v1469
      %v1770 = vmul.f32 %v1389, %v1470
      %v1771 = vmul.f32 %v1393, %v1471
      %v1772 = vmul.f32 %v1393, %v1472
      %v1773 = vmul.f32 %v1400, %v1463
      %v1774 = vmul.f32 %v1400, %v1464
      %v1775 = vmul.f32 %v1404, %v1465
      %v1776 = vmul.f32 %v1404, %v1466
      %v1777 = vmul.f32 %v1408, %v1467
      %v1778 = vmul.f32 %v1408, %v1468
      %v1779 = vmul.f32 %v1412, %v1469
      %v1780 = vmul.f32 %v1412, %v1470
      %v1781 = vmul.f32 %v1416, %v1471
      %v1782 = vmul.f32 %v1416, %v1472
      %v1783 = vmul.f32 %v1423, %v1463
      %v1784 = vmul.f32 %v1423, %v1464
      %v1785 = vmul.f32 %v1427, %v1465
      %v1786 = vmul.f32 %v1427, %v1466
      %v1787 = vmul.f32 %v1431, %v1467
      %v1788 = vmul.f32 %v1431, %v1468
      %v1789 = vmul.f32 %v1435, %v1469
      %v1790 = vmul.f32 %v1435, %v1470
      %v1791 = vmul.f32 %v1439, %v1471
      %v1792 = vmul.f32 %v1439, %v1472
      %v1793 = vmul.f32 %v1446, %v1463
      %v1794 = vmul.f32 %v1446, %v1464
      %v1795 = vmul.f32 %v1450, %v1465
      %v1796 = vmul.f32 %v1450, %v1466
      %v1797 = vmul.f32 %v1454, %v1467
      %v1798 = vmul.f32 %v1454, %v1468
      %v1799 = vmul.f32 %v1458, %v1469
      %v1800 = vmul.f32 %v1458, %v1470
      %v1801 = vmul.f32 %v1462, %v1471
      %v1802 = vmul.f32 %v1462, %v1472
      %v1803 = vadd.f32 %v1473, %v1475
      %v1804 = vadd.f32 %v1803, %v1477
      %v1805 = vadd.f32 %v1804, %v1479
      %v1806 = vsel %vm451, %v1481, 0.0
      %v1807 = vadd.f32 %v1805, %v1806
      %v1808 = vrot.slane %v1807, 4
      %v1809 = vadd.f32 %v1807, %v1808
      %v1810 = vrot.slane %v1809, 2
      %v1811 = vadd.f32 %v1809, %v1810
      %v1812 = vrot.slane %v1811, 1
      %v1813 = vadd.f32 %v1811, %v1812
      %v1814 = vadd.f32 %v1474, %v1476
      %v1815 = vadd.f32 %v1814, %v1478
      %v1816 = vadd.f32 %v1815, %v1480
      %v1817 = vsel %vm451, %v1482, 0.0
      %v1818 = vadd.f32 %v1816, %v1817
      %v1819 = vrot.slane %v1818, 4
      %v1820 = vadd.f32 %v1818, %v1819
      %v1821 = vrot.slane %v1820, 2
      %v1822 = vadd.f32 %v1820, %v1821
      %v1823 = vrot.slane %v1822, 1
      %v1824 = vadd.f32 %v1822, %v1823
      %v1825 = vadd.f32 %v1483, %v1485
      %v1826 = vadd.f32 %v1825, %v1487
      %v1827 = vadd.f32 %v1826, %v1489
      %v1828 = vsel %vm451, %v1491, 0.0
      %v1829 = vadd.f32 %v1827, %v1828
      %v1830 = vrot.slane %v1829, 4
      %v1831 = vadd.f32 %v1829, %v1830
      %v1832 = vrot.slane %v1831, 2
      %v1833 = vadd.f32 %v1831, %v1832
      %v1834 = vrot.slane %v1833, 1
      %v1835 = vadd.f32 %v1833, %v1834
      %v1836 = vadd.f32 %v1484, %v1486
      %v1837 = vadd.f32 %v1836, %v1488
      %v1838 = vadd.f32 %v1837, %v1490
      %v1839 = vsel %vm451, %v1492, 0.0
      %v1840 = vadd.f32 %v1838, %v1839
      %v1841 = vrot.slane %v1840, 4
      %v1842 = vadd.f32 %v1840, %v1841
      %v1843 = vrot.slane %v1842, 2
      %v1844 = vadd.f32 %v1842, %v1843
      %v1845 = vrot.slane %v1844, 1
      %v1846 = vadd.f32 %v1844, %v1845
      %v1847 = vadd.f32 %v1493, %v1495
      %v1848 = vadd.f32 %v1847, %v1497
      %v1849 = vadd.f32 %v1848, %v1499
      %v1850 = vsel %vm451, %v1501, 0.0
      %v1851 = vadd.f32 %v1849, %v1850
      %v1852 = vrot.slane %v1851, 4
      %v1853 = vadd.f32 %v1851, %v1852
      %v1854 = vrot.slane %v1853, 2
      %v1855 = vadd.f32 %v1853, %v1854
      %v1856 = vrot.slane %v1855, 1
      %v1857 = vadd.f32 %v1855, %v1856
      %v1858 = vadd.f32 %v1494, %v1496
      %v1859 = vadd.f32 %v1858, %v1498
      %v1860 = vadd.f32 %v1859, %v1500
      %v1861 = vsel %vm451, %v1502, 0.0
      %v1862 = vadd.f32 %v1860, %v1861
      %v1863 = vrot.slane %v1862, 4
      %v1864 = vadd.f32 %v1862, %v1863
      %v1865 = vrot.slane %v1864, 2
      %v1866 = vadd.f32 %v1864, %v1865
      %v1867 = vrot.slane %v1866, 1
      %v1868 = vadd.f32 %v1866, %v1867
      %v1869 = vadd.f32 %v1503, %v1505
      %v1870 = vadd.f32 %v1869, %v1507
      %v1871 = vadd.f32 %v1870, %v1509
      %v1872 = vsel %vm451, %v1511, 0.0
      %v1873 = vadd.f32 %v1871, %v1872
      %v1874 = vrot.slane %v1873, 4
      %v1875 = vadd.f32 %v1873, %v1874
      %v1876 = vrot.slane %v1875, 2
      %v1877 = vadd.f32 %v1875, %v1876
      %v1878 = vrot.slane %v1877, 1
      %v1879 = vadd.f32 %v1877, %v1878
      %v1880 = vadd.f32 %v1504, %v1506
      %v1881 = vadd.f32 %v1880, %v1508
      %v1882 = vadd.f32 %v1881, %v1510
      %v1883 = vsel %vm451, %v1512, 0.0
      %v1884 = vadd.f32 %v1882, %v1883
      %v1885 = vrot.slane %v1884, 4
      %v1886 = vadd.f32 %v1884, %v1885
      %v1887 = vrot.slane %v1886, 2
      %v1888 = vadd.f32 %v1886, %v1887
      %v1889 = vrot.slane %v1888, 1
      %v1890 = vadd.f32 %v1888, %v1889
      %v1891 = vadd.f32 %v1513, %v1515
      %v1892 = vadd.f32 %v1891, %v1517
      %v1893 = vadd.f32 %v1892, %v1519
      %v1894 = vsel %vm451, %v1521, 0.0
      %v1895 = vadd.f32 %v1893, %v1894
      %v1896 = vrot.slane %v1895, 4
      %v1897 = vadd.f32 %v1895, %v1896
      %v1898 = vrot.slane %v1897, 2
      %v1899 = vadd.f32 %v1897, %v1898
      %v1900 = vrot.slane %v1899, 1
      %v1901 = vadd.f32 %v1899, %v1900
      %v1902 = vadd.f32 %v1514, %v1516
      %v1903 = vadd.f32 %v1902, %v1518
      %v1904 = vadd.f32 %v1903, %v1520
      %v1905 = vsel %vm451, %v1522, 0.0
      %v1906 = vadd.f32 %v1904, %v1905
      %v1907 = vrot.slane %v1906, 4
      %v1908 = vadd.f32 %v1906, %v1907
      %v1909 = vrot.slane %v1908, 2
      %v1910 = vadd.f32 %v1908, %v1909
      %v1911 = vrot.slane %v1910, 1
      %v1912 = vadd.f32 %v1910, %v1911
      %v1913 = vadd.f32 %v1523, %v1525
      %v1914 = vadd.f32 %v1913, %v1527
      %v1915 = vadd.f32 %v1914, %v1529
      %v1916 = vsel %vm451, %v1531, 0.0
      %v1917 = vadd.f32 %v1915, %v1916
      %v1918 = vrot.slane %v1917, 4
      %v1919 = vadd.f32 %v1917, %v1918
      %v1920 = vrot.slane %v1919, 2
      %v1921 = vadd.f32 %v1919, %v1920
      %v1922 = vrot.slane %v1921, 1
      %v1923 = vadd.f32 %v1921, %v1922
      %v1924 = vadd.f32 %v1524, %v1526
      %v1925 = vadd.f32 %v1924, %v1528
      %v1926 = vadd.f32 %v1925, %v1530
      %v1927 = vsel %vm451, %v1532, 0.0
      %v1928 = vadd.f32 %v1926, %v1927
      %v1929 = vrot.slane %v1928, 4
      %v1930 = vadd.f32 %v1928, %v1929
      %v1931 = vrot.slane %v1930, 2
      %v1932 = vadd.f32 %v1930, %v1931
      %v1933 = vrot.slane %v1932, 1
      %v1934 = vadd.f32 %v1932, %v1933
      %v1935 = vadd.f32 %v1533, %v1535
      %v1936 = vadd.f32 %v1935, %v1537
      %v1937 = vadd.f32 %v1936, %v1539
      %v1938 = vsel %vm451, %v1541, 0.0
      %v1939 = vadd.f32 %v1937, %v1938
      %v1940 = vrot.slane %v1939, 4
      %v1941 = vadd.f32 %v1939, %v1940
      %v1942 = vrot.slane %v1941, 2
      %v1943 = vadd.f32 %v1941, %v1942
      %v1944 = vrot.slane %v1943, 1
      %v1945 = vadd.f32 %v1943, %v1944
      %v1946 = vadd.f32 %v1534, %v1536
      %v1947 = vadd.f32 %v1946, %v1538
      %v1948 = vadd.f32 %v1947, %v1540
      %v1949 = vsel %vm451, %v1542, 0.0
      %v1950 = vadd.f32 %v1948, %v1949
      %v1951 = vrot.slane %v1950, 4
      %v1952 = vadd.f32 %v1950, %v1951
      %v1953 = vrot.slane %v1952, 2
      %v1954 = vadd.f32 %v1952, %v1953
      %v1955 = vrot.slane %v1954, 1
      %v1956 = vadd.f32 %v1954, %v1955
      %v1957 = vadd.f32 %v1543, %v1545
      %v1958 = vadd.f32 %v1957, %v1547
      %v1959 = vadd.f32 %v1958, %v1549
      %v1960 = vsel %vm451, %v1551, 0.0
      %v1961 = vadd.f32 %v1959, %v1960
      %v1962 = vrot.slane %v1961, 4
      %v1963 = vadd.f32 %v1961, %v1962
      %v1964 = vrot.slane %v1963, 2
      %v1965 = vadd.f32 %v1963, %v1964
      %v1966 = vrot.slane %v1965, 1
      %v1967 = vadd.f32 %v1965, %v1966
      %v1968 = vadd.f32 %v1544, %v1546
      %v1969 = vadd.f32 %v1968, %v1548
      %v1970 = vadd.f32 %v1969, %v1550
      %v1971 = vsel %vm451, %v1552, 0.0
      %v1972 = vadd.f32 %v1970, %v1971
      %v1973 = vrot.slane %v1972, 4
      %v1974 = vadd.f32 %v1972, %v1973
      %v1975 = vrot.slane %v1974, 2
      %v1976 = vadd.f32 %v1974, %v1975
      %v1977 = vrot.slane %v1976, 1
      %v1978 = vadd.f32 %v1976, %v1977
      %v1979 = vadd.f32 %v1553, %v1555
      %v1980 = vadd.f32 %v1979, %v1557
      %v1981 = vadd.f32 %v1980, %v1559
      %v1982 = vsel %vm451, %v1561, 0.0
      %v1983 = vadd.f32 %v1981, %v1982
      %v1984 = vrot.slane %v1983, 4
      %v1985 = vadd.f32 %v1983, %v1984
      %v1986 = vrot.slane %v1985, 2
      %v1987 = vadd.f32 %v1985, %v1986
      %v1988 = vrot.slane %v1987, 1
      %v1989 = vadd.f32 %v1987, %v1988
      %v1990 = vadd.f32 %v1554, %v1556
      %v1991 = vadd.f32 %v1990, %v1558
      %v1992 = vadd.f32 %v1991, %v1560
      %v1993 = vsel %vm451, %v1562, 0.0
      %v1994 = vadd.f32 %v1992, %v1993
      %v1995 = vrot.slane %v1994, 4
      %v1996 = vadd.f32 %v1994, %v1995
      %v1997 = vrot.slane %v1996, 2
      %v1998 = vadd.f32 %v1996, %v1997
      %v1999 = vrot.slane %v1998, 1
      %v2000 = vadd.f32 %v1998, %v1999
      %v2001 = vadd.f32 %v1563, %v1565
      %v2002 = vadd.f32 %v2001, %v1567
      %v2003 = vadd.f32 %v2002, %v1569
      %v2004 = vsel %vm451, %v1571, 0.0
      %v2005 = vadd.f32 %v2003, %v2004
      %v2006 = vrot.slane %v2005, 4
      %v2007 = vadd.f32 %v2005, %v2006
      %v2008 = vrot.slane %v2007, 2
      %v2009 = vadd.f32 %v2007, %v2008
      %v2010 = vrot.slane %v2009, 1
      %v2011 = vadd.f32 %v2009, %v2010
      %v2012 = vadd.f32 %v1564, %v1566
      %v2013 = vadd.f32 %v2012, %v1568
      %v2014 = vadd.f32 %v2013, %v1570
      %v2015 = vsel %vm451, %v1572, 0.0
      %v2016 = vadd.f32 %v2014, %v2015
      %v2017 = vrot.slane %v2016, 4
      %v2018 = vadd.f32 %v2016, %v2017
      %v2019 = vrot.slane %v2018, 2
      %v2020 = vadd.f32 %v2018, %v2019
      %v2021 = vrot.slane %v2020, 1
      %v2022 = vadd.f32 %v2020, %v2021
      %v2023 = vadd.f32 %v1573, %v1575
      %v2024 = vadd.f32 %v2023, %v1577
      %v2025 = vadd.f32 %v2024, %v1579
      %v2026 = vsel %vm451, %v1581, 0.0
      %v2027 = vadd.f32 %v2025, %v2026
      %v2028 = vrot.slane %v2027, 4
      %v2029 = vadd.f32 %v2027, %v2028
      %v2030 = vrot.slane %v2029, 2
      %v2031 = vadd.f32 %v2029, %v2030
      %v2032 = vrot.slane %v2031, 1
      %v2033 = vadd.f32 %v2031, %v2032
      %v2034 = vadd.f32 %v1574, %v1576
      %v2035 = vadd.f32 %v2034, %v1578
      %v2036 = vadd.f32 %v2035, %v1580
      %v2037 = vsel %vm451, %v1582, 0.0
      %v2038 = vadd.f32 %v2036, %v2037
      %v2039 = vrot.slane %v2038, 4
      %v2040 = vadd.f32 %v2038, %v2039
      %v2041 = vrot.slane %v2040, 2
      %v2042 = vadd.f32 %v2040, %v2041
      %v2043 = vrot.slane %v2042, 1
      %v2044 = vadd.f32 %v2042, %v2043
      %v2045 = vadd.f32 %v1583, %v1585
      %v2046 = vadd.f32 %v2045, %v1587
      %v2047 = vadd.f32 %v2046, %v1589
      %v2048 = vsel %vm451, %v1591, 0.0
      %v2049 = vadd.f32 %v2047, %v2048
      %v2050 = vrot.slane %v2049, 4
      %v2051 = vadd.f32 %v2049, %v2050
      %v2052 = vrot.slane %v2051, 2
      %v2053 = vadd.f32 %v2051, %v2052
      %v2054 = vrot.slane %v2053, 1
      %v2055 = vadd.f32 %v2053, %v2054
      %v2056 = vadd.f32 %v1584, %v1586
      %v2057 = vadd.f32 %v2056, %v1588
      %v2058 = vadd.f32 %v2057, %v1590
      %v2059 = vsel %vm451, %v1592, 0.0
      %v2060 = vadd.f32 %v2058, %v2059
      %v2061 = vrot.slane %v2060, 4
      %v2062 = vadd.f32 %v2060, %v2061
      %v2063 = vrot.slane %v2062, 2
      %v2064 = vadd.f32 %v2062, %v2063
      %v2065 = vrot.slane %v2064, 1
      %v2066 = vadd.f32 %v2064, %v2065
      %v2067 = vadd.f32 %v1593, %v1595
      %v2068 = vadd.f32 %v2067, %v1597
      %v2069 = vadd.f32 %v2068, %v1599
      %v2070 = vsel %vm451, %v1601, 0.0
      %v2071 = vadd.f32 %v2069, %v2070
      %v2072 = vrot.slane %v2071, 4
      %v2073 = vadd.f32 %v2071, %v2072
      %v2074 = vrot.slane %v2073, 2
      %v2075 = vadd.f32 %v2073, %v2074
      %v2076 = vrot.slane %v2075, 1
      %v2077 = vadd.f32 %v2075, %v2076
      %v2078 = vadd.f32 %v1594, %v1596
      %v2079 = vadd.f32 %v2078, %v1598
      %v2080 = vadd.f32 %v2079, %v1600
      %v2081 = vsel %vm451, %v1602, 0.0
      %v2082 = vadd.f32 %v2080, %v2081
      %v2083 = vrot.slane %v2082, 4
      %v2084 = vadd.f32 %v2082, %v2083
      %v2085 = vrot.slane %v2084, 2
      %v2086 = vadd.f32 %v2084, %v2085
      %v2087 = vrot.slane %v2086, 1
      %v2088 = vadd.f32 %v2086, %v2087
      %v2089 = vadd.f32 %v1603, %v1605
      %v2090 = vadd.f32 %v2089, %v1607
      %v2091 = vadd.f32 %v2090, %v1609
      %v2092 = vsel %vm451, %v1611, 0.0
      %v2093 = vadd.f32 %v2091, %v2092
      %v2094 = vrot.slane %v2093, 4
      %v2095 = vadd.f32 %v2093, %v2094
      %v2096 = vrot.slane %v2095, 2
      %v2097 = vadd.f32 %v2095, %v2096
      %v2098 = vrot.slane %v2097, 1
      %v2099 = vadd.f32 %v2097, %v2098
      %v2100 = vadd.f32 %v1604, %v1606
      %v2101 = vadd.f32 %v2100, %v1608
      %v2102 = vadd.f32 %v2101, %v1610
      %v2103 = vsel %vm451, %v1612, 0.0
      %v2104 = vadd.f32 %v2102, %v2103
      %v2105 = vrot.slane %v2104, 4
      %v2106 = vadd.f32 %v2104, %v2105
      %v2107 = vrot.slane %v2106, 2
      %v2108 = vadd.f32 %v2106, %v2107
      %v2109 = vrot.slane %v2108, 1
      %v2110 = vadd.f32 %v2108, %v2109
      %v2111 = vadd.f32 %v1613, %v1615
      %v2112 = vadd.f32 %v2111, %v1617
      %v2113 = vadd.f32 %v2112, %v1619
      %v2114 = vsel %vm451, %v1621, 0.0
      %v2115 = vadd.f32 %v2113, %v2114
      %v2116 = vrot.slane %v2115, 4
      %v2117 = vadd.f32 %v2115, %v2116
      %v2118 = vrot.slane %v2117, 2
      %v2119 = vadd.f32 %v2117, %v2118
      %v2120 = vrot.slane %v2119, 1
      %v2121 = vadd.f32 %v2119, %v2120
      %v2122 = vadd.f32 %v1614, %v1616
      %v2123 = vadd.f32 %v2122, %v1618
      %v2124 = vadd.f32 %v2123, %v1620
      %v2125 = vsel %vm451, %v1622, 0.0
      %v2126 = vadd.f32 %v2124, %v2125
      %v2127 = vrot.slane %v2126, 4
      %v2128 = vadd.f32 %v2126, %v2127
      %v2129 = vrot.slane %v2128, 2
      %v2130 = vadd.f32 %v2128, %v2129
      %v2131 = vrot.slane %v2130, 1
      %v2132 = vadd.f32 %v2130, %v2131
      %v2133 = vadd.f32 %v1623, %v1625
      %v2134 = vadd.f32 %v2133, %v1627
      %v2135 = vadd.f32 %v2134, %v1629
      %v2136 = vsel %vm451, %v1631, 0.0
      %v2137 = vadd.f32 %v2135, %v2136
      %v2138 = vrot.slane %v2137, 4
      %v2139 = vadd.f32 %v2137, %v2138
      %v2140 = vrot.slane %v2139, 2
      %v2141 = vadd.f32 %v2139, %v2140
      %v2142 = vrot.slane %v2141, 1
      %v2143 = vadd.f32 %v2141, %v2142
      %v2144 = vadd.f32 %v1624, %v1626
      %v2145 = vadd.f32 %v2144, %v1628
      %v2146 = vadd.f32 %v2145, %v1630
      %v2147 = vsel %vm451, %v1632, 0.0
      %v2148 = vadd.f32 %v2146, %v2147
      %v2149 = vrot.slane %v2148, 4
      %v2150 = vadd.f32 %v2148, %v2149
      %v2151 = vrot.slane %v2150, 2
      %v2152 = vadd.f32 %v2150, %v2151
      %v2153 = vrot.slane %v2152, 1
      %v2154 = vadd.f32 %v2152, %v2153
      %v2155 = vadd.f32 %v1633, %v1635
      %v2156 = vadd.f32 %v2155, %v1637
      %v2157 = vadd.f32 %v2156, %v1639
      %v2158 = vsel %vm451, %v1641, 0.0
      %v2159 = vadd.f32 %v2157, %v2158
      %v2160 = vrot.slane %v2159, 4
      %v2161 = vadd.f32 %v2159, %v2160
      %v2162 = vrot.slane %v2161, 2
      %v2163 = vadd.f32 %v2161, %v2162
      %v2164 = vrot.slane %v2163, 1
      %v2165 = vadd.f32 %v2163, %v2164
      %v2166 = vadd.f32 %v1634, %v1636
      %v2167 = vadd.f32 %v2166, %v1638
      %v2168 = vadd.f32 %v2167, %v1640
      %v2169 = vsel %vm451, %v1642, 0.0
      %v2170 = vadd.f32 %v2168, %v2169
      %v2171 = vrot.slane %v2170, 4
      %v2172 = vadd.f32 %v2170, %v2171
      %v2173 = vrot.slane %v2172, 2
      %v2174 = vadd.f32 %v2172, %v2173
      %v2175 = vrot.slane %v2174, 1
      %v2176 = vadd.f32 %v2174, %v2175
      %v2177 = vadd.f32 %v1643, %v1645
      %v2178 = vadd.f32 %v2177, %v1647
      %v2179 = vadd.f32 %v2178, %v1649
      %v2180 = vsel %vm451, %v1651, 0.0
      %v2181 = vadd.f32 %v2179, %v2180
      %v2182 = vrot.slane %v2181, 4
      %v2183 = vadd.f32 %v2181, %v2182
      %v2184 = vrot.slane %v2183, 2
      %v2185 = vadd.f32 %v2183, %v2184
      %v2186 = vrot.slane %v2185, 1
      %v2187 = vadd.f32 %v2185, %v2186
      %v2188 = vadd.f32 %v1644, %v1646
      %v2189 = vadd.f32 %v2188, %v1648
      %v2190 = vadd.f32 %v2189, %v1650
      %v2191 = vsel %vm451, %v1652, 0.0
      %v2192 = vadd.f32 %v2190, %v2191
      %v2193 = vrot.slane %v2192, 4
      %v2194 = vadd.f32 %v2192, %v2193
      %v2195 = vrot.slane %v2194, 2
      %v2196 = vadd.f32 %v2194, %v2195
      %v2197 = vrot.slane %v2196, 1
      %v2198 = vadd.f32 %v2196, %v2197
      %v2199 = vadd.f32 %v1653, %v1655
      %v2200 = vadd.f32 %v2199, %v1657
      %v2201 = vadd.f32 %v2200, %v1659
      %v2202 = vsel %vm451, %v1661, 0.0
      %v2203 = vadd.f32 %v2201, %v2202
      %v2204 = vrot.slane %v2203, 4
      %v2205 = vadd.f32 %v2203, %v2204
      %v2206 = vrot.slane %v2205, 2
      %v2207 = vadd.f32 %v2205, %v2206
      %v2208 = vrot.slane %v2207, 1
      %v2209 = vadd.f32 %v2207, %v2208
      %v2210 = vadd.f32 %v1654, %v1656
      %v2211 = vadd.f32 %v2210, %v1658
      %v2212 = vadd.f32 %v2211, %v1660
      %v2213 = vsel %vm451, %v1662, 0.0
      %v2214 = vadd.f32 %v2212, %v2213
      %v2215 = vrot.slane %v2214, 4
      %v2216 = vadd.f32 %v2214, %v2215
      %v2217 = vrot.slane %v2216, 2
      %v2218 = vadd.f32 %v2216, %v2217
      %v2219 = vrot.slane %v2218, 1
      %v2220 = vadd.f32 %v2218, %v2219
      %v2221 = vadd.f32 %v1663, %v1665
      %v2222 = vadd.f32 %v2221, %v1667
      %v2223 = vadd.f32 %v2222, %v1669
      %v2224 = vsel %vm451, %v1671, 0.0
      %v2225 = vadd.f32 %v2223, %v2224
      %v2226 = vrot.slane %v2225, 4
      %v2227 = vadd.f32 %v2225, %v2226
      %v2228 = vrot.slane %v2227, 2
      %v2229 = vadd.f32 %v2227, %v2228
      %v2230 = vrot.slane %v2229, 1
      %v2231 = vadd.f32 %v2229, %v2230
      %v2232 = vadd.f32 %v1664, %v1666
      %v2233 = vadd.f32 %v2232, %v1668
      %v2234 = vadd.f32 %v2233, %v1670
      %v2235 = vsel %vm451, %v1672, 0.0
      %v2236 = vadd.f32 %v2234, %v2235
      %v2237 = vrot.slane %v2236, 4
      %v2238 = vadd.f32 %v2236, %v2237
      %v2239 = vrot.slane %v2238, 2
      %v2240 = vadd.f32 %v2238, %v2239
      %v2241 = vrot.slane %v2240, 1
      %v2242 = vadd.f32 %v2240, %v2241
      %v2243 = vadd.f32 %v1673, %v1675
      %v2244 = vadd.f32 %v2243, %v1677
      %v2245 = vadd.f32 %v2244, %v1679
      %v2246 = vsel %vm451, %v1681, 0.0
      %v2247 = vadd.f32 %v2245, %v2246
      %v2248 = vrot.slane %v2247, 4
      %v2249 = vadd.f32 %v2247, %v2248
      %v2250 = vrot.slane %v2249, 2
      %v2251 = vadd.f32 %v2249, %v2250
      %v2252 = vrot.slane %v2251, 1
      %v2253 = vadd.f32 %v2251, %v2252
      %v2254 = vadd.f32 %v1674, %v1676
      %v2255 = vadd.f32 %v2254, %v1678
      %v2256 = vadd.f32 %v2255, %v1680
      %v2257 = vsel %vm451, %v1682, 0.0
      %v2258 = vadd.f32 %v2256, %v2257
      %v2259 = vrot.slane %v2258, 4
      %v2260 = vadd.f32 %v2258, %v2259
      %v2261 = vrot.slane %v2260, 2
      %v2262 = vadd.f32 %v2260, %v2261
      %v2263 = vrot.slane %v2262, 1
      %v2264 = vadd.f32 %v2262, %v2263
      %v2265 = vadd.f32 %v1683, %v1685
      %v2266 = vadd.f32 %v2265, %v1687
      %v2267 = vadd.f32 %v2266, %v1689
      %v2268 = vsel %vm451, %v1691, 0.0
      %v2269 = vadd.f32 %v2267, %v2268
      %v2270 = vrot.slane %v2269, 4
      %v2271 = vadd.f32 %v2269, %v2270
      %v2272 = vrot.slane %v2271, 2
      %v2273 = vadd.f32 %v2271, %v2272
      %v2274 = vrot.slane %v2273, 1
      %v2275 = vadd.f32 %v2273, %v2274
      %v2276 = vadd.f32 %v1684, %v1686
      %v2277 = vadd.f32 %v2276, %v1688
      %v2278 = vadd.f32 %v2277, %v1690
      %v2279 = vsel %vm451, %v1692, 0.0
      %v2280 = vadd.f32 %v2278, %v2279
      %v2281 = vrot.slane %v2280, 4
      %v2282 = vadd.f32 %v2280, %v2281
      %v2283 = vrot.slane %v2282, 2
      %v2284 = vadd.f32 %v2282, %v2283
      %v2285 = vrot.slane %v2284, 1
      %v2286 = vadd.f32 %v2284, %v2285
      %v2287 = vadd.f32 %v1693, %v1695
      %v2288 = vadd.f32 %v2287, %v1697
      %v2289 = vadd.f32 %v2288, %v1699
      %v2290 = vsel %vm451, %v1701, 0.0
      %v2291 = vadd.f32 %v2289, %v2290
      %v2292 = vrot.slane %v2291, 4
      %v2293 = vadd.f32 %v2291, %v2292
      %v2294 = vrot.slane %v2293, 2
      %v2295 = vadd.f32 %v2293, %v2294
      %v2296 = vrot.slane %v2295, 1
      %v2297 = vadd.f32 %v2295, %v2296
      %v2298 = vadd.f32 %v1694, %v1696
      %v2299 = vadd.f32 %v2298, %v1698
      %v2300 = vadd.f32 %v2299, %v1700
      %v2301 = vsel %vm451, %v1702, 0.0
      %v2302 = vadd.f32 %v2300, %v2301
      %v2303 = vrot.slane %v2302, 4
      %v2304 = vadd.f32 %v2302, %v2303
      %v2305 = vrot.slane %v2304, 2
      %v2306 = vadd.f32 %v2304, %v2305
      %v2307 = vrot.slane %v2306, 1
      %v2308 = vadd.f32 %v2306, %v2307
      %v2309 = vadd.f32 %v1703, %v1705
      %v2310 = vadd.f32 %v2309, %v1707
      %v2311 = vadd.f32 %v2310, %v1709
      %v2312 = vsel %vm451, %v1711, 0.0
      %v2313 = vadd.f32 %v2311, %v2312
      %v2314 = vrot.slane %v2313, 4
      %v2315 = vadd.f32 %v2313, %v2314
      %v2316 = vrot.slane %v2315, 2
      %v2317 = vadd.f32 %v2315, %v2316
      %v2318 = vrot.slane %v2317, 1
      %v2319 = vadd.f32 %v2317, %v2318
      %v2320 = vadd.f32 %v1704, %v1706
      %v2321 = vadd.f32 %v2320, %v1708
      %v2322 = vadd.f32 %v2321, %v1710
      %v2323 = vsel %vm451, %v1712, 0.0
      %v2324 = vadd.f32 %v2322, %v2323
      %v2325 = vrot.slane %v2324, 4
      %v2326 = vadd.f32 %v2324, %v2325
      %v2327 = vrot.slane %v2326, 2
      %v2328 = vadd.f32 %v2326, %v2327
      %v2329 = vrot.slane %v2328, 1
      %v2330 = vadd.f32 %v2328, %v2329
      %v2331 = vadd.f32 %v1713, %v1715
      %v2332 = vadd.f32 %v2331, %v1717
      %v2333 = vadd.f32 %v2332, %v1719
      %v2334 = vsel %vm451, %v1721, 0.0
      %v2335 = vadd.f32 %v2333, %v2334
      %v2336 = vrot.slane %v2335, 4
      %v2337 = vadd.f32 %v2335, %v2336
      %v2338 = vrot.slane %v2337, 2
      %v2339 = vadd.f32 %v2337, %v2338
      %v2340 = vrot.slane %v2339, 1
      %v2341 = vadd.f32 %v2339, %v2340
      %v2342 = vadd.f32 %v1714, %v1716
      %v2343 = vadd.f32 %v2342, %v1718
      %v2344 = vadd.f32 %v2343, %v1720
      %v2345 = vsel %vm451, %v1722, 0.0
      %v2346 = vadd.f32 %v2344, %v2345
      %v2347 = vrot.slane %v2346, 4
      %v2348 = vadd.f32 %v2346, %v2347
      %v2349 = vrot.slane %v2348, 2
      %v2350 = vadd.f32 %v2348, %v2349
      %v2351 = vrot.slane %v2350, 1
      %v2352 = vadd.f32 %v2350, %v2351
      %v2353 = vadd.f32 %v1723, %v1725
      %v2354 = vadd.f32 %v2353, %v1727
      %v2355 = vadd.f32 %v2354, %v1729
      %v2356 = vsel %vm451, %v1731, 0.0
      %v2357 = vadd.f32 %v2355, %v2356
      %v2358 = vrot.slane %v2357, 4
      %v2359 = vadd.f32 %v2357, %v2358
      %v2360 = vrot.slane %v2359, 2
      %v2361 = vadd.f32 %v2359, %v2360
      %v2362 = vrot.slane %v2361, 1
      %v2363 = vadd.f32 %v2361, %v2362
      %v2364 = vadd.f32 %v1724, %v1726
      %v2365 = vadd.f32 %v2364, %v1728
      %v2366 = vadd.f32 %v2365, %v1730
      %v2367 = vsel %vm451, %v1732, 0.0
      %v2368 = vadd.f32 %v2366, %v2367
      %v2369 = vrot.slane %v2368, 4
      %v2370 = vadd.f32 %v2368, %v2369
      %v2371 = vrot.slane %v2370, 2
      %v2372 = vadd.f32 %v2370, %v2371
      %v2373 = vrot.slane %v2372, 1
      %v2374 = vadd.f32 %v2372, %v2373
      %v2375 = vadd.f32 %v1733, %v1735
      %v2376 = vadd.f32 %v2375, %v1737
      %v2377 = vadd.f32 %v2376, %v1739
      %v2378 = vsel %vm451, %v1741, 0.0
      %v2379 = vadd.f32 %v2377, %v2378
      %v2380 = vrot.slane %v2379, 4
      %v2381 = vadd.f32 %v2379, %v2380
      %v2382 = vrot.slane %v2381, 2
      %v2383 = vadd.f32 %v2381, %v2382
      %v2384 = vrot.slane %v2383, 1
      %v2385 = vadd.f32 %v2383, %v2384
      %v2386 = vadd.f32 %v1734, %v1736
      %v2387 = vadd.f32 %v2386, %v1738
      %v2388 = vadd.f32 %v2387, %v1740
      %v2389 = vsel %vm451, %v1742, 0.0
      %v2390 = vadd.f32 %v2388, %v2389
      %v2391 = vrot.slane %v2390, 4
      %v2392 = vadd.f32 %v2390, %v2391
      %v2393 = vrot.slane %v2392, 2
      %v2394 = vadd.f32 %v2392, %v2393
      %v2395 = vrot.slane %v2394, 1
      %v2396 = vadd.f32 %v2394, %v2395
      %v2397 = vadd.f32 %v1743, %v1745
      %v2398 = vadd.f32 %v2397, %v1747
      %v2399 = vadd.f32 %v2398, %v1749
      %v2400 = vsel %vm451, %v1751, 0.0
      %v2401 = vadd.f32 %v2399, %v2400
      %v2402 = vrot.slane %v2401, 4
      %v2403 = vadd.f32 %v2401, %v2402
      %v2404 = vrot.slane %v2403, 2
      %v2405 = vadd.f32 %v2403, %v2404
      %v2406 = vrot.slane %v2405, 1
      %v2407 = vadd.f32 %v2405, %v2406
      %v2408 = vadd.f32 %v1744, %v1746
      %v2409 = vadd.f32 %v2408, %v1748
      %v2410 = vadd.f32 %v2409, %v1750
      %v2411 = vsel %vm451, %v1752, 0.0
      %v2412 = vadd.f32 %v2410, %v2411
      %v2413 = vrot.slane %v2412, 4
      %v2414 = vadd.f32 %v2412, %v2413
      %v2415 = vrot.slane %v2414, 2
      %v2416 = vadd.f32 %v2414, %v2415
      %v2417 = vrot.slane %v2416, 1
      %v2418 = vadd.f32 %v2416, %v2417
      %v2419 = vadd.f32 %v1753, %v1755
      %v2420 = vadd.f32 %v2419, %v1757
      %v2421 = vadd.f32 %v2420, %v1759
      %v2422 = vsel %vm451, %v1761, 0.0
      %v2423 = vadd.f32 %v2421, %v2422
      %v2424 = vrot.slane %v2423, 4
      %v2425 = vadd.f32 %v2423, %v2424
      %v2426 = vrot.slane %v2425, 2
      %v2427 = vadd.f32 %v2425, %v2426
      %v2428 = vrot.slane %v2427, 1
      %v2429 = vadd.f32 %v2427, %v2428
      %v2430 = vadd.f32 %v1754, %v1756
      %v2431 = vadd.f32 %v2430, %v1758
      %v2432 = vadd.f32 %v2431, %v1760
      %v2433 = vsel %vm451, %v1762, 0.0
      %v2434 = vadd.f32 %v2432, %v2433
      %v2435 = vrot.slane %v2434, 4
      %v2436 = vadd.f32 %v2434, %v2435
      %v2437 = vrot.slane %v2436, 2
      %v2438 = vadd.f32 %v2436, %v2437
      %v2439 = vrot.slane %v2438, 1
      %v2440 = vadd.f32 %v2438, %v2439
      %v2441 = vadd.f32 %v1763, %v1765
      %v2442 = vadd.f32 %v2441, %v1767
      %v2443 = vadd.f32 %v2442, %v1769
      %v2444 = vsel %vm451, %v1771, 0.0
      %v2445 = vadd.f32 %v2443, %v2444
      %v2446 = vrot.slane %v2445, 4
      %v2447 = vadd.f32 %v2445, %v2446
      %v2448 = vrot.slane %v2447, 2
      %v2449 = vadd.f32 %v2447, %v2448
      %v2450 = vrot.slane %v2449, 1
      %v2451 = vadd.f32 %v2449, %v2450
      %v2452 = vadd.f32 %v1764, %v1766
      %v2453 = vadd.f32 %v2452, %v1768
      %v2454 = vadd.f32 %v2453, %v1770
      %v2455 = vsel %vm451, %v1772, 0.0
      %v2456 = vadd.f32 %v2454, %v2455
      %v2457 = vrot.slane %v2456, 4
      %v2458 = vadd.f32 %v2456, %v2457
      %v2459 = vrot.slane %v2458, 2
      %v2460 = vadd.f32 %v2458, %v2459
      %v2461 = vrot.slane %v2460, 1
      %v2462 = vadd.f32 %v2460, %v2461
      %v2463 = vadd.f32 %v1773, %v1775
      %v2464 = vadd.f32 %v2463, %v1777
      %v2465 = vadd.f32 %v2464, %v1779
      %v2466 = vsel %vm451, %v1781, 0.0
      %v2467 = vadd.f32 %v2465, %v2466
      %v2468 = vrot.slane %v2467, 4
      %v2469 = vadd.f32 %v2467, %v2468
      %v2470 = vrot.slane %v2469, 2
      %v2471 = vadd.f32 %v2469, %v2470
      %v2472 = vrot.slane %v2471, 1
      %v2473 = vadd.f32 %v2471, %v2472
      %v2474 = vadd.f32 %v1774, %v1776
      %v2475 = vadd.f32 %v2474, %v1778
      %v2476 = vadd.f32 %v2475, %v1780
      %v2477 = vsel %vm451, %v1782, 0.0
      %v2478 = vadd.f32 %v2476, %v2477
      %v2479 = vrot.slane %v2478, 4
      %v2480 = vadd.f32 %v2478, %v2479
      %v2481 = vrot.slane %v2480, 2
      %v2482 = vadd.f32 %v2480, %v2481
      %v2483 = vrot.slane %v2482, 1
      %v2484 = vadd.f32 %v2482, %v2483
      %v2485 = vadd.f32 %v1783, %v1785
      %v2486 = vadd.f32 %v2485, %v1787
      %v2487 = vadd.f32 %v2486, %v1789
      %v2488 = vsel %vm451, %v1791, 0.0
      %v2489 = vadd.f32 %v2487, %v2488
      %v2490 = vrot.slane %v2489, 4
      %v2491 = vadd.f32 %v2489, %v2490
      %v2492 = vrot.slane %v2491, 2
      %v2493 = vadd.f32 %v2491, %v2492
      %v2494 = vrot.slane %v2493, 1
      %v2495 = vadd.f32 %v2493, %v2494
      %v2496 = vadd.f32 %v1784, %v1786
      %v2497 = vadd.f32 %v2496, %v1788
      %v2498 = vadd.f32 %v2497, %v1790
      %v2499 = vsel %vm451, %v1792, 0.0
      %v2500 = vadd.f32 %v2498, %v2499
      %v2501 = vrot.slane %v2500, 4
      %v2502 = vadd.f32 %v2500, %v2501
      %v2503 = vrot.slane %v2502, 2
      %v2504 = vadd.f32 %v2502, %v2503
      %v2505 = vrot.slane %v2504, 1
      %v2506 = vadd.f32 %v2504, %v2505
      %v2507 = vadd.f32 %v1793, %v1795
      %v2508 = vadd.f32 %v2507, %v1797
      %v2509 = vadd.f32 %v2508, %v1799
      %v2510 = vsel %vm451, %v1801, 0.0
      %v2511 = vadd.f32 %v2509, %v2510
      %v2512 = vrot.slane %v2511, 4
      %v2513 = vadd.f32 %v2511, %v2512
      %v2514 = vrot.slane %v2513, 2
      %v2515 = vadd.f32 %v2513, %v2514
      %v2516 = vrot.slane %v2515, 1
      %v2517 = vadd.f32 %v2515, %v2516
      %v2518 = vadd.f32 %v1794, %v1796
      %v2519 = vadd.f32 %v2518, %v1798
      %v2520 = vadd.f32 %v2519, %v1800
      %v2521 = vsel %vm451, %v1802, 0.0
      %v2522 = vadd.f32 %v2520, %v2521
      %v2523 = vrot.slane %v2522, 4
      %v2524 = vadd.f32 %v2522, %v2523
      %v2525 = vrot.slane %v2524, 2
      %v2526 = vadd.f32 %v2524, %v2525
      %v2527 = vrot.slane %v2526, 1
      %v2528 = vadd.f32 %v2526, %v2527
      %v2529 = vld [vmem:[%s10] sm:$0x3]
      %vm2530 = vcmp.gt.f32.partialorder %v2529, 0.5
      %v2541 = vrot.slane %v671, 1
      %v2542 = vrot.slane %v673, 1
      %v2543 = vrot.slane %v671, 2
      %v2544 = vrot.slane %v673, 2
      %v2545 = vrot.slane %v671, 3
      %v2546 = vrot.slane %v673, 3
      %v2547 = vrot.slane %v671, 4
      %v2548 = vrot.slane %v673, 4
      %v2549 = vrot.slane %v671, 5
      %v2550 = vrot.slane %v673, 5
      %v2551 = vrot.slane %v671, 6
      %v2552 = vrot.slane %v673, 6
      %v2553 = vrot.slane %v671, 7
      %v2554 = vrot.slane %v673, 7
      %v2555 = vrot.slane %v677, 1
      %v2556 = vrot.slane %v679, 1
      %v2557 = vrot.slane %v677, 2
      %v2558 = vrot.slane %v679, 2
      %v2559 = vrot.slane %v677, 3
      %v2560 = vrot.slane %v679, 3
      %v2561 = vrot.slane %v677, 4
      %v2562 = vrot.slane %v679, 4
      %v2563 = vrot.slane %v677, 5
      %v2564 = vrot.slane %v679, 5
      %v2565 = vrot.slane %v677, 6
      %v2566 = vrot.slane %v679, 6
      %v2567 = vrot.slane %v677, 7
      %v2568 = vrot.slane %v679, 7
      %v2569 = vrot.slane %v683, 1
      %v2570 = vrot.slane %v685, 1
      %v2571 = vrot.slane %v683, 2
      %v2572 = vrot.slane %v685, 2
      %v2573 = vrot.slane %v683, 3
      %v2574 = vrot.slane %v685, 3
      %v2575 = vrot.slane %v683, 4
      %v2576 = vrot.slane %v685, 4
      %v2577 = vrot.slane %v683, 5
      %v2578 = vrot.slane %v685, 5
      %v2579 = vrot.slane %v683, 6
      %v2580 = vrot.slane %v685, 6
      %v2581 = vrot.slane %v683, 7
      %v2582 = vrot.slane %v685, 7
      %v2583 = vrot.slane %v689, 1
      %v2584 = vrot.slane %v691, 1
      %v2585 = vrot.slane %v689, 2
      %v2586 = vrot.slane %v691, 2
      %v2587 = vrot.slane %v689, 3
      %v2588 = vrot.slane %v691, 3
      %v2589 = vrot.slane %v689, 4
      %v2590 = vrot.slane %v691, 4
      %v2591 = vrot.slane %v689, 5
      %v2592 = vrot.slane %v691, 5
      %v2593 = vrot.slane %v689, 6
      %v2594 = vrot.slane %v691, 6
      %v2595 = vrot.slane %v689, 7
      %v2596 = vrot.slane %v691, 7
      %vm2663 = vcmp.gt.f32.partialorder %v1813, %v671
      %vm2664 = vcmp.gt.f32.partialorder %v1824, %v673
      %vm2665 = vcmp.gt.f32.partialorder %v1835, %v2541
      %vm2666 = vcmp.gt.f32.partialorder %v1846, %v2542
      %vm2667 = vcmp.gt.f32.partialorder %v1857, %v2543
      %vm2668 = vcmp.gt.f32.partialorder %v1868, %v2544
      %vm2669 = vcmp.gt.f32.partialorder %v1879, %v2545
      %vm2670 = vcmp.gt.f32.partialorder %v1890, %v2546
      %vm2671 = vcmp.gt.f32.partialorder %v1901, %v2547
      %vm2672 = vcmp.gt.f32.partialorder %v1912, %v2548
      %vm2673 = vcmp.gt.f32.partialorder %v1923, %v2549
      %vm2674 = vcmp.gt.f32.partialorder %v1934, %v2550
      %vm2675 = vcmp.gt.f32.partialorder %v1945, %v2551
      %vm2676 = vcmp.gt.f32.partialorder %v1956, %v2552
      %vm2677 = vcmp.gt.f32.partialorder %v1967, %v2553
      %vm2678 = vcmp.gt.f32.partialorder %v1978, %v2554
      %vm2679 = vcmp.gt.f32.partialorder %v1989, %v677
      %vm2680 = vcmp.gt.f32.partialorder %v2000, %v679
      %vm2681 = vcmp.gt.f32.partialorder %v2011, %v2555
      %vm2682 = vcmp.gt.f32.partialorder %v2022, %v2556
      %vm2683 = vcmp.gt.f32.partialorder %v2033, %v2557
      %vm2684 = vcmp.gt.f32.partialorder %v2044, %v2558
      %vm2685 = vcmp.gt.f32.partialorder %v2055, %v2559
      %vm2686 = vcmp.gt.f32.partialorder %v2066, %v2560
      %vm2687 = vcmp.gt.f32.partialorder %v2077, %v2561
      %vm2688 = vcmp.gt.f32.partialorder %v2088, %v2562
      %vm2689 = vcmp.gt.f32.partialorder %v2099, %v2563
      %vm2690 = vcmp.gt.f32.partialorder %v2110, %v2564
      %vm2691 = vcmp.gt.f32.partialorder %v2121, %v2565
      %vm2692 = vcmp.gt.f32.partialorder %v2132, %v2566
      %vm2693 = vcmp.gt.f32.partialorder %v2143, %v2567
      %vm2694 = vcmp.gt.f32.partialorder %v2154, %v2568
      %vm2695 = vcmp.gt.f32.partialorder %v2165, %v683
      %vm2696 = vcmp.gt.f32.partialorder %v2176, %v685
      %vm2697 = vcmp.gt.f32.partialorder %v2187, %v2569
      %vm2698 = vcmp.gt.f32.partialorder %v2198, %v2570
      %vm2699 = vcmp.gt.f32.partialorder %v2209, %v2571
      %vm2700 = vcmp.gt.f32.partialorder %v2220, %v2572
      %vm2701 = vcmp.gt.f32.partialorder %v2231, %v2573
      %vm2702 = vcmp.gt.f32.partialorder %v2242, %v2574
      %vm2703 = vcmp.gt.f32.partialorder %v2253, %v2575
      %vm2704 = vcmp.gt.f32.partialorder %v2264, %v2576
      %vm2705 = vcmp.gt.f32.partialorder %v2275, %v2577
      %vm2706 = vcmp.gt.f32.partialorder %v2286, %v2578
      %vm2707 = vcmp.gt.f32.partialorder %v2297, %v2579
      %vm2708 = vcmp.gt.f32.partialorder %v2308, %v2580
      %vm2709 = vcmp.gt.f32.partialorder %v2319, %v2581
      %vm2710 = vcmp.gt.f32.partialorder %v2330, %v2582
      %vm2711 = vcmp.gt.f32.partialorder %v2341, %v689
      %vm2712 = vcmp.gt.f32.partialorder %v2352, %v691
      %vm2713 = vcmp.gt.f32.partialorder %v2363, %v2583
      %vm2714 = vcmp.gt.f32.partialorder %v2374, %v2584
      %vm2715 = vcmp.gt.f32.partialorder %v2385, %v2585
      %vm2716 = vcmp.gt.f32.partialorder %v2396, %v2586
      %vm2717 = vcmp.gt.f32.partialorder %v2407, %v2587
      %vm2718 = vcmp.gt.f32.partialorder %v2418, %v2588
      %vm2719 = vcmp.gt.f32.partialorder %v2429, %v2589
      %vm2720 = vcmp.gt.f32.partialorder %v2440, %v2590
      %vm2721 = vcmp.gt.f32.partialorder %v2451, %v2591
      %vm2722 = vcmp.gt.f32.partialorder %v2462, %v2592
      %vm2723 = vcmp.gt.f32.partialorder %v2473, %v2593
      %vm2724 = vcmp.gt.f32.partialorder %v2484, %v2594
      %vm2725 = vcmp.gt.f32.partialorder %v2495, %v2595
      %vm2726 = vcmp.gt.f32.partialorder %v2506, %v2596
      %vm2727 = vcmp.gt.f32.partialorder %v2517, %v695
      %vm2728 = vcmp.gt.f32.partialorder %v2528, %v697
      %v2729 = vsel %vm2530, 1, 0
      %v2730 = vlaneseq
      %v2731 = vshrl.u32 %v2730, 7
      %v2732 = vsub.s32 0, %v2731
      %v2733 = vrot.slane %v2729, %v2732
      %v2734 = vlaneseq
      %v2735 = vshrl.u32 %v2734, 7
      %v2736 = vsub.s32 1, %v2735
      %v2737 = vrot.slane %v2729, %v2736
      %vm2738 = vcmp.eq.s32.totalorder %v2733, 1
      %vm2739 = vcmp.eq.s32.totalorder %v2737, 1
      %vm2740 = vmand %vm2663, %vm2738
      %vm2741 = vmand %vm2664, %vm2739
      %vm2742 = vmand %vm2665, %vm2738
      %vm2743 = vmand %vm2666, %vm2739
      %vm2744 = vmand %vm2667, %vm2738
      %vm2745 = vmand %vm2668, %vm2739
      %vm2746 = vmand %vm2669, %vm2738
      %vm2747 = vmand %vm2670, %vm2739
      %vm2748 = vmand %vm2671, %vm2738
      %vm2749 = vmand %vm2672, %vm2739
      %vm2750 = vmand %vm2673, %vm2738
      %vm2751 = vmand %vm2674, %vm2739
      %vm2752 = vmand %vm2675, %vm2738
      %vm2753 = vmand %vm2676, %vm2739
      %vm2754 = vmand %vm2677, %vm2738
      %vm2755 = vmand %vm2678, %vm2739
      %vm2756 = vmand %vm2679, %vm2738
      %vm2757 = vmand %vm2680, %vm2739
      %vm2758 = vmand %vm2681, %vm2738
      %vm2759 = vmand %vm2682, %vm2739
      %vm2760 = vmand %vm2683, %vm2738
      %vm2761 = vmand %vm2684, %vm2739
      %vm2762 = vmand %vm2685, %vm2738
      %vm2763 = vmand %vm2686, %vm2739
      %vm2764 = vmand %vm2687, %vm2738
      %vm2765 = vmand %vm2688, %vm2739
      %vm2766 = vmand %vm2689, %vm2738
      %vm2767 = vmand %vm2690, %vm2739
      %vm2768 = vmand %vm2691, %vm2738
      %vm2769 = vmand %vm2692, %vm2739
      %vm2770 = vmand %vm2693, %vm2738
      %vm2771 = vmand %vm2694, %vm2739
      %vm2772 = vmand %vm2695, %vm2738
      %vm2773 = vmand %vm2696, %vm2739
      %vm2774 = vmand %vm2697, %vm2738
      %vm2775 = vmand %vm2698, %vm2739
      %vm2776 = vmand %vm2699, %vm2738
      %vm2777 = vmand %vm2700, %vm2739
      %vm2778 = vmand %vm2701, %vm2738
      %vm2779 = vmand %vm2702, %vm2739
      %vm2780 = vmand %vm2703, %vm2738
      %vm2781 = vmand %vm2704, %vm2739
      %vm2782 = vmand %vm2705, %vm2738
      %vm2783 = vmand %vm2706, %vm2739
      %vm2784 = vmand %vm2707, %vm2738
      %vm2785 = vmand %vm2708, %vm2739
      %vm2786 = vmand %vm2709, %vm2738
      %vm2787 = vmand %vm2710, %vm2739
      %vm2788 = vmand %vm2711, %vm2738
      %vm2789 = vmand %vm2712, %vm2739
      %vm2790 = vmand %vm2713, %vm2738
      %vm2791 = vmand %vm2714, %vm2739
      %vm2792 = vmand %vm2715, %vm2738
      %vm2793 = vmand %vm2716, %vm2739
      %vm2794 = vmand %vm2717, %vm2738
      %vm2795 = vmand %vm2718, %vm2739
      %vm2796 = vmand %vm2719, %vm2738
      %vm2797 = vmand %vm2720, %vm2739
      %vm2798 = vmand %vm2721, %vm2738
      %vm2799 = vmand %vm2722, %vm2739
      %vm2800 = vmand %vm2723, %vm2738
      %vm2801 = vmand %vm2724, %vm2739
      %vm2802 = vmand %vm2725, %vm2738
      %vm2803 = vmand %vm2726, %vm2739
      %vm2804 = vmand %vm2727, %vm2738
      %vm2805 = vmand %vm2728, %vm2739
      %v2806 = vsel %vm2740, 1, 0
      %v2807 = vsel %vm2741, 1, 0
      %v2808 = vsel %vm2742, 1, 0
      %v2809 = vsel %vm2743, 1, 0
      %v2810 = vsel %vm2744, 1, 0
      %v2811 = vsel %vm2745, 1, 0
      %v2812 = vsel %vm2746, 1, 0
      %v2813 = vsel %vm2747, 1, 0
      %v2814 = vsel %vm2748, 1, 0
      %v2815 = vsel %vm2749, 1, 0
      %v2816 = vsel %vm2750, 1, 0
      %v2817 = vsel %vm2751, 1, 0
      %v2818 = vsel %vm2752, 1, 0
      %v2819 = vsel %vm2753, 1, 0
      %v2820 = vsel %vm2754, 1, 0
      %v2821 = vsel %vm2755, 1, 0
      %v2822 = vsel %vm2756, 1, 0
      %v2823 = vsel %vm2757, 1, 0
      %v2824 = vsel %vm2758, 1, 0
      %v2825 = vsel %vm2759, 1, 0
      %v2826 = vsel %vm2760, 1, 0
      %v2827 = vsel %vm2761, 1, 0
      %v2828 = vsel %vm2762, 1, 0
      %v2829 = vsel %vm2763, 1, 0
      %v2830 = vsel %vm2764, 1, 0
      %v2831 = vsel %vm2765, 1, 0
      %v2832 = vsel %vm2766, 1, 0
      %v2833 = vsel %vm2767, 1, 0
      %v2834 = vsel %vm2768, 1, 0
      %v2835 = vsel %vm2769, 1, 0
      %v2836 = vsel %vm2770, 1, 0
      %v2837 = vsel %vm2771, 1, 0
      %v2838 = vsel %vm2772, 1, 0
      %v2839 = vsel %vm2773, 1, 0
      %v2840 = vsel %vm2774, 1, 0
      %v2841 = vsel %vm2775, 1, 0
      %v2842 = vsel %vm2776, 1, 0
      %v2843 = vsel %vm2777, 1, 0
      %v2844 = vsel %vm2778, 1, 0
      %v2845 = vsel %vm2779, 1, 0
      %v2846 = vsel %vm2780, 1, 0
      %v2847 = vsel %vm2781, 1, 0
      %v2848 = vsel %vm2782, 1, 0
      %v2849 = vsel %vm2783, 1, 0
      %v2850 = vsel %vm2784, 1, 0
      %v2851 = vsel %vm2785, 1, 0
      %v2852 = vsel %vm2786, 1, 0
      %v2853 = vsel %vm2787, 1, 0
      %v2854 = vsel %vm2788, 1, 0
      %v2855 = vsel %vm2789, 1, 0
      %v2856 = vsel %vm2790, 1, 0
      %v2857 = vsel %vm2791, 1, 0
      %v2858 = vsel %vm2792, 1, 0
      %v2859 = vsel %vm2793, 1, 0
      %v2860 = vsel %vm2794, 1, 0
      %v2861 = vsel %vm2795, 1, 0
      %v2862 = vsel %vm2796, 1, 0
      %v2863 = vsel %vm2797, 1, 0
      %v2864 = vsel %vm2798, 1, 0
      %v2865 = vsel %vm2799, 1, 0
      %v2866 = vsel %vm2800, 1, 0
      %v2867 = vsel %vm2801, 1, 0
      %v2868 = vsel %vm2802, 1, 0
      %v2869 = vsel %vm2803, 1, 0
      %v2870 = vsel %vm2804, 1, 0
      %v2871 = vsel %vm2805, 1, 0
      %v2872 = vcvt.s32.f32 %v2806
      %v2873 = vcvt.s32.f32 %v2807
      %v2874 = vcvt.s32.f32 %v2808
      %v2875 = vcvt.s32.f32 %v2809
      %v2876 = vcvt.s32.f32 %v2810
      %v2877 = vcvt.s32.f32 %v2811
      %v2878 = vcvt.s32.f32 %v2812
      %v2879 = vcvt.s32.f32 %v2813
      %v2880 = vcvt.s32.f32 %v2814
      %v2881 = vcvt.s32.f32 %v2815
      %v2882 = vcvt.s32.f32 %v2816
      %v2883 = vcvt.s32.f32 %v2817
      %v2884 = vcvt.s32.f32 %v2818
      %v2885 = vcvt.s32.f32 %v2819
      %v2886 = vcvt.s32.f32 %v2820
      %v2887 = vcvt.s32.f32 %v2821
      %v2888 = vcvt.s32.f32 %v2822
      %v2889 = vcvt.s32.f32 %v2823
      %v2890 = vcvt.s32.f32 %v2824
      %v2891 = vcvt.s32.f32 %v2825
      %v2892 = vcvt.s32.f32 %v2826
      %v2893 = vcvt.s32.f32 %v2827
      %v2894 = vcvt.s32.f32 %v2828
      %v2895 = vcvt.s32.f32 %v2829
      %v2896 = vcvt.s32.f32 %v2830
      %v2897 = vcvt.s32.f32 %v2831
      %v2898 = vcvt.s32.f32 %v2832
      %v2899 = vcvt.s32.f32 %v2833
      %v2900 = vcvt.s32.f32 %v2834
      %v2901 = vcvt.s32.f32 %v2835
      %v2902 = vcvt.s32.f32 %v2836
      %v2903 = vcvt.s32.f32 %v2837
      %v2904 = vcvt.s32.f32 %v2838
      %v2905 = vcvt.s32.f32 %v2839
      %v2906 = vcvt.s32.f32 %v2840
      %v2907 = vcvt.s32.f32 %v2841
      %v2908 = vcvt.s32.f32 %v2842
      %v2909 = vcvt.s32.f32 %v2843
      %v2910 = vcvt.s32.f32 %v2844
      %v2911 = vcvt.s32.f32 %v2845
      %v2912 = vcvt.s32.f32 %v2846
      %v2913 = vcvt.s32.f32 %v2847
      %v2914 = vcvt.s32.f32 %v2848
      %v2915 = vcvt.s32.f32 %v2849
      %v2916 = vcvt.s32.f32 %v2850
      %v2917 = vcvt.s32.f32 %v2851
      %v2918 = vcvt.s32.f32 %v2852
      %v2919 = vcvt.s32.f32 %v2853
      %v2920 = vcvt.s32.f32 %v2854
      %v2921 = vcvt.s32.f32 %v2855
      %v2922 = vcvt.s32.f32 %v2856
      %v2923 = vcvt.s32.f32 %v2857
      %v2924 = vcvt.s32.f32 %v2858
      %v2925 = vcvt.s32.f32 %v2859
      %v2926 = vcvt.s32.f32 %v2860
      %v2927 = vcvt.s32.f32 %v2861
      %v2928 = vcvt.s32.f32 %v2862
      %v2929 = vcvt.s32.f32 %v2863
      %v2930 = vcvt.s32.f32 %v2864
      %v2931 = vcvt.s32.f32 %v2865
      %v2932 = vcvt.s32.f32 %v2866
      %v2933 = vcvt.s32.f32 %v2867
      %v2934 = vcvt.s32.f32 %v2868
      %v2935 = vcvt.s32.f32 %v2869
      %v2936 = vcvt.s32.f32 %v2870
      %v2937 = vcvt.s32.f32 %v2871
      %v2938 = vld [vmem:[%s8] sm:$0xff]
      %v2939 = vld [vmem:[%s8 + $0x8] sm:$0xff]
      %v2940 = vld [vmem:[%s8 + $0x10] sm:$0xff]
      %v2941 = vld [vmem:[%s8 + $0x18] sm:$0xff]
      %v2942 = vld [vmem:[%s8 + $0x20] sm:$0x1]
      %v3009 = vrot.slane %v2874, 7
      %vm3010 = vcmask 1041409
      %v3011 = vsel %vm3010, %v3009, %v2872
      %v3012 = vrot.slane %v2876, 6
      %vm3013 = vcmask 1042434
      %v3014 = vsel %vm3013, %v3012, %v3011
      %v3015 = vrot.slane %v2878, 5
      %vm3016 = vcmask 1043459
      %v3017 = vsel %vm3016, %v3015, %v3014
      %v3018 = vrot.slane %v2880, 4
      %vm3019 = vcmask 1044484
      %v3020 = vsel %vm3019, %v3018, %v3017
      %v3021 = vrot.slane %v2882, 3
      %vm3022 = vcmask 1045509
      %v3023 = vsel %vm3022, %v3021, %v3020
      %v3024 = vrot.slane %v2884, 2
      %vm3025 = vcmask 1046534
      %v3026 = vsel %vm3025, %v3024, %v3023
      %v3027 = vrot.slane %v2886, 1
      %vm3028 = vcmask 1047559
      %v3029 = vsel %vm3028, %v3027, %v3026
      %v3030 = vrot.slane %v2875, 7
      %v3031 = vsel %vm3010, %v3030, %v2873
      %v3032 = vrot.slane %v2877, 6
      %v3033 = vsel %vm3013, %v3032, %v3031
      %v3034 = vrot.slane %v2879, 5
      %v3035 = vsel %vm3016, %v3034, %v3033
      %v3036 = vrot.slane %v2881, 4
      %v3037 = vsel %vm3019, %v3036, %v3035
      %v3038 = vrot.slane %v2883, 3
      %v3039 = vsel %vm3022, %v3038, %v3037
      %v3040 = vrot.slane %v2885, 2
      %v3041 = vsel %vm3025, %v3040, %v3039
      %v3042 = vrot.slane %v2887, 1
      %v3043 = vsel %vm3028, %v3042, %v3041
      %v3044 = vrot.slane %v2890, 7
      %v3045 = vsel %vm3010, %v3044, %v2888
      %v3046 = vrot.slane %v2892, 6
      %v3047 = vsel %vm3013, %v3046, %v3045
      %v3048 = vrot.slane %v2894, 5
      %v3049 = vsel %vm3016, %v3048, %v3047
      %v3050 = vrot.slane %v2896, 4
      %v3051 = vsel %vm3019, %v3050, %v3049
      %v3052 = vrot.slane %v2898, 3
      %v3053 = vsel %vm3022, %v3052, %v3051
      %v3054 = vrot.slane %v2900, 2
      %v3055 = vsel %vm3025, %v3054, %v3053
      %v3056 = vrot.slane %v2902, 1
      %v3057 = vsel %vm3028, %v3056, %v3055
      %v3058 = vrot.slane %v2891, 7
      %v3059 = vsel %vm3010, %v3058, %v2889
      %v3060 = vrot.slane %v2893, 6
      %v3061 = vsel %vm3013, %v3060, %v3059
      %v3062 = vrot.slane %v2895, 5
      %v3063 = vsel %vm3016, %v3062, %v3061
      %v3064 = vrot.slane %v2897, 4
      %v3065 = vsel %vm3019, %v3064, %v3063
      %v3066 = vrot.slane %v2899, 3
      %v3067 = vsel %vm3022, %v3066, %v3065
      %v3068 = vrot.slane %v2901, 2
      %v3069 = vsel %vm3025, %v3068, %v3067
      %v3070 = vrot.slane %v2903, 1
      %v3071 = vsel %vm3028, %v3070, %v3069
      %v3072 = vrot.slane %v2906, 7
      %v3073 = vsel %vm3010, %v3072, %v2904
      %v3074 = vrot.slane %v2908, 6
      %v3075 = vsel %vm3013, %v3074, %v3073
      %v3076 = vrot.slane %v2910, 5
      %v3077 = vsel %vm3016, %v3076, %v3075
      %v3078 = vrot.slane %v2912, 4
      %v3079 = vsel %vm3019, %v3078, %v3077
      %v3080 = vrot.slane %v2914, 3
      %v3081 = vsel %vm3022, %v3080, %v3079
      %v3082 = vrot.slane %v2916, 2
      %v3083 = vsel %vm3025, %v3082, %v3081
      %v3084 = vrot.slane %v2918, 1
      %v3085 = vsel %vm3028, %v3084, %v3083
      %v3086 = vrot.slane %v2907, 7
      %v3087 = vsel %vm3010, %v3086, %v2905
      %v3088 = vrot.slane %v2909, 6
      %v3089 = vsel %vm3013, %v3088, %v3087
      %v3090 = vrot.slane %v2911, 5
      %v3091 = vsel %vm3016, %v3090, %v3089
      %v3092 = vrot.slane %v2913, 4
      %v3093 = vsel %vm3019, %v3092, %v3091
      %v3094 = vrot.slane %v2915, 3
      %v3095 = vsel %vm3022, %v3094, %v3093
      %v3096 = vrot.slane %v2917, 2
      %v3097 = vsel %vm3025, %v3096, %v3095
      %v3098 = vrot.slane %v2919, 1
      %v3099 = vsel %vm3028, %v3098, %v3097
      %v3100 = vrot.slane %v2922, 7
      %v3101 = vsel %vm3010, %v3100, %v2920
      %v3102 = vrot.slane %v2924, 6
      %v3103 = vsel %vm3013, %v3102, %v3101
      %v3104 = vrot.slane %v2926, 5
      %v3105 = vsel %vm3016, %v3104, %v3103
      %v3106 = vrot.slane %v2928, 4
      %v3107 = vsel %vm3019, %v3106, %v3105
      %v3108 = vrot.slane %v2930, 3
      %v3109 = vsel %vm3022, %v3108, %v3107
      %v3110 = vrot.slane %v2932, 2
      %v3111 = vsel %vm3025, %v3110, %v3109
      %v3112 = vrot.slane %v2934, 1
      %v3113 = vsel %vm3028, %v3112, %v3111
      %v3114 = vrot.slane %v2923, 7
      %v3115 = vsel %vm3010, %v3114, %v2921
      %v3116 = vrot.slane %v2925, 6
      %v3117 = vsel %vm3013, %v3116, %v3115
      %v3118 = vrot.slane %v2927, 5
      %v3119 = vsel %vm3016, %v3118, %v3117
      %v3120 = vrot.slane %v2929, 4
      %v3121 = vsel %vm3019, %v3120, %v3119
      %v3122 = vrot.slane %v2931, 3
      %v3123 = vsel %vm3022, %v3122, %v3121
      %v3124 = vrot.slane %v2933, 2
      %v3125 = vsel %vm3025, %v3124, %v3123
      %v3126 = vrot.slane %v2935, 1
      %v3127 = vsel %vm3028, %v3126, %v3125
      %vm3136 = vcmask 269312
      %v3138 = vsel %vm3136, %v2938, 0
      %v3141 = vsel %vm3136, %v2939, 0
      %v3144 = vsel %vm3136, %v2940, 0
      %v3147 = vsel %vm3136, %v2941, 0
      %v3150 = vsel %vm3136, %v2942, 0
      %vm3152 = vcmask 1040384
      %v3153 = vsel %vm3152, %v2936, 0
      %v3155 = vsel %vm3152, %v2937, 0
      %3157 = vmatprep.subr.mxu0 %v3043
      %3158 = vmatpush1.msra.mxu0 %v3029
      %3159 = vmatprep.subr.mxu0 %v3071
      %3160 = vmatpush1.msra.mxu0 %v3057
      %3161 = vmatprep.subr.mxu0 %v3099
      %3162 = vmatpush1.msra.mxu0 %v3085
      %3163 = vmatprep.subr.mxu0 %v3127
      %3164 = vmatpush1.msra.mxu0 %v3113
      %3165 = vmatprep.subr.mxu0 %v3155
      %3166 = vmatpush1.msra.mxu0 %v3153
      %3167 = vmatprep.subr.mxu0 0.0
      %3168 = vmatpush1.msra.mxu0 0.0
      %3169 = vmatprep.subr.mxu0 0.0
      %3170 = vmatpush1.msra.mxu0 0.0
      %3171 = vmatprep.subr.mxu0 0.0
      %3172 = vmatpush1.msra.mxu0 0.0
      %3173 = vmatprep.subr.mxu0 0.0
      %3174 = vmatpush1.msra.mxu0 0.0
      %3175 = vmatprep.subr.mxu0 0.0
      %3176 = vmatpush1.msra.mxu0 0.0
      %3177 = vmatprep.subr.mxu0 0.0
      %3178 = vmatpush1.msra.mxu0 0.0
      %3179 = vmatprep.subr.mxu0 0.0
      %3180 = vmatpush1.msra.mxu0 0.0
      %3181 = vmatprep.subr.mxu0 0.0
      %3182 = vmatpush1.msra.mxu0 0.0
      %3183 = vmatprep.subr.mxu0 0.0
      %3184 = vmatpush1.msra.mxu0 0.0
      %3185 = vmatprep.subr.mxu0 0.0
      %3186 = vmatpush1.msra.mxu0 0.0
      %3187 = vmatprep.subr.mxu0 0.0
      %3188 = vmatpush1.msra.mxu0 0.0
      %3189 = vmatprep.subr.mxu0 0.0
      %3190 = vmatpush1.msra.mxu0 0.0
      %3191 = vmatprep.subr.mxu0 0.0
      %3192 = vmatpush1.msra.mxu0 0.0
      %3193 = vmatprep.subr.mxu0 0.0
      %3194 = vmatpush1.msra.mxu0 0.0
      %3195 = vmatprep.subr.mxu0 0.0
      %3196 = vmatpush1.msra.mxu0 0.0
      %3197 = vmatprep.subr.mxu0 0.0
      %3198 = vmatpush1.msra.mxu0 0.0
      %3199 = vmatprep.subr.mxu0 0.0
      %3200 = vmatpush1.msra.mxu0 0.0
      %3201 = vmatprep.subr.mxu0 0.0
      %3202 = vmatpush1.msra.mxu0 0.0
      %3203 = vmatprep.subr.mxu0 0.0
      %3204 = vmatpush1.msra.mxu0 0.0
      %3205 = vmatprep.subr.mxu0 0.0
      %3206 = vmatpush1.msra.mxu0 0.0
      %3207 = vmatprep.subr.mxu0 0.0
      %3208 = vmatpush1.msra.mxu0 0.0
      %3209 = vmatprep.subr.mxu0 0.0
      %3210 = vmatpush1.msra.mxu0 0.0
      %3211 = vmatprep.subr.mxu0 0.0
      %3212 = vmatpush1.msra.mxu0 0.0
      %3213 = vmatprep.subr.mxu0 0.0
      %3214 = vmatpush1.msra.mxu0 0.0
      %3215 = vmatprep.subr.mxu0 0.0
      %3216 = vmatpush1.msra.mxu0 0.0
      %3217 = vmatprep.subr.mxu0 0.0
      %3218 = vmatpush1.msra.mxu0 0.0
      %3219 = vmatprep.subr.mxu0 0.0
      %3220 = vmatpush1.msra.mxu0 0.0
      %3221 = vmatprep.mubr.f32.mxu0 0.0
      %3222 = vmatmul.mubr.f32.gmra.mrb[0].mxu0 %v3138
      %v3223 = vpop.f32.mrb[0].mxu0
      %v3224 = vadd.f32 0.0, %v3223
      %v3225 = vpop.f32.mrb[0].mxu0
      %v3226 = vadd.f32 0.0, %v3225
      %3227 = vmatprep.mubr.f32.mxu0 0.0
      %3228 = vmatmul.mubr.f32.gmra.mrb[0].mxu0 %v3141
      %v3229 = vpop.f32.mrb[0].mxu0
      %v3230 = vadd.f32 0.0, %v3229
      %v3231 = vpop.f32.mrb[0].mxu0
      %v3232 = vadd.f32 0.0, %v3231
      %3233 = vmatprep.mubr.f32.mxu0 0.0
      %3234 = vmatmul.mubr.f32.gmra.mrb[0].mxu0 %v3144
      %v3235 = vpop.f32.mrb[0].mxu0
      %v3236 = vadd.f32 0.0, %v3235
      %v3237 = vpop.f32.mrb[0].mxu0
      %v3238 = vadd.f32 0.0, %v3237
      %3239 = vmatprep.mubr.f32.mxu0 0.0
      %3240 = vmatmul.mubr.f32.gmra.mrb[0].mxu0 %v3147
      %v3241 = vpop.f32.mrb[0].mxu0
      %v3242 = vadd.f32 0.0, %v3241
      %v3243 = vpop.f32.mrb[0].mxu0
      %v3244 = vadd.f32 0.0, %v3243
      %3245 = vmatprep.mubr.f32.mxu0 0.0
      %3246 = vmatmul.mubr.f32.gmra.mrb[0].mxu0 %v3150
      %v3247 = vpop.f32.mrb[0].mxu0
      %v3248 = vadd.f32 0.0, %v3247
      %v3249 = vpop.f32.mrb[0].mxu0
      %v3250 = vadd.f32 0.0, %v3249
      %3251 = vdwg.mxu0
      %vm3252 = vcmp.gt.f32.partialorder %v3224, 0.5
      %vm3253 = vcmp.gt.f32.partialorder %v3226, 0.5
      %vm3254 = vcmp.gt.f32.partialorder %v3230, 0.5
      %vm3255 = vcmp.gt.f32.partialorder %v3232, 0.5
      %vm3256 = vcmp.gt.f32.partialorder %v3236, 0.5
      %vm3257 = vcmp.gt.f32.partialorder %v3238, 0.5
      %vm3258 = vcmp.gt.f32.partialorder %v3242, 0.5
      %vm3259 = vcmp.gt.f32.partialorder %v3244, 0.5
      %vm3260 = vcmp.gt.f32.partialorder %v3248, 0.5
      %vm3261 = vcmp.gt.f32.partialorder %v3250, 0.5
      %v3262 = vld [vmem:[%s6] sm:$0xff]
      %v3263 = vld [vmem:[%s6 + $0x8] sm:$0xff]
      %v3264 = vld [vmem:[%s6 + $0x10] sm:$0xff]
      %v3265 = vld [vmem:[%s6 + $0x18] sm:$0xff]
      %v3266 = vld [vmem:[%s6 + $0x20] sm:$0x1]
      %3268 = vset.pattern.permute.xlu0 0
      %3269 = vperm.xlu0 %3268, %v3262
      %v3270 = vpop.permute.xlu0 %3269
      %3272 = vset.pattern.permute.xlu0 0
      %3273 = vperm.xlu0 %3272, %v3263
      %v3274 = vpop.permute.xlu0 %3273
      %3276 = vset.pattern.permute.xlu0 0
      %3277 = vperm.xlu0 %3276, %v3264
      %v3278 = vpop.permute.xlu0 %3277
      %3280 = vset.pattern.permute.xlu0 0
      %3281 = vperm.xlu0 %3280, %v3265
      %v3282 = vpop.permute.xlu0 %3281
      %3284 = vset.pattern.permute.xlu0 0
      %3285 = vperm.xlu0 %3284, %v3266
      %v3286 = vpop.permute.xlu0 %3285
      %v3287 = vrot.slane %v3270, 1
      %v3288 = vrot.slane %v3270, 2
      %v3289 = vrot.slane %v3270, 3
      %v3290 = vrot.slane %v3270, 4
      %v3291 = vrot.slane %v3270, 5
      %v3292 = vrot.slane %v3270, 6
      %v3293 = vrot.slane %v3270, 7
      %v3294 = vrot.slane %v3274, 1
      %v3295 = vrot.slane %v3274, 2
      %v3296 = vrot.slane %v3274, 3
      %v3297 = vrot.slane %v3274, 4
      %v3298 = vrot.slane %v3274, 5
      %v3299 = vrot.slane %v3274, 6
      %v3300 = vrot.slane %v3274, 7
      %v3301 = vrot.slane %v3278, 1
      %v3302 = vrot.slane %v3278, 2
      %v3303 = vrot.slane %v3278, 3
      %v3304 = vrot.slane %v3278, 4
      %v3305 = vrot.slane %v3278, 5
      %v3306 = vrot.slane %v3278, 6
      %v3307 = vrot.slane %v3278, 7
      %v3308 = vrot.slane %v3282, 1
      %v3309 = vrot.slane %v3282, 2
      %v3310 = vrot.slane %v3282, 3
      %v3311 = vrot.slane %v3282, 4
      %v3312 = vrot.slane %v3282, 5
      %v3313 = vrot.slane %v3282, 6
      %v3314 = vrot.slane %v3282, 7
      %v3348 = vmul.f32 %v1813, %v3270
      %v3349 = vmul.f32 %v1824, %v3270
      %v3350 = vmul.f32 %v1835, %v3287
      %v3351 = vmul.f32 %v1846, %v3287
      %v3352 = vmul.f32 %v1857, %v3288
      %v3353 = vmul.f32 %v1868, %v3288
      %v3354 = vmul.f32 %v1879, %v3289
      %v3355 = vmul.f32 %v1890, %v3289
      %v3356 = vmul.f32 %v1901, %v3290
      %v3357 = vmul.f32 %v1912, %v3290
      %v3358 = vmul.f32 %v1923, %v3291
      %v3359 = vmul.f32 %v1934, %v3291
      %v3360 = vmul.f32 %v1945, %v3292
      %v3361 = vmul.f32 %v1956, %v3292
      %v3362 = vmul.f32 %v1967, %v3293
      %v3363 = vmul.f32 %v1978, %v3293
      %v3364 = vmul.f32 %v1989, %v3274
      %v3365 = vmul.f32 %v2000, %v3274
      %v3366 = vmul.f32 %v2011, %v3294
      %v3367 = vmul.f32 %v2022, %v3294
      %v3368 = vmul.f32 %v2033, %v3295
      %v3369 = vmul.f32 %v2044, %v3295
      %v3370 = vmul.f32 %v2055, %v3296
      %v3371 = vmul.f32 %v2066, %v3296
      %v3372 = vmul.f32 %v2077, %v3297
      %v3373 = vmul.f32 %v2088, %v3297
      %v3374 = vmul.f32 %v2099, %v3298
      %v3375 = vmul.f32 %v2110, %v3298
      %v3376 = vmul.f32 %v2121, %v3299
      %v3377 = vmul.f32 %v2132, %v3299
      %v3378 = vmul.f32 %v2143, %v3300
      %v3379 = vmul.f32 %v2154, %v3300
      %v3380 = vmul.f32 %v2165, %v3278
      %v3381 = vmul.f32 %v2176, %v3278
      %v3382 = vmul.f32 %v2187, %v3301
      %v3383 = vmul.f32 %v2198, %v3301
      %v3384 = vmul.f32 %v2209, %v3302
      %v3385 = vmul.f32 %v2220, %v3302
      %v3386 = vmul.f32 %v2231, %v3303
      %v3387 = vmul.f32 %v2242, %v3303
      %v3388 = vmul.f32 %v2253, %v3304
      %v3389 = vmul.f32 %v2264, %v3304
      %v3390 = vmul.f32 %v2275, %v3305
      %v3391 = vmul.f32 %v2286, %v3305
      %v3392 = vmul.f32 %v2297, %v3306
      %v3393 = vmul.f32 %v2308, %v3306
      %v3394 = vmul.f32 %v2319, %v3307
      %v3395 = vmul.f32 %v2330, %v3307
      %v3396 = vmul.f32 %v2341, %v3282
      %v3397 = vmul.f32 %v2352, %v3282
      %v3398 = vmul.f32 %v2363, %v3308
      %v3399 = vmul.f32 %v2374, %v3308
      %v3400 = vmul.f32 %v2385, %v3309
      %v3401 = vmul.f32 %v2396, %v3309
      %v3402 = vmul.f32 %v2407, %v3310
      %v3403 = vmul.f32 %v2418, %v3310
      %v3404 = vmul.f32 %v2429, %v3311
      %v3405 = vmul.f32 %v2440, %v3311
      %v3406 = vmul.f32 %v2451, %v3312
      %v3407 = vmul.f32 %v2462, %v3312
      %v3408 = vmul.f32 %v2473, %v3313
      %v3409 = vmul.f32 %v2484, %v3313
      %v3410 = vmul.f32 %v2495, %v3314
      %v3411 = vmul.f32 %v2506, %v3314
      %v3412 = vmul.f32 %v2517, %v3286
      %v3413 = vmul.f32 %v2528, %v3286
      %v3414 = vld [vmem:[%s7] sm:$0xff]
      %v3415 = vld [vmem:[%s7 + $0x8] sm:$0xff]
      %v3416 = vld [vmem:[%s7 + $0x10] sm:$0xff]
      %v3417 = vld [vmem:[%s7 + $0x18] sm:$0xff]
      %v3418 = vld [vmem:[%s7 + $0x20] sm:$0x1]
      %3420 = vset.pattern.permute.xlu0 0
      %3421 = vperm.xlu0 %3420, %v3414
      %v3422 = vpop.permute.xlu0 %3421
      %3424 = vset.pattern.permute.xlu0 0
      %3425 = vperm.xlu0 %3424, %v3415
      %v3426 = vpop.permute.xlu0 %3425
      %3428 = vset.pattern.permute.xlu0 0
      %3429 = vperm.xlu0 %3428, %v3416
      %v3430 = vpop.permute.xlu0 %3429
      %3432 = vset.pattern.permute.xlu0 0
      %3433 = vperm.xlu0 %3432, %v3417
      %v3434 = vpop.permute.xlu0 %3433
      %3436 = vset.pattern.permute.xlu0 0
      %3437 = vperm.xlu0 %3436, %v3418
      %v3438 = vpop.permute.xlu0 %3437
      %v3439 = vrot.slane %v3422, 1
      %v3440 = vrot.slane %v3422, 2
      %v3441 = vrot.slane %v3422, 3
      %v3442 = vrot.slane %v3422, 4
      %v3443 = vrot.slane %v3422, 5
      %v3444 = vrot.slane %v3422, 6
      %v3445 = vrot.slane %v3422, 7
      %v3446 = vrot.slane %v3426, 1
      %v3447 = vrot.slane %v3426, 2
      %v3448 = vrot.slane %v3426, 3
      %v3449 = vrot.slane %v3426, 4
      %v3450 = vrot.slane %v3426, 5
      %v3451 = vrot.slane %v3426, 6
      %v3452 = vrot.slane %v3426, 7
      %v3453 = vrot.slane %v3430, 1
      %v3454 = vrot.slane %v3430, 2
      %v3455 = vrot.slane %v3430, 3
      %v3456 = vrot.slane %v3430, 4
      %v3457 = vrot.slane %v3430, 5
      %v3458 = vrot.slane %v3430, 6
      %v3459 = vrot.slane %v3430, 7
      %v3460 = vrot.slane %v3434, 1
      %v3461 = vrot.slane %v3434, 2
      %v3462 = vrot.slane %v3434, 3
      %v3463 = vrot.slane %v3434, 4
      %v3464 = vrot.slane %v3434, 5
      %v3465 = vrot.slane %v3434, 6
      %v3466 = vrot.slane %v3434, 7
      %v3500 = vadd.f32 %v3348, %v3422
      %v3501 = vadd.f32 %v3349, %v3422
      %v3502 = vadd.f32 %v3350, %v3439
      %v3503 = vadd.f32 %v3351, %v3439
      %v3504 = vadd.f32 %v3352, %v3440
      %v3505 = vadd.f32 %v3353, %v3440
      %v3506 = vadd.f32 %v3354, %v3441
      %v3507 = vadd.f32 %v3355, %v3441
      %v3508 = vadd.f32 %v3356, %v3442
      %v3509 = vadd.f32 %v3357, %v3442
      %v3510 = vadd.f32 %v3358, %v3443
      %v3511 = vadd.f32 %v3359, %v3443
      %v3512 = vadd.f32 %v3360, %v3444
      %v3513 = vadd.f32 %v3361, %v3444
      %v3514 = vadd.f32 %v3362, %v3445
      %v3515 = vadd.f32 %v3363, %v3445
      %v3516 = vadd.f32 %v3364, %v3426
      %v3517 = vadd.f32 %v3365, %v3426
      %v3518 = vadd.f32 %v3366, %v3446
      %v3519 = vadd.f32 %v3367, %v3446
      %v3520 = vadd.f32 %v3368, %v3447
      %v3521 = vadd.f32 %v3369, %v3447
      %v3522 = vadd.f32 %v3370, %v3448
      %v3523 = vadd.f32 %v3371, %v3448
      %v3524 = vadd.f32 %v3372, %v3449
      %v3525 = vadd.f32 %v3373, %v3449
      %v3526 = vadd.f32 %v3374, %v3450
      %v3527 = vadd.f32 %v3375, %v3450
      %v3528 = vadd.f32 %v3376, %v3451
      %v3529 = vadd.f32 %v3377, %v3451
      %v3530 = vadd.f32 %v3378, %v3452
      %v3531 = vadd.f32 %v3379, %v3452
      %v3532 = vadd.f32 %v3380, %v3430
      %v3533 = vadd.f32 %v3381, %v3430
      %v3534 = vadd.f32 %v3382, %v3453
      %v3535 = vadd.f32 %v3383, %v3453
      %v3536 = vadd.f32 %v3384, %v3454
      %v3537 = vadd.f32 %v3385, %v3454
      %v3538 = vadd.f32 %v3386, %v3455
      %v3539 = vadd.f32 %v3387, %v3455
      %v3540 = vadd.f32 %v3388, %v3456
      %v3541 = vadd.f32 %v3389, %v3456
      %v3542 = vadd.f32 %v3390, %v3457
      %v3543 = vadd.f32 %v3391, %v3457
      %v3544 = vadd.f32 %v3392, %v3458
      %v3545 = vadd.f32 %v3393, %v3458
      %v3546 = vadd.f32 %v3394, %v3459
      %v3547 = vadd.f32 %v3395, %v3459
      %v3548 = vadd.f32 %v3396, %v3434
      %v3549 = vadd.f32 %v3397, %v3434
      %v3550 = vadd.f32 %v3398, %v3460
      %v3551 = vadd.f32 %v3399, %v3460
      %v3552 = vadd.f32 %v3400, %v3461
      %v3553 = vadd.f32 %v3401, %v3461
      %v3554 = vadd.f32 %v3402, %v3462
      %v3555 = vadd.f32 %v3403, %v3462
      %v3556 = vadd.f32 %v3404, %v3463
      %v3557 = vadd.f32 %v3405, %v3463
      %v3558 = vadd.f32 %v3406, %v3464
      %v3559 = vadd.f32 %v3407, %v3464
      %v3560 = vadd.f32 %v3408, %v3465
      %v3561 = vadd.f32 %v3409, %v3465
      %v3562 = vadd.f32 %v3410, %v3466
      %v3563 = vadd.f32 %v3411, %v3466
      %v3564 = vadd.f32 %v3412, %v3438
      %v3565 = vadd.f32 %v3413, %v3438
      %v3632 = vrot.slane %v3502, 7
      %v3633 = vsel %vm3010, %v3632, %v3500
      %v3634 = vrot.slane %v3504, 6
      %v3635 = vsel %vm3013, %v3634, %v3633
      %v3636 = vrot.slane %v3506, 5
      %v3637 = vsel %vm3016, %v3636, %v3635
      %v3638 = vrot.slane %v3508, 4
      %v3639 = vsel %vm3019, %v3638, %v3637
      %v3640 = vrot.slane %v3510, 3
      %v3641 = vsel %vm3022, %v3640, %v3639
      %v3642 = vrot.slane %v3512, 2
      %v3643 = vsel %vm3025, %v3642, %v3641
      %v3644 = vrot.slane %v3514, 1
      %v3645 = vsel %vm3028, %v3644, %v3643
      %v3646 = vrot.slane %v3503, 7
      %v3647 = vsel %vm3010, %v3646, %v3501
      %v3648 = vrot.slane %v3505, 6
      %v3649 = vsel %vm3013, %v3648, %v3647
      %v3650 = vrot.slane %v3507, 5
      %v3651 = vsel %vm3016, %v3650, %v3649
      %v3652 = vrot.slane %v3509, 4
      %v3653 = vsel %vm3019, %v3652, %v3651
      %v3654 = vrot.slane %v3511, 3
      %v3655 = vsel %vm3022, %v3654, %v3653
      %v3656 = vrot.slane %v3513, 2
      %v3657 = vsel %vm3025, %v3656, %v3655
      %v3658 = vrot.slane %v3515, 1
      %v3659 = vsel %vm3028, %v3658, %v3657
      %v3660 = vrot.slane %v3518, 7
      %v3661 = vsel %vm3010, %v3660, %v3516
      %v3662 = vrot.slane %v3520, 6
      %v3663 = vsel %vm3013, %v3662, %v3661
      %v3664 = vrot.slane %v3522, 5
      %v3665 = vsel %vm3016, %v3664, %v3663
      %v3666 = vrot.slane %v3524, 4
      %v3667 = vsel %vm3019, %v3666, %v3665
      %v3668 = vrot.slane %v3526, 3
      %v3669 = vsel %vm3022, %v3668, %v3667
      %v3670 = vrot.slane %v3528, 2
      %v3671 = vsel %vm3025, %v3670, %v3669
      %v3672 = vrot.slane %v3530, 1
      %v3673 = vsel %vm3028, %v3672, %v3671
      %v3674 = vrot.slane %v3519, 7
      %v3675 = vsel %vm3010, %v3674, %v3517
      %v3676 = vrot.slane %v3521, 6
      %v3677 = vsel %vm3013, %v3676, %v3675
      %v3678 = vrot.slane %v3523, 5
      %v3679 = vsel %vm3016, %v3678, %v3677
      %v3680 = vrot.slane %v3525, 4
      %v3681 = vsel %vm3019, %v3680, %v3679
      %v3682 = vrot.slane %v3527, 3
      %v3683 = vsel %vm3022, %v3682, %v3681
      %v3684 = vrot.slane %v3529, 2
      %v3685 = vsel %vm3025, %v3684, %v3683
      %v3686 = vrot.slane %v3531, 1
      %v3687 = vsel %vm3028, %v3686, %v3685
      %v3688 = vrot.slane %v3534, 7
      %v3689 = vsel %vm3010, %v3688, %v3532
      %v3690 = vrot.slane %v3536, 6
      %v3691 = vsel %vm3013, %v3690, %v3689
      %v3692 = vrot.slane %v3538, 5
      %v3693 = vsel %vm3016, %v3692, %v3691
      %v3694 = vrot.slane %v3540, 4
      %v3695 = vsel %vm3019, %v3694, %v3693
      %v3696 = vrot.slane %v3542, 3
      %v3697 = vsel %vm3022, %v3696, %v3695
      %v3698 = vrot.slane %v3544, 2
      %v3699 = vsel %vm3025, %v3698, %v3697
      %v3700 = vrot.slane %v3546, 1
      %v3701 = vsel %vm3028, %v3700, %v3699
      %v3702 = vrot.slane %v3535, 7
      %v3703 = vsel %vm3010, %v3702, %v3533
      %v3704 = vrot.slane %v3537, 6
      %v3705 = vsel %vm3013, %v3704, %v3703
      %v3706 = vrot.slane %v3539, 5
      %v3707 = vsel %vm3016, %v3706, %v3705
      %v3708 = vrot.slane %v3541, 4
      %v3709 = vsel %vm3019, %v3708, %v3707
      %v3710 = vrot.slane %v3543, 3
      %v3711 = vsel %vm3022, %v3710, %v3709
      %v3712 = vrot.slane %v3545, 2
      %v3713 = vsel %vm3025, %v3712, %v3711
      %v3714 = vrot.slane %v3547, 1
      %v3715 = vsel %vm3028, %v3714, %v3713
      %v3716 = vrot.slane %v3550, 7
      %v3717 = vsel %vm3010, %v3716, %v3548
      %v3718 = vrot.slane %v3552, 6
      %v3719 = vsel %vm3013, %v3718, %v3717
      %v3720 = vrot.slane %v3554, 5
      %v3721 = vsel %vm3016, %v3720, %v3719
      %v3722 = vrot.slane %v3556, 4
      %v3723 = vsel %vm3019, %v3722, %v3721
      %v3724 = vrot.slane %v3558, 3
      %v3725 = vsel %vm3022, %v3724, %v3723
      %v3726 = vrot.slane %v3560, 2
      %v3727 = vsel %vm3025, %v3726, %v3725
      %v3728 = vrot.slane %v3562, 1
      %v3729 = vsel %vm3028, %v3728, %v3727
      %v3730 = vrot.slane %v3551, 7
      %v3731 = vsel %vm3010, %v3730, %v3549
      %v3732 = vrot.slane %v3553, 6
      %v3733 = vsel %vm3013, %v3732, %v3731
      %v3734 = vrot.slane %v3555, 5
      %v3735 = vsel %vm3016, %v3734, %v3733
      %v3736 = vrot.slane %v3557, 4
      %v3737 = vsel %vm3019, %v3736, %v3735
      %v3738 = vrot.slane %v3559, 3
      %v3739 = vsel %vm3022, %v3738, %v3737
      %v3740 = vrot.slane %v3561, 2
      %v3741 = vsel %vm3025, %v3740, %v3739
      %v3742 = vrot.slane %v3563, 1
      %v3743 = vsel %vm3028, %v3742, %v3741
      %v3754 = vsel %vm3252, %v3645, %v671
      %v3755 = vsel %vm3253, %v3659, %v673
      %v3756 = vsel %vm3254, %v3673, %v677
      %v3757 = vsel %vm3255, %v3687, %v679
      %v3758 = vsel %vm3256, %v3701, %v683
      %v3759 = vsel %vm3257, %v3715, %v685
      %v3760 = vsel %vm3258, %v3729, %v689
      %v3761 = vsel %vm3259, %v3743, %v691
      %v3762 = vsel %vm3260, %v3564, %v695
      %v3763 = vsel %vm3261, %v3565, %v697
      %3764 = vst [vmem:[%s406] sm:$0xff] %v3754
      %3765 = vst [vmem:[%s406 + $0x8] sm:$0xff] %v3755
      %3766 = vst [vmem:[%s406 + $0x10] sm:$0xff] %v3756
      %3767 = vst [vmem:[%s406 + $0x18] sm:$0xff] %v3757
      %3768 = vst [vmem:[%s406 + $0x20] sm:$0xff] %v3758
      %3769 = vst [vmem:[%s406 + $0x28] sm:$0xff] %v3759
      %3770 = vst [vmem:[%s406 + $0x30] sm:$0xff] %v3760
      %3771 = vst [vmem:[%s406 + $0x38] sm:$0xff] %v3761
      %3772 = vst [vmem:[%s406 + $0x40] sm:$0x1] %v3762
      %3773 = vst [vmem:[%s406 + $0x48] sm:$0x1] %v3763
      %p3774 = scmp.lt.s32.totalorder %s22, 1
      %s3775 = scalar_select %p3774, %s22, 1
      %s3776 = smul.addr %s3775, 10
      %s3777 = smul.addr %s3776, 8
      %s3778 = scalar_lea.vmem %s11, %s3777
      // Predicated region
      $region65: #{shell2scale_forward.3} parent=63 // pred_check
        %p3779 = pneg %p281
      $region66: #{shell2scale_forward.3} parent=63 // pred_check_branch
        %3781 = sbr.rel (%p3779) target = $region68
      $region67: #{shell2scale_forward.3} parent=63 // pred_region
        _
      $region68: #{shell2scale_forward.3} parent=63 // pred_fallthru
        _
    $region64: #{shell2scale_forward.3} parent=5 // pred_fallthru
      _
    %p3782 = scmp.le.s32.totalorder 2, %s17
    // Predicated region
    $region69: #{shell2scale_forward.3} parent=5 // pred_check
      %p3783 = pneg %p3782
    $region70: #{shell2scale_forward.3} parent=5 // pred_check_branch
      %3785 = sbr.rel (%p3783) target = $region72
    $region71: #{shell2scale_forward.3} parent=5 // pred_region
      %s3786 = ssub.s32 %s17, 2
      // Predicated region
      $region73: #{shell2scale_forward.3} parent=71 // pred_check
        %p3787 = pneg %p287
      $region74: #{shell2scale_forward.3} parent=71 // pred_check_branch
        %3789 = sbr.rel (%p3787) target = $region76
      $region75: #{shell2scale_forward.3} parent=71 // pred_region
        %p3790 = scmp.lt.s32.totalorder %s23, 1
        %s3791 = scalar_select %p3790, %s23, 1
        %s3792 = smul.addr %s3791, 10
        %s3793 = smul.addr %s3792, 8
        %s3794 = scalar_lea.vmem %s11, %s3793
      $region76: #{shell2scale_forward.3} parent=71 // pred_fallthru
        _
    $region72: #{shell2scale_forward.3} parent=5 // pred_fallthru
      _
  $region6: #{shell2scale_forward.3} parent=0 // loop_footer
    %s21 = sadd.s32 1, %s17
  $region7: #{shell2scale_forward.3} parent=0 // loop_footer_branch
    %16 = sbr.rel target = $region3
  $region8: #{shell2scale_forward.3} parent=0 // loop_exit
    _

</llo_original>
